<compile_context>
chip_gen: v7x
topology: tpu7x:2x2x1
jax: 0.10.0
libtpu: 0.0.40
codegen_flags: <defaults>
</compile_context>

<pallas_src>
import jax
import jax.numpy as jnp
import numpy as np
from jax import lax
from jax.experimental import pallas as pl
from jax.experimental.pallas import tpu as pltpu

SELU_ALPHA = 1.6732632423543772
SELU_SCALE = 1.0507009873554805
BN_EPS = 1e-5


def _selu(x):
    # exp only sees non-positive inputs (overflow-safe); exact for SELU.
    return SELU_SCALE * jnp.where(
        x > 0, x, SELU_ALPHA * (jnp.exp(jnp.minimum(x, 0.0)) - 1.0))


# ---------------------------------------------------------------------------
# Fully fused kernel, one batch element per grid step:
#   3 x [ SELU(conv k=2) -> SELU(conv k=2) -> BatchNorm(eval) -> MaxPool1d(2) ]
#   -> Linear(feat,200) -> ReLU -> Linear(200,200) -> ReLU -> Linear(200,O)
# Each conv/pool block is evaluated on even/odd sequence phases so the pool is a
# single row-wise max and nothing but the (Lp, C) pooled map is stored to VMEM.
# ---------------------------------------------------------------------------
def fused_kernel(x_ref,
                 wa1, wb1, aux1, wa2, wb2, aux2, wa3, wb3, aux3,
                 ow1, ob1, ow2, ob2, ow3, ob3,
                 o_ref, scr1, scr2):
    f32 = jnp.float32
    bf16 = jnp.bfloat16

    def conv_pool_block(he, ho, wa_ref, wb_ref, aux_ref):
        # he/ho: even/odd rows of the block input, each (Lp+1, Cin) f32.
        # Returns pooled output (Lp, Cout) f32 (= MaxPool1d(2)(BN(SELU(conv_b(SELU(conv_a)))))).
        lp = he.shape[0] - 1
        ba = aux_ref[0:1, :]          # conv_a bias
        bb = aux_ref[1:2, :]          # conv_b bias
        sc = aux_ref[2:3, :]          # BN eval scale
        sh = aux_ref[3:4, :]          # BN eval shift
        wa0 = wa_ref[0]               # (Cin, Cout) bf16, tap 0
        wa1_ = wa_ref[1]              # tap 1
        wb0 = wb_ref[0]
        wb1_ = wb_ref[1]
        heb = he.astype(bf16)
        hob = ho.astype(bf16)
        # conv_a, even/odd output phases:  ya[l] = h[l]@W0 + h[l+1]@W1 + b
        ya_e = _selu(jnp.dot(heb, wa0, preferred_element_type=f32)
                     + jnp.dot(hob, wa1_, preferred_element_type=f32) + ba)        # ya[0::2], (lp+1, C)
        ya_o = _selu(jnp.dot(hob[:lp], wa0, preferred_element_type=f32)
                     + jnp.dot(heb[1:], wa1_, preferred_element_type=f32) + ba)    # ya[1::2], (lp, C)
        yaeb = ya_e.astype(bf16)
        yaob = ya_o.astype(bf16)
        # conv_b, even/odd output phases
        yb_e = _selu(jnp.dot(yaeb[:lp], wb0, preferred_element_type=f32)
                     + jnp.dot(yaob, wb1_, preferred_element_type=f32) + bb)       # yb[0::2], (lp, C)
        yb_o = _selu(jnp.dot(yaob, wb0, preferred_element_type=f32)
                     + jnp.dot(yaeb[1:], wb1_, preferred_element_type=f32) + bb)   # yb[1::2], (lp, C)
        # BN (eval affine, applied before the max so a negative scale stays exact),
        # then MaxPool1d(2) == element-wise max of the two phases.
        return jnp.maximum(yb_e * sc + sh, yb_o * sc + sh)                          # (lp, C)

    Lp1 = scr1.shape[0]
    Lp2 = scr2.shape[0]
    Lp3 = ow1.shape[0]

    # ---- block 1: phases read straight from the input block (strided ref reads)
    he = x_ref[pl.ds(0, Lp1 + 1, stride=2), :]
    ho = x_ref[pl.ds(1, Lp1 + 1, stride=2), :]
    scr1[...] = conv_pool_block(he, ho, wa1, wb1, aux1)            # (Lp1, H)

    # ---- block 2
    he = scr1[pl.ds(0, Lp2 + 1, stride=2), :]
    ho = scr1[pl.ds(1, Lp2 + 1, stride=2), :]
    scr2[...] = conv_pool_block(he, ho, wa2, wb2, aux2)            # (Lp2, H//2)

    # ---- block 3: result stays a value and feeds the fused head directly
    he = scr2[pl.ds(0, Lp3 + 1, stride=2), :]
    ho = scr2[pl.ds(1, Lp3 + 1, stride=2), :]
    feat = conv_pool_block(he, ho, wa3, wb3, aux3)                 # (Lp3, C3) f32

    # ---- fused MLP head.  Linear(feat -> 200) is an Lp3-batched contraction of the
    # (Lp3, C3) feature map against ow1 (Lp3, C3, 200): no in-kernel flatten/transpose.
    h3 = jnp.expand_dims(feat.astype(bf16), 1)                     # (Lp3, 1, C3)
    part = lax.dot_general(h3, ow1[...],
                           dimension_numbers=(((2,), (1,)), ((0,), (0,))),
                           preferred_element_type=f32)             # (Lp3, 1, 200)
    h1 = jnp.maximum(jnp.sum(part, axis=0) + ob1[...], 0.0)        # (1, 200)
    h2 = jnp.maximum(
        jnp.dot(h1.astype(bf16), ow2[...], preferred_element_type=f32) + ob2[...], 0.0)
    o_ref[...] = jnp.dot(h2.astype(bf16), ow3[...], preferred_element_type=f32) + ob3[...]


def fused_forward(x_nlc, w):
    """x_nlc: (B, L, C_in) channels-last input.  w: prepare_params() output."""
    B, L, C_in = x_nlc.shape
    H = w["wa1"].shape[2]
    H2 = w["wa3"].shape[2]
    O = w["ow3"].shape[1]

    Lp1 = (L - 2) // 2
    Lp2 = (Lp1 - 2) // 2
    Lp3 = (Lp2 - 2) // 2
    assert w["ow1"].shape[0] == Lp3, (w["ow1"].shape, Lp3)

    weight_args = [
        w["wa1"], w["wb1"], w["aux1"],
        w["wa2"], w["wb2"], w["aux2"],
        w["wa3"], w["wb3"], w["aux3"],
        w["ow1"], w["ob1"], w["ow2"], w["ob2"], w["ow3"], w["ob3"],
    ]

    def _const_spec(a):
        n = a.ndim
        return pl.BlockSpec(a.shape, lambda b, _n=n: (0,) * _n)

    in_specs = ([pl.BlockSpec((None, L, C_in), lambda b: (b, 0, 0))]
                + [_const_spec(a) for a in weight_args])

    # Explicit VMEM budget: double-buffered input block + weight blocks + output,
    # scratches, and headroom for live conv-phase values; clamp to [32, 64] MiB so
    # v5e's 16 MiB scoped default is raised and v7x's 64 MiB physical is respected.
    def _nbytes(a):
        return int(np.prod(a.shape)) * a.dtype.itemsize

    est = (2 * L * C_in * 4
           + 2 * sum(_nbytes(a) for a in weight_args)
           + 2 * O * 4
           + (Lp1 * H + Lp2 * H2) * 4
           + 10 * (Lp1 + 1) * max(H, H2, C_in) * 4)
    vmem_limit = int(min(64 * 1024 * 1024, max(32 * 1024 * 1024, 2 * est)))

    out3 = pl.pallas_call(
        fused_kernel,
        out_shape=jax.ShapeDtypeStruct((B, 1, O), jnp.float32),
        grid=(B,),
        in_specs=in_specs,
        out_specs=pl.BlockSpec((None, 1, O), lambda b: (b, 0, 0)),
        scratch_shapes=[pltpu.VMEM((Lp1, H), jnp.float32),
                        pltpu.VMEM((Lp2, H2), jnp.float32)],
        compiler_params=pltpu.CompilerParams(
            dimension_semantics=("parallel",),
            vmem_limit_bytes=vmem_limit),
    )(x_nlc, *weight_args)
    return out3.reshape(B, O)


# ---------------------------------------------------------------------------
# One-time (outside jit) parameter re-layout: BN0 folding into conv1, BN eval
# affines, conv taps -> stacked matmul matrices (bf16), head weight permutation
# so the kernel's (Lp3, C3) feature map contracts directly against out_w1.
# ---------------------------------------------------------------------------
def prepare_params(p, matmul_dtype=jnp.bfloat16):
    def conv_stack(w):                         # (C_out, C_in, 2) -> (2, C_in, C_out)
        return jnp.stack([w[:, :, 0].T, w[:, :, 1].T]).astype(matmul_dtype)

    def bn_affine(g, beta, m, v):
        s = g / jnp.sqrt(v + BN_EPS)
        return s, beta - m * s

    out = {}
    # Fold batch_norm0 (eval-mode per-channel affine) into conv1 (exact).
    s0, t0 = bn_affine(p["bn0_gamma"], p["bn0_beta"], p["bn0_mean"], p["bn0_var"])
    w1 = p["conv1_w"] * s0[None, :, None]
    b1 = p["conv1_b"] + jnp.sum(p["conv1_w"] * t0[None, :, None], axis=(1, 2))

    def block_params(wa, ba, wb, bb, g, beta, m, v):
        s, t = bn_affine(g, beta, m, v)
        aux = jnp.stack([ba, bb, s, t]).astype(jnp.float32)   # (4, C_out)
        return conv_stack(wa), conv_stack(wb), aux

    out["wa1"], out["wb1"], out["aux1"] = block_params(
        w1, b1, p["conv2_w"], p["conv2_b"],
        p["bn1_gamma"], p["bn1_beta"], p["bn1_mean"], p["bn1_var"])
    out["wa2"], out["wb2"], out["aux2"] = block_params(
        p["conv3_w"], p["conv3_b"], p["conv4_w"], p["conv4_b"],
        p["bn2_gamma"], p["bn2_beta"], p["bn2_mean"], p["bn2_var"])
    out["wa3"], out["wb3"], out["aux3"] = block_params(
        p["conv5_w"], p["conv5_b"], p["conv6_w"], p["conv6_b"],
        p["bn3_gamma"], p["bn3_beta"], p["bn3_mean"], p["bn3_var"])

    # Head: out_w1 is (200, feat) over torch's (C3, Lp3) flatten order; reshape to
    # (Lp3, C3, 200) so the kernel contracts the channels-last (Lp3, C3) feature map
    # with no in-kernel flatten/transpose and no head weight transposes per call.
    C3 = p["conv6_w"].shape[0]
    feat = p["out_w1"].shape[1]
    Lp3 = feat // C3
    out["ow1"] = jnp.transpose(p["out_w1"].reshape(-1, C3, Lp3), (2, 1, 0)).astype(matmul_dtype)
    out["ob1"] = p["out_b1"].reshape(1, -1).astype(jnp.float32)
    out["ow2"] = jnp.transpose(p["out_w2"]).astype(matmul_dtype)
    out["ob2"] = p["out_b2"].reshape(1, -1).astype(jnp.float32)
    out["ow3"] = jnp.transpose(p["out_w3"]).astype(matmul_dtype)
    out["ob3"] = p["out_b3"].reshape(1, -1).astype(jnp.float32)
    return out


# ---------------------------------------------------------------------------
# Full forward (label=True path).
# ---------------------------------------------------------------------------
def conv1d_bn_linear_forward(x_ncl, w):
    # TODO(synk): pp.Preprocessor() is an external module with unknown semantics; treated as identity.
    x = jnp.transpose(x_ncl, (0, 2, 1))       # (B, L, C_in), channels-last
    return fused_forward(x, w)                # (B, output_size)


# ---------------------------------------------------------------------------
# Deterministic parameter init (shapes follow the module's __init__).
# ---------------------------------------------------------------------------
def _l_out_conv(l, k):
    return l - (k - 1)


def _l_out_pool(l, k):
    return (l - k) // k + 1


def init_params(key, input_size, output_size, hidden_size, seq_len, kernel_size=2, pool_size=2):
    h, h2 = hidden_size, hidden_size // 2
    keys = iter(jax.random.split(key, 48))

    def nrm(shape, scale=0.1):
        return scale * jax.random.normal(next(keys), shape, dtype=jnp.float32)

    params = {}

    def bn(prefix, c):
        params[prefix + "_gamma"] = 1.0 + nrm((c,))
        params[prefix + "_beta"] = nrm((c,))
        params[prefix + "_mean"] = nrm((c,))
        params[prefix + "_var"] = jax.random.uniform(next(keys), (c,), minval=0.5,
                                                     maxval=1.5, dtype=jnp.float32)

    lout = seq_len
    bn("bn0", input_size)
    params["conv1_w"], params["conv1_b"] = nrm((h, input_size, kernel_size)), nrm((h,))
    lout = _l_out_conv(lout, kernel_size)
    params["conv2_w"], params["conv2_b"] = nrm((h, h, kernel_size)), nrm((h,))
    lout = _l_out_conv(lout, kernel_size)
    bn("bn1", h)
    lout = _l_out_pool(lout, pool_size)

    params["conv3_w"], params["conv3_b"] = nrm((h2, h, kernel_size)), nrm((h2,))
    lout = _l_out_conv(lout, kernel_size)
    params["conv4_w"], params["conv4_b"] = nrm((h2, h2, kernel_size)), nrm((h2,))
    lout = _l_out_conv(lout, kernel_size)
    bn("bn2", h2)
    lout = _l_out_pool(lout, pool_size)

    params["conv5_w"], params["conv5_b"] = nrm((h2, h2, kernel_size)), nrm((h2,))
    lout = _l_out_conv(lout, kernel_size)
    params["conv6_w"], params["conv6_b"] = nrm((h2, h2, kernel_size)), nrm((h2,))
    lout = _l_out_conv(lout, kernel_size)
    bn("bn3", h2)
    lout = _l_out_pool(lout, pool_size)

    feat = h2 * lout
    params["out_w1"], params["out_b1"] = nrm((200, feat)), nrm((200,))
    params["out_w2"], params["out_b2"] = nrm((200, 200)), nrm((200,))
    params["out_w3"], params["out_b3"] = nrm((output_size, 200)), nrm((output_size,))
    return params


# ---------------------------------------------------------------------------
# Pure-JAX reference (same math as PyTorch eval-mode forward) for validation.
# ---------------------------------------------------------------------------
def reference_forward(x_ncl, p):
    def conv1d(x, w, b):
        y = lax.conv_general_dilated(x, w, window_strides=(1,), padding="VALID",
                                     dimension_numbers=("NCH", "OIH", "NCH"))
        return y + b[None, :, None]

    def bn(x, g, bta, m, v):
        return (x - m[None, :, None]) / jnp.sqrt(v[None, :, None] + BN_EPS) \
            * g[None, :, None] + bta[None, :, None]

    def selu(x):
        return SELU_SCALE * jnp.where(x > 0, x, SELU_ALPHA * (jnp.exp(x) - 1.0))

    def pool(x):
        return lax.reduce_window(x, -jnp.inf, lax.max, (1, 1, 2), (1, 1, 2), "VALID")

    x = bn(x_ncl, p["bn0_gamma"], p["bn0_beta"], p["bn0_mean"], p["bn0_var"])
    x = pool(bn(selu(conv1d(selu(conv1d(x, p["conv1_w"], p["conv1_b"])),
                            p["conv2_w"], p["conv2_b"])),
                p["bn1_gamma"], p["bn1_beta"], p["bn1_mean"], p["bn1_var"]))
    x = pool(bn(selu(conv1d(selu(conv1d(x, p["conv3_w"], p["conv3_b"])),
                            p["conv4_w"], p["conv4_b"])),
                p["bn2_gamma"], p["bn2_beta"], p["bn2_mean"], p["bn2_var"]))
    x = pool(bn(selu(conv1d(selu(conv1d(x, p["conv5_w"], p["conv5_b"])),
                            p["conv6_w"], p["conv6_b"])),
                p["bn3_gamma"], p["bn3_beta"], p["bn3_mean"], p["bn3_var"]))
    xf = x.reshape(x.shape[0], -1)
    h = jnp.maximum(xf @ p["out_w1"].T + p["out_b1"], 0.0)
    h = jnp.maximum(h @ p["out_w2"].T + p["out_b2"], 0.0)
    return h @ p["out_w3"].T + p["out_b3"]


if __name__ == "__main__":
    # Small shapes consistent with the module (original uses L=3750; we keep the
    # same length arithmetic).  B=4 keeps both v7x TensorCores pipelined.
    input_size, hidden_size, output_size = 4, 32, 5
    B, L = 4, 128

    key = jax.random.PRNGKey(0)
    kx, kp = jax.random.split(key)
    x = jax.random.normal(kx, (B, input_size, L), dtype=jnp.float32)
    params = init_params(kp, input_size, output_size, hidden_size, seq_len=L)

    # One-time weight re-layout (BN folding, bf16 matmul weights) outside jit.
    kernel_weights = jax.tree_util.tree_map(
        jax.block_until_ready, prepare_params(params))

    fwd = jax.jit(conv1d_bn_linear_forward)
    out = jax.block_until_ready(fwd(x, kernel_weights))

    ref = np.asarray(reference_forward(x, params))
    assert out.shape == (B, output_size), out.shape
    # bf16 matmul operands (f32 accumulation) vs. a pure-f32 reference => tolerance
    # is set to cover bf16 operand rounding through 9 matmul layers.
    np.testing.assert_allclose(np.asarray(out), ref, rtol=2.5e-2, atol=2.5e-2)
    print("KERNEL_OK")
</pallas_src>

<mosaic_0001>
module attributes {stable_mosaic.version = 11 : i64} {
  func.func @fused_kernel(%arg0: i32, %arg1: memref<1x128x4xf32, #tpu.memory_space<vmem>>, %arg2: memref<2x4x32xbf16, #tpu.memory_space<vmem>>, %arg3: memref<2x32x32xbf16, #tpu.memory_space<vmem>>, %arg4: memref<4x32xf32, #tpu.memory_space<vmem>>, %arg5: memref<2x32x16xbf16, #tpu.memory_space<vmem>>, %arg6: memref<2x16x16xbf16, #tpu.memory_space<vmem>>, %arg7: memref<4x16xf32, #tpu.memory_space<vmem>>, %arg8: memref<2x16x16xbf16, #tpu.memory_space<vmem>>, %arg9: memref<2x16x16xbf16, #tpu.memory_space<vmem>>, %arg10: memref<4x16xf32, #tpu.memory_space<vmem>>, %arg11: memref<14x16x200xbf16, #tpu.memory_space<vmem>>, %arg12: memref<1x200xf32, #tpu.memory_space<vmem>>, %arg13: memref<200x200xbf16, #tpu.memory_space<vmem>>, %arg14: memref<1x200xf32, #tpu.memory_space<vmem>>, %arg15: memref<200x5xbf16, #tpu.memory_space<vmem>>, %arg16: memref<1x5xf32, #tpu.memory_space<vmem>>, %arg17: memref<1x1x5xf32, #tpu.memory_space<vmem>>, %arg18: memref<63x32xf32, #tpu.memory_space<vmem>>, %arg19: memref<30x16xf32, #tpu.memory_space<vmem>>) attributes {dimension_semantics = [#tpu.dimension_semantics<parallel>], iteration_bounds = array<i64: 4>, scalar_prefetch = 0 : i64, scratch_operands = 2 : i64, tpu.core_type = #tpu.core_type<tc>, window_params = [{transform_indices = @transform_0, window_bounds = array<i64: 1, 128, 4>}, {pipeline_mode = #tpu.pipeline_mode<synchronous>, transform_indices = @transform_1, window_bounds = array<i64: 2, 4, 32>}, {pipeline_mode = #tpu.pipeline_mode<synchronous>, transform_indices = @transform_2, window_bounds = array<i64: 2, 32, 32>}, {pipeline_mode = #tpu.pipeline_mode<synchronous>, transform_indices = @transform_3, window_bounds = array<i64: 4, 32>}, {pipeline_mode = #tpu.pipeline_mode<synchronous>, transform_indices = @transform_4, window_bounds = array<i64: 2, 32, 16>}, {pipeline_mode = #tpu.pipeline_mode<synchronous>, transform_indices = @transform_5, window_bounds = array<i64: 2, 16, 16>}, {pipeline_mode = #tpu.pipeline_mode<synchronous>, transform_indices = @transform_6, window_bounds = array<i64: 4, 16>}, {pipeline_mode = #tpu.pipeline_mode<synchronous>, transform_indices = @transform_7, window_bounds = array<i64: 2, 16, 16>}, {pipeline_mode = #tpu.pipeline_mode<synchronous>, transform_indices = @transform_8, window_bounds = array<i64: 2, 16, 16>}, {pipeline_mode = #tpu.pipeline_mode<synchronous>, transform_indices = @transform_9, window_bounds = array<i64: 4, 16>}, {pipeline_mode = #tpu.pipeline_mode<synchronous>, transform_indices = @transform_10, window_bounds = array<i64: 14, 16, 200>}, {pipeline_mode = #tpu.pipeline_mode<synchronous>, transform_indices = @transform_11, window_bounds = array<i64: 1, 200>}, {pipeline_mode = #tpu.pipeline_mode<synchronous>, transform_indices = @transform_12, window_bounds = array<i64: 200, 200>}, {pipeline_mode = #tpu.pipeline_mode<synchronous>, transform_indices = @transform_13, window_bounds = array<i64: 1, 200>}, {pipeline_mode = #tpu.pipeline_mode<synchronous>, transform_indices = @transform_14, window_bounds = array<i64: 200, 5>}, {pipeline_mode = #tpu.pipeline_mode<synchronous>, transform_indices = @transform_15, window_bounds = array<i64: 1, 5>}, {transform_indices = @transform_16, window_bounds = array<i64: 1, 1, 5>}]} {
    %c0 = arith.constant 0 : index
    %c0_0 = arith.constant 0 : index
    %c0_1 = arith.constant 0 : index
    %0 = tpu.strided_load %arg1[%c0, %c0_0, %c0_1] {strides = array<i32: 1, 2, 1>} : memref<1x128x4xf32, #tpu.memory_space<vmem>>, vector<1x64x4xf32>
    %1 = vector.shape_cast %0 : vector<1x64x4xf32> to vector<64x4xf32>
    %c0_2 = arith.constant 0 : index
    %c1 = arith.constant 1 : index
    %c0_3 = arith.constant 0 : index
    %2 = tpu.strided_load %arg1[%c0_2, %c1, %c0_3] {strides = array<i32: 1, 2, 1>} : memref<1x128x4xf32, #tpu.memory_space<vmem>>, vector<1x64x4xf32>
    %3 = vector.shape_cast %2 : vector<1x64x4xf32> to vector<64x4xf32>
    %c0_4 = arith.constant 0 : index
    %c0_5 = arith.constant 0 : index
    %4 = vector.load %arg4[%c0_4, %c0_5] : memref<4x32xf32, #tpu.memory_space<vmem>>, vector<1x32xf32>
    %c1_6 = arith.constant 1 : index
    %c0_7 = arith.constant 0 : index
    %5 = vector.load %arg4[%c1_6, %c0_7] : memref<4x32xf32, #tpu.memory_space<vmem>>, vector<1x32xf32>
    %c2 = arith.constant 2 : index
    %c0_8 = arith.constant 0 : index
    %6 = vector.load %arg4[%c2, %c0_8] : memref<4x32xf32, #tpu.memory_space<vmem>>, vector<1x32xf32>
    %c3 = arith.constant 3 : index
    %c0_9 = arith.constant 0 : index
    %7 = vector.load %arg4[%c3, %c0_9] : memref<4x32xf32, #tpu.memory_space<vmem>>, vector<1x32xf32>
    %c0_10 = arith.constant 0 : index
    %c0_11 = arith.constant 0 : index
    %c0_12 = arith.constant 0 : index
    %8 = vector.load %arg2[%c0_10, %c0_11, %c0_12] : memref<2x4x32xbf16, #tpu.memory_space<vmem>>, vector<1x4x32xbf16>
    %9 = vector.shape_cast %8 : vector<1x4x32xbf16> to vector<4x32xbf16>
    %c1_13 = arith.constant 1 : index
    %c0_14 = arith.constant 0 : index
    %c0_15 = arith.constant 0 : index
    %10 = vector.load %arg2[%c1_13, %c0_14, %c0_15] : memref<2x4x32xbf16, #tpu.memory_space<vmem>>, vector<1x4x32xbf16>
    %11 = vector.shape_cast %10 : vector<1x4x32xbf16> to vector<4x32xbf16>
    %c0_16 = arith.constant 0 : index
    %c0_17 = arith.constant 0 : index
    %c0_18 = arith.constant 0 : index
    %12 = vector.load %arg3[%c0_16, %c0_17, %c0_18] : memref<2x32x32xbf16, #tpu.memory_space<vmem>>, vector<1x32x32xbf16>
    %13 = vector.shape_cast %12 : vector<1x32x32xbf16> to vector<32x32xbf16>
    %c1_19 = arith.constant 1 : index
    %c0_20 = arith.constant 0 : index
    %c0_21 = arith.constant 0 : index
    %14 = vector.load %arg3[%c1_19, %c0_20, %c0_21] : memref<2x32x32xbf16, #tpu.memory_space<vmem>>, vector<1x32x32xbf16>
    %15 = vector.shape_cast %14 : vector<1x32x32xbf16> to vector<32x32xbf16>
    %16 = arith.truncf %1 : vector<64x4xf32> to vector<64x4xbf16>
    %17 = arith.truncf %3 : vector<64x4xf32> to vector<64x4xbf16>
    %cst = arith.constant dense<0.000000e+00> : vector<64x32xf32>
    %18 = tpu.matmul %16, %9, %cst {dimension_numbers = #tpu.dot_dimension_numbers<[1], [0], [0], [1], [0, 0, 1, 1], [], []>} : vector<64x4xbf16>, vector<4x32xbf16>, vector<64x32xf32> -> vector<64x32xf32>
    %cst_22 = arith.constant dense<0.000000e+00> : vector<64x32xf32>
    %19 = tpu.matmul %17, %11, %cst_22 {dimension_numbers = #tpu.dot_dimension_numbers<[1], [0], [0], [1], [0, 0, 1, 1], [], []>} : vector<64x4xbf16>, vector<4x32xbf16>, vector<64x32xf32> -> vector<64x32xf32>
    %20 = arith.addf %18, %19 : vector<64x32xf32>
    %21 = vector.broadcast %4 : vector<1x32xf32> to vector<64x32xf32>
    %22 = arith.addf %20, %21 : vector<64x32xf32>
    %cst_23 = arith.constant 0.000000e+00 : f32
    %23 = vector.broadcast %cst_23 : f32 to vector<64x32xf32>
    %24 = arith.cmpf ogt, %22, %23 : vector<64x32xf32>
    %cst_24 = arith.constant 0.000000e+00 : f32
    %25 = vector.broadcast %cst_24 : f32 to vector<64x32xf32>
    %26 = arith.minimumf %22, %25 : vector<64x32xf32>
    %27 = math.exp %26 : vector<64x32xf32>
    %cst_25 = arith.constant 1.000000e+00 : f32
    %28 = vector.broadcast %cst_25 : f32 to vector<64x32xf32>
    %29 = arith.subf %27, %28 : vector<64x32xf32>
    %cst_26 = arith.constant 1.67326319 : f32
    %30 = vector.broadcast %cst_26 : f32 to vector<64x32xf32>
    %31 = arith.mulf %30, %29 : vector<64x32xf32>
    %32 = arith.select %24, %22, %31 : vector<64x32xi1>, vector<64x32xf32>
    %cst_27 = arith.constant 1.05070102 : f32
    %33 = vector.broadcast %cst_27 : f32 to vector<64x32xf32>
    %34 = arith.mulf %33, %32 : vector<64x32xf32>
    %35 = vector.extract_strided_slice %17 {offsets = [0, 0], sizes = [63, 4], strides = [1, 1]} : vector<64x4xbf16> to vector<63x4xbf16>
    %cst_28 = arith.constant dense<0.000000e+00> : vector<63x32xf32>
    %36 = tpu.matmul %35, %9, %cst_28 {dimension_numbers = #tpu.dot_dimension_numbers<[1], [0], [0], [1], [0, 0, 1, 1], [], []>} : vector<63x4xbf16>, vector<4x32xbf16>, vector<63x32xf32> -> vector<63x32xf32>
    %37 = vector.extract_strided_slice %16 {offsets = [1, 0], sizes = [63, 4], strides = [1, 1]} : vector<64x4xbf16> to vector<63x4xbf16>
    %cst_29 = arith.constant dense<0.000000e+00> : vector<63x32xf32>
    %38 = tpu.matmul %37, %11, %cst_29 {dimension_numbers = #tpu.dot_dimension_numbers<[1], [0], [0], [1], [0, 0, 1, 1], [], []>} : vector<63x4xbf16>, vector<4x32xbf16>, vector<63x32xf32> -> vector<63x32xf32>
    %39 = arith.addf %36, %38 : vector<63x32xf32>
    %40 = vector.broadcast %4 : vector<1x32xf32> to vector<63x32xf32>
    %41 = arith.addf %39, %40 : vector<63x32xf32>
    %cst_30 = arith.constant 0.000000e+00 : f32
    %42 = vector.broadcast %cst_30 : f32 to vector<63x32xf32>
    %43 = arith.cmpf ogt, %41, %42 : vector<63x32xf32>
    %cst_31 = arith.constant 0.000000e+00 : f32
    %44 = vector.broadcast %cst_31 : f32 to vector<63x32xf32>
    %45 = arith.minimumf %41, %44 : vector<63x32xf32>
    %46 = math.exp %45 : vector<63x32xf32>
    %cst_32 = arith.constant 1.000000e+00 : f32
    %47 = vector.broadcast %cst_32 : f32 to vector<63x32xf32>
    %48 = arith.subf %46, %47 : vector<63x32xf32>
    %cst_33 = arith.constant 1.67326319 : f32
    %49 = vector.broadcast %cst_33 : f32 to vector<63x32xf32>
    %50 = arith.mulf %49, %48 : vector<63x32xf32>
    %51 = arith.select %43, %41, %50 : vector<63x32xi1>, vector<63x32xf32>
    %cst_34 = arith.constant 1.05070102 : f32
    %52 = vector.broadcast %cst_34 : f32 to vector<63x32xf32>
    %53 = arith.mulf %52, %51 : vector<63x32xf32>
    %54 = arith.truncf %34 : vector<64x32xf32> to vector<64x32xbf16>
    %55 = arith.truncf %53 : vector<63x32xf32> to vector<63x32xbf16>
    %56 = vector.extract_strided_slice %54 {offsets = [0, 0], sizes = [63, 32], strides = [1, 1]} : vector<64x32xbf16> to vector<63x32xbf16>
    %cst_35 = arith.constant dense<0.000000e+00> : vector<63x32xf32>
    %57 = tpu.matmul %56, %13, %cst_35 {dimension_numbers = #tpu.dot_dimension_numbers<[1], [0], [0], [1], [0, 0, 1, 1], [], []>} : vector<63x32xbf16>, vector<32x32xbf16>, vector<63x32xf32> -> vector<63x32xf32>
    %cst_36 = arith.constant dense<0.000000e+00> : vector<63x32xf32>
    %58 = tpu.matmul %55, %15, %cst_36 {dimension_numbers = #tpu.dot_dimension_numbers<[1], [0], [0], [1], [0, 0, 1, 1], [], []>} : vector<63x32xbf16>, vector<32x32xbf16>, vector<63x32xf32> -> vector<63x32xf32>
    %59 = arith.addf %57, %58 : vector<63x32xf32>
    %60 = vector.broadcast %5 : vector<1x32xf32> to vector<63x32xf32>
    %61 = arith.addf %59, %60 : vector<63x32xf32>
    %cst_37 = arith.constant 0.000000e+00 : f32
    %62 = vector.broadcast %cst_37 : f32 to vector<63x32xf32>
    %63 = arith.cmpf ogt, %61, %62 : vector<63x32xf32>
    %cst_38 = arith.constant 0.000000e+00 : f32
    %64 = vector.broadcast %cst_38 : f32 to vector<63x32xf32>
    %65 = arith.minimumf %61, %64 : vector<63x32xf32>
    %66 = math.exp %65 : vector<63x32xf32>
    %cst_39 = arith.constant 1.000000e+00 : f32
    %67 = vector.broadcast %cst_39 : f32 to vector<63x32xf32>
    %68 = arith.subf %66, %67 : vector<63x32xf32>
    %cst_40 = arith.constant 1.67326319 : f32
    %69 = vector.broadcast %cst_40 : f32 to vector<63x32xf32>
    %70 = arith.mulf %69, %68 : vector<63x32xf32>
    %71 = arith.select %63, %61, %70 : vector<63x32xi1>, vector<63x32xf32>
    %cst_41 = arith.constant 1.05070102 : f32
    %72 = vector.broadcast %cst_41 : f32 to vector<63x32xf32>
    %73 = arith.mulf %72, %71 : vector<63x32xf32>
    %cst_42 = arith.constant dense<0.000000e+00> : vector<63x32xf32>
    %74 = tpu.matmul %55, %13, %cst_42 {dimension_numbers = #tpu.dot_dimension_numbers<[1], [0], [0], [1], [0, 0, 1, 1], [], []>} : vector<63x32xbf16>, vector<32x32xbf16>, vector<63x32xf32> -> vector<63x32xf32>
    %75 = vector.extract_strided_slice %54 {offsets = [1, 0], sizes = [63, 32], strides = [1, 1]} : vector<64x32xbf16> to vector<63x32xbf16>
    %cst_43 = arith.constant dense<0.000000e+00> : vector<63x32xf32>
    %76 = tpu.matmul %75, %15, %cst_43 {dimension_numbers = #tpu.dot_dimension_numbers<[1], [0], [0], [1], [0, 0, 1, 1], [], []>} : vector<63x32xbf16>, vector<32x32xbf16>, vector<63x32xf32> -> vector<63x32xf32>
    %77 = arith.addf %74, %76 : vector<63x32xf32>
    %78 = vector.broadcast %5 : vector<1x32xf32> to vector<63x32xf32>
    %79 = arith.addf %77, %78 : vector<63x32xf32>
    %cst_44 = arith.constant 0.000000e+00 : f32
    %80 = vector.broadcast %cst_44 : f32 to vector<63x32xf32>
    %81 = arith.cmpf ogt, %79, %80 : vector<63x32xf32>
    %cst_45 = arith.constant 0.000000e+00 : f32
    %82 = vector.broadcast %cst_45 : f32 to vector<63x32xf32>
    %83 = arith.minimumf %79, %82 : vector<63x32xf32>
    %84 = math.exp %83 : vector<63x32xf32>
    %cst_46 = arith.constant 1.000000e+00 : f32
    %85 = vector.broadcast %cst_46 : f32 to vector<63x32xf32>
    %86 = arith.subf %84, %85 : vector<63x32xf32>
    %cst_47 = arith.constant 1.67326319 : f32
    %87 = vector.broadcast %cst_47 : f32 to vector<63x32xf32>
    %88 = arith.mulf %87, %86 : vector<63x32xf32>
    %89 = arith.select %81, %79, %88 : vector<63x32xi1>, vector<63x32xf32>
    %cst_48 = arith.constant 1.05070102 : f32
    %90 = vector.broadcast %cst_48 : f32 to vector<63x32xf32>
    %91 = arith.mulf %90, %89 : vector<63x32xf32>
    %92 = vector.broadcast %6 : vector<1x32xf32> to vector<63x32xf32>
    %93 = arith.mulf %73, %92 : vector<63x32xf32>
    %94 = vector.broadcast %7 : vector<1x32xf32> to vector<63x32xf32>
    %95 = arith.addf %93, %94 : vector<63x32xf32>
    %96 = vector.broadcast %6 : vector<1x32xf32> to vector<63x32xf32>
    %97 = arith.mulf %91, %96 : vector<63x32xf32>
    %98 = vector.broadcast %7 : vector<1x32xf32> to vector<63x32xf32>
    %99 = arith.addf %97, %98 : vector<63x32xf32>
    %100 = arith.maximumf %95, %99 : vector<63x32xf32>
    %c0_49 = arith.constant 0 : index
    %c0_50 = arith.constant 0 : index
    %101 = vector.load %arg18[%c0_49, %c0_50] : memref<63x32xf32, #tpu.memory_space<vmem>>, vector<63x32xf32>
    tpu.vector_store %arg18[%c0_49, %c0_50], %100 {strides = array<i32>} : memref<63x32xf32, #tpu.memory_space<vmem>>, vector<63x32xf32>,
    %c0_51 = arith.constant 0 : index
    %c0_52 = arith.constant 0 : index
    %102 = tpu.strided_load %arg18[%c0_51, %c0_52] {strides = array<i32: 2, 1>} : memref<63x32xf32, #tpu.memory_space<vmem>>, vector<31x32xf32>
    %c1_53 = arith.constant 1 : index
    %c0_54 = arith.constant 0 : index
    %103 = tpu.strided_load %arg18[%c1_53, %c0_54] {strides = array<i32: 2, 1>} : memref<63x32xf32, #tpu.memory_space<vmem>>, vector<31x32xf32>
    %c0_55 = arith.constant 0 : index
    %c0_56 = arith.constant 0 : index
    %104 = vector.load %arg7[%c0_55, %c0_56] : memref<4x16xf32, #tpu.memory_space<vmem>>, vector<1x16xf32>
    %c1_57 = arith.constant 1 : index
    %c0_58 = arith.constant 0 : index
    %105 = vector.load %arg7[%c1_57, %c0_58] : memref<4x16xf32, #tpu.memory_space<vmem>>, vector<1x16xf32>
    %c2_59 = arith.constant 2 : index
    %c0_60 = arith.constant 0 : index
    %106 = vector.load %arg7[%c2_59, %c0_60] : memref<4x16xf32, #tpu.memory_space<vmem>>, vector<1x16xf32>
    %c3_61 = arith.constant 3 : index
    %c0_62 = arith.constant 0 : index
    %107 = vector.load %arg7[%c3_61, %c0_62] : memref<4x16xf32, #tpu.memory_space<vmem>>, vector<1x16xf32>
    %c0_63 = arith.constant 0 : index
    %c0_64 = arith.constant 0 : index
    %c0_65 = arith.constant 0 : index
    %108 = vector.load %arg5[%c0_63, %c0_64, %c0_65] : memref<2x32x16xbf16, #tpu.memory_space<vmem>>, vector<1x32x16xbf16>
    %109 = vector.shape_cast %108 : vector<1x32x16xbf16> to vector<32x16xbf16>
    %c1_66 = arith.constant 1 : index
    %c0_67 = arith.constant 0 : index
    %c0_68 = arith.constant 0 : index
    %110 = vector.load %arg5[%c1_66, %c0_67, %c0_68] : memref<2x32x16xbf16, #tpu.memory_space<vmem>>, vector<1x32x16xbf16>
    %111 = vector.shape_cast %110 : vector<1x32x16xbf16> to vector<32x16xbf16>
    %c0_69 = arith.constant 0 : index
    %c0_70 = arith.constant 0 : index
    %c0_71 = arith.constant 0 : index
    %112 = vector.load %arg6[%c0_69, %c0_70, %c0_71] : memref<2x16x16xbf16, #tpu.memory_space<vmem>>, vector<1x16x16xbf16>
    %113 = vector.shape_cast %112 : vector<1x16x16xbf16> to vector<16x16xbf16>
    %c1_72 = arith.constant 1 : index
    %c0_73 = arith.constant 0 : index
    %c0_74 = arith.constant 0 : index
    %114 = vector.load %arg6[%c1_72, %c0_73, %c0_74] : memref<2x16x16xbf16, #tpu.memory_space<vmem>>, vector<1x16x16xbf16>
    %115 = vector.shape_cast %114 : vector<1x16x16xbf16> to vector<16x16xbf16>
    %116 = arith.truncf %102 : vector<31x32xf32> to vector<31x32xbf16>
    %117 = arith.truncf %103 : vector<31x32xf32> to vector<31x32xbf16>
    %cst_75 = arith.constant dense<0.000000e+00> : vector<31x16xf32>
    %118 = tpu.matmul %116, %109, %cst_75 {dimension_numbers = #tpu.dot_dimension_numbers<[1], [0], [0], [1], [0, 0, 1, 1], [], []>} : vector<31x32xbf16>, vector<32x16xbf16>, vector<31x16xf32> -> vector<31x16xf32>
    %cst_76 = arith.constant dense<0.000000e+00> : vector<31x16xf32>
    %119 = tpu.matmul %117, %111, %cst_76 {dimension_numbers = #tpu.dot_dimension_numbers<[1], [0], [0], [1], [0, 0, 1, 1], [], []>} : vector<31x32xbf16>, vector<32x16xbf16>, vector<31x16xf32> -> vector<31x16xf32>
    %120 = arith.addf %118, %119 : vector<31x16xf32>
    %121 = vector.broadcast %104 : vector<1x16xf32> to vector<31x16xf32>
    %122 = arith.addf %120, %121 : vector<31x16xf32>
    %cst_77 = arith.constant 0.000000e+00 : f32
    %123 = vector.broadcast %cst_77 : f32 to vector<31x16xf32>
    %124 = arith.cmpf ogt, %122, %123 : vector<31x16xf32>
    %cst_78 = arith.constant 0.000000e+00 : f32
    %125 = vector.broadcast %cst_78 : f32 to vector<31x16xf32>
    %126 = arith.minimumf %122, %125 : vector<31x16xf32>
    %127 = math.exp %126 : vector<31x16xf32>
    %cst_79 = arith.constant 1.000000e+00 : f32
    %128 = vector.broadcast %cst_79 : f32 to vector<31x16xf32>
    %129 = arith.subf %127, %128 : vector<31x16xf32>
    %cst_80 = arith.constant 1.67326319 : f32
    %130 = vector.broadcast %cst_80 : f32 to vector<31x16xf32>
    %131 = arith.mulf %130, %129 : vector<31x16xf32>
    %132 = arith.select %124, %122, %131 : vector<31x16xi1>, vector<31x16xf32>
    %cst_81 = arith.constant 1.05070102 : f32
    %133 = vector.broadcast %cst_81 : f32 to vector<31x16xf32>
    %134 = arith.mulf %133, %132 : vector<31x16xf32>
    %135 = vector.extract_strided_slice %117 {offsets = [0, 0], sizes = [30, 32], strides = [1, 1]} : vector<31x32xbf16> to vector<30x32xbf16>
    %cst_82 = arith.constant dense<0.000000e+00> : vector<30x16xf32>
    %136 = tpu.matmul %135, %109, %cst_82 {dimension_numbers = #tpu.dot_dimension_numbers<[1], [0], [0], [1], [0, 0, 1, 1], [], []>} : vector<30x32xbf16>, vector<32x16xbf16>, vector<30x16xf32> -> vector<30x16xf32>
    %137 = vector.extract_strided_slice %116 {offsets = [1, 0], sizes = [30, 32], strides = [1, 1]} : vector<31x32xbf16> to vector<30x32xbf16>
    %cst_83 = arith.constant dense<0.000000e+00> : vector<30x16xf32>
    %138 = tpu.matmul %137, %111, %cst_83 {dimension_numbers = #tpu.dot_dimension_numbers<[1], [0], [0], [1], [0, 0, 1, 1], [], []>} : vector<30x32xbf16>, vector<32x16xbf16>, vector<30x16xf32> -> vector<30x16xf32>
    %139 = arith.addf %136, %138 : vector<30x16xf32>
    %140 = vector.broadcast %104 : vector<1x16xf32> to vector<30x16xf32>
    %141 = arith.addf %139, %140 : vector<30x16xf32>
    %cst_84 = arith.constant 0.000000e+00 : f32
    %142 = vector.broadcast %cst_84 : f32 to vector<30x16xf32>
    %143 = arith.cmpf ogt, %141, %142 : vector<30x16xf32>
    %cst_85 = arith.constant 0.000000e+00 : f32
    %144 = vector.broadcast %cst_85 : f32 to vector<30x16xf32>
    %145 = arith.minimumf %141, %144 : vector<30x16xf32>
    %146 = math.exp %145 : vector<30x16xf32>
    %cst_86 = arith.constant 1.000000e+00 : f32
    %147 = vector.broadcast %cst_86 : f32 to vector<30x16xf32>
    %148 = arith.subf %146, %147 : vector<30x16xf32>
    %cst_87 = arith.constant 1.67326319 : f32
    %149 = vector.broadcast %cst_87 : f32 to vector<30x16xf32>
    %150 = arith.mulf %149, %148 : vector<30x16xf32>
    %151 = arith.select %143, %141, %150 : vector<30x16xi1>, vector<30x16xf32>
    %cst_88 = arith.constant 1.05070102 : f32
    %152 = vector.broadcast %cst_88 : f32 to vector<30x16xf32>
    %153 = arith.mulf %152, %151 : vector<30x16xf32>
    %154 = arith.truncf %134 : vector<31x16xf32> to vector<31x16xbf16>
    %155 = arith.truncf %153 : vector<30x16xf32> to vector<30x16xbf16>
    %156 = vector.extract_strided_slice %154 {offsets = [0, 0], sizes = [30, 16], strides = [1, 1]} : vector<31x16xbf16> to vector<30x16xbf16>
    %cst_89 = arith.constant dense<0.000000e+00> : vector<30x16xf32>
    %157 = tpu.matmul %156, %113, %cst_89 {dimension_numbers = #tpu.dot_dimension_numbers<[1], [0], [0], [1], [0, 0, 1, 1], [], []>} : vector<30x16xbf16>, vector<16x16xbf16>, vector<30x16xf32> -> vector<30x16xf32>
    %cst_90 = arith.constant dense<0.000000e+00> : vector<30x16xf32>
    %158 = tpu.matmul %155, %115, %cst_90 {dimension_numbers = #tpu.dot_dimension_numbers<[1], [0], [0], [1], [0, 0, 1, 1], [], []>} : vector<30x16xbf16>, vector<16x16xbf16>, vector<30x16xf32> -> vector<30x16xf32>
    %159 = arith.addf %157, %158 : vector<30x16xf32>
    %160 = vector.broadcast %105 : vector<1x16xf32> to vector<30x16xf32>
    %161 = arith.addf %159, %160 : vector<30x16xf32>
    %cst_91 = arith.constant 0.000000e+00 : f32
    %162 = vector.broadcast %cst_91 : f32 to vector<30x16xf32>
    %163 = arith.cmpf ogt, %161, %162 : vector<30x16xf32>
    %cst_92 = arith.constant 0.000000e+00 : f32
    %164 = vector.broadcast %cst_92 : f32 to vector<30x16xf32>
    %165 = arith.minimumf %161, %164 : vector<30x16xf32>
    %166 = math.exp %165 : vector<30x16xf32>
    %cst_93 = arith.constant 1.000000e+00 : f32
    %167 = vector.broadcast %cst_93 : f32 to vector<30x16xf32>
    %168 = arith.subf %166, %167 : vector<30x16xf32>
    %cst_94 = arith.constant 1.67326319 : f32
    %169 = vector.broadcast %cst_94 : f32 to vector<30x16xf32>
    %170 = arith.mulf %169, %168 : vector<30x16xf32>
    %171 = arith.select %163, %161, %170 : vector<30x16xi1>, vector<30x16xf32>
    %cst_95 = arith.constant 1.05070102 : f32
    %172 = vector.broadcast %cst_95 : f32 to vector<30x16xf32>
    %173 = arith.mulf %172, %171 : vector<30x16xf32>
    %cst_96 = arith.constant dense<0.000000e+00> : vector<30x16xf32>
    %174 = tpu.matmul %155, %113, %cst_96 {dimension_numbers = #tpu.dot_dimension_numbers<[1], [0], [0], [1], [0, 0, 1, 1], [], []>} : vector<30x16xbf16>, vector<16x16xbf16>, vector<30x16xf32> -> vector<30x16xf32>
    %175 = vector.extract_strided_slice %154 {offsets = [1, 0], sizes = [30, 16], strides = [1, 1]} : vector<31x16xbf16> to vector<30x16xbf16>
    %cst_97 = arith.constant dense<0.000000e+00> : vector<30x16xf32>
    %176 = tpu.matmul %175, %115, %cst_97 {dimension_numbers = #tpu.dot_dimension_numbers<[1], [0], [0], [1], [0, 0, 1, 1], [], []>} : vector<30x16xbf16>, vector<16x16xbf16>, vector<30x16xf32> -> vector<30x16xf32>
    %177 = arith.addf %174, %176 : vector<30x16xf32>
    %178 = vector.broadcast %105 : vector<1x16xf32> to vector<30x16xf32>
    %179 = arith.addf %177, %178 : vector<30x16xf32>
    %cst_98 = arith.constant 0.000000e+00 : f32
    %180 = vector.broadcast %cst_98 : f32 to vector<30x16xf32>
    %181 = arith.cmpf ogt, %179, %180 : vector<30x16xf32>
    %cst_99 = arith.constant 0.000000e+00 : f32
    %182 = vector.broadcast %cst_99 : f32 to vector<30x16xf32>
    %183 = arith.minimumf %179, %182 : vector<30x16xf32>
    %184 = math.exp %183 : vector<30x16xf32>
    %cst_100 = arith.constant 1.000000e+00 : f32
    %185 = vector.broadcast %cst_100 : f32 to vector<30x16xf32>
    %186 = arith.subf %184, %185 : vector<30x16xf32>
    %cst_101 = arith.constant 1.67326319 : f32
    %187 = vector.broadcast %cst_101 : f32 to vector<30x16xf32>
    %188 = arith.mulf %187, %186 : vector<30x16xf32>
    %189 = arith.select %181, %179, %188 : vector<30x16xi1>, vector<30x16xf32>
    %cst_102 = arith.constant 1.05070102 : f32
    %190 = vector.broadcast %cst_102 : f32 to vector<30x16xf32>
    %191 = arith.mulf %190, %189 : vector<30x16xf32>
    %192 = vector.broadcast %106 : vector<1x16xf32> to vector<30x16xf32>
    %193 = arith.mulf %173, %192 : vector<30x16xf32>
    %194 = vector.broadcast %107 : vector<1x16xf32> to vector<30x16xf32>
    %195 = arith.addf %193, %194 : vector<30x16xf32>
    %196 = vector.broadcast %106 : vector<1x16xf32> to vector<30x16xf32>
    %197 = arith.mulf %191, %196 : vector<30x16xf32>
    %198 = vector.broadcast %107 : vector<1x16xf32> to vector<30x16xf32>
    %199 = arith.addf %197, %198 : vector<30x16xf32>
    %200 = arith.maximumf %195, %199 : vector<30x16xf32>
    %c0_103 = arith.constant 0 : index
    %c0_104 = arith.constant 0 : index
    %201 = vector.load %arg19[%c0_103, %c0_104] : memref<30x16xf32, #tpu.memory_space<vmem>>, vector<30x16xf32>
    tpu.vector_store %arg19[%c0_103, %c0_104], %200 {strides = array<i32>} : memref<30x16xf32, #tpu.memory_space<vmem>>, vector<30x16xf32>,
    %c0_105 = arith.constant 0 : index
    %c0_106 = arith.constant 0 : index
    %202 = tpu.strided_load %arg19[%c0_105, %c0_106] {strides = array<i32: 2, 1>} : memref<30x16xf32, #tpu.memory_space<vmem>>, vector<15x16xf32>
    %c1_107 = arith.constant 1 : index
    %c0_108 = arith.constant 0 : index
    %203 = tpu.strided_load %arg19[%c1_107, %c0_108] {strides = array<i32: 2, 1>} : memref<30x16xf32, #tpu.memory_space<vmem>>, vector<15x16xf32>
    %c0_109 = arith.constant 0 : index
    %c0_110 = arith.constant 0 : index
    %204 = vector.load %arg10[%c0_109, %c0_110] : memref<4x16xf32, #tpu.memory_space<vmem>>, vector<1x16xf32>
    %c1_111 = arith.constant 1 : index
    %c0_112 = arith.constant 0 : index
    %205 = vector.load %arg10[%c1_111, %c0_112] : memref<4x16xf32, #tpu.memory_space<vmem>>, vector<1x16xf32>
    %c2_113 = arith.constant 2 : index
    %c0_114 = arith.constant 0 : index
    %206 = vector.load %arg10[%c2_113, %c0_114] : memref<4x16xf32, #tpu.memory_space<vmem>>, vector<1x16xf32>
    %c3_115 = arith.constant 3 : index
    %c0_116 = arith.constant 0 : index
    %207 = vector.load %arg10[%c3_115, %c0_116] : memref<4x16xf32, #tpu.memory_space<vmem>>, vector<1x16xf32>
    %c0_117 = arith.constant 0 : index
    %c0_118 = arith.constant 0 : index
    %c0_119 = arith.constant 0 : index
    %208 = vector.load %arg8[%c0_117, %c0_118, %c0_119] : memref<2x16x16xbf16, #tpu.memory_space<vmem>>, vector<1x16x16xbf16>
    %209 = vector.shape_cast %208 : vector<1x16x16xbf16> to vector<16x16xbf16>
    %c1_120 = arith.constant 1 : index
    %c0_121 = arith.constant 0 : index
    %c0_122 = arith.constant 0 : index
    %210 = vector.load %arg8[%c1_120, %c0_121, %c0_122] : memref<2x16x16xbf16, #tpu.memory_space<vmem>>, vector<1x16x16xbf16>
    %211 = vector.shape_cast %210 : vector<1x16x16xbf16> to vector<16x16xbf16>
    %c0_123 = arith.constant 0 : index
    %c0_124 = arith.constant 0 : index
    %c0_125 = arith.constant 0 : index
    %212 = vector.load %arg9[%c0_123, %c0_124, %c0_125] : memref<2x16x16xbf16, #tpu.memory_space<vmem>>, vector<1x16x16xbf16>
    %213 = vector.shape_cast %212 : vector<1x16x16xbf16> to vector<16x16xbf16>
    %c1_126 = arith.constant 1 : index
    %c0_127 = arith.constant 0 : index
    %c0_128 = arith.constant 0 : index
    %214 = vector.load %arg9[%c1_126, %c0_127, %c0_128] : memref<2x16x16xbf16, #tpu.memory_space<vmem>>, vector<1x16x16xbf16>
    %215 = vector.shape_cast %214 : vector<1x16x16xbf16> to vector<16x16xbf16>
    %216 = arith.truncf %202 : vector<15x16xf32> to vector<15x16xbf16>
    %217 = arith.truncf %203 : vector<15x16xf32> to vector<15x16xbf16>
    %cst_129 = arith.constant dense<0.000000e+00> : vector<15x16xf32>
    %218 = tpu.matmul %216, %209, %cst_129 {dimension_numbers = #tpu.dot_dimension_numbers<[1], [0], [0], [1], [0, 0, 1, 1], [], []>} : vector<15x16xbf16>, vector<16x16xbf16>, vector<15x16xf32> -> vector<15x16xf32>
    %cst_130 = arith.constant dense<0.000000e+00> : vector<15x16xf32>
    %219 = tpu.matmul %217, %211, %cst_130 {dimension_numbers = #tpu.dot_dimension_numbers<[1], [0], [0], [1], [0, 0, 1, 1], [], []>} : vector<15x16xbf16>, vector<16x16xbf16>, vector<15x16xf32> -> vector<15x16xf32>
    %220 = arith.addf %218, %219 : vector<15x16xf32>
    %221 = vector.broadcast %204 : vector<1x16xf32> to vector<15x16xf32>
    %222 = arith.addf %220, %221 : vector<15x16xf32>
    %cst_131 = arith.constant 0.000000e+00 : f32
    %223 = vector.broadcast %cst_131 : f32 to vector<15x16xf32>
    %224 = arith.cmpf ogt, %222, %223 : vector<15x16xf32>
    %cst_132 = arith.constant 0.000000e+00 : f32
    %225 = vector.broadcast %cst_132 : f32 to vector<15x16xf32>
    %226 = arith.minimumf %222, %225 : vector<15x16xf32>
    %227 = math.exp %226 : vector<15x16xf32>
    %cst_133 = arith.constant 1.000000e+00 : f32
    %228 = vector.broadcast %cst_133 : f32 to vector<15x16xf32>
    %229 = arith.subf %227, %228 : vector<15x16xf32>
    %cst_134 = arith.constant 1.67326319 : f32
    %230 = vector.broadcast %cst_134 : f32 to vector<15x16xf32>
    %231 = arith.mulf %230, %229 : vector<15x16xf32>
    %232 = arith.select %224, %222, %231 : vector<15x16xi1>, vector<15x16xf32>
    %cst_135 = arith.constant 1.05070102 : f32
    %233 = vector.broadcast %cst_135 : f32 to vector<15x16xf32>
    %234 = arith.mulf %233, %232 : vector<15x16xf32>
    %235 = vector.extract_strided_slice %217 {offsets = [0, 0], sizes = [14, 16], strides = [1, 1]} : vector<15x16xbf16> to vector<14x16xbf16>
    %cst_136 = arith.constant dense<0.000000e+00> : vector<14x16xf32>
    %236 = tpu.matmul %235, %209, %cst_136 {dimension_numbers = #tpu.dot_dimension_numbers<[1], [0], [0], [1], [0, 0, 1, 1], [], []>} : vector<14x16xbf16>, vector<16x16xbf16>, vector<14x16xf32> -> vector<14x16xf32>
    %237 = vector.extract_strided_slice %216 {offsets = [1, 0], sizes = [14, 16], strides = [1, 1]} : vector<15x16xbf16> to vector<14x16xbf16>
    %cst_137 = arith.constant dense<0.000000e+00> : vector<14x16xf32>
    %238 = tpu.matmul %237, %211, %cst_137 {dimension_numbers = #tpu.dot_dimension_numbers<[1], [0], [0], [1], [0, 0, 1, 1], [], []>} : vector<14x16xbf16>, vector<16x16xbf16>, vector<14x16xf32> -> vector<14x16xf32>
    %239 = arith.addf %236, %238 : vector<14x16xf32>
    %240 = vector.broadcast %204 : vector<1x16xf32> to vector<14x16xf32>
    %241 = arith.addf %239, %240 : vector<14x16xf32>
    %cst_138 = arith.constant 0.000000e+00 : f32
    %242 = vector.broadcast %cst_138 : f32 to vector<14x16xf32>
    %243 = arith.cmpf ogt, %241, %242 : vector<14x16xf32>
    %cst_139 = arith.constant 0.000000e+00 : f32
    %244 = vector.broadcast %cst_139 : f32 to vector<14x16xf32>
    %245 = arith.minimumf %241, %244 : vector<14x16xf32>
    %246 = math.exp %245 : vector<14x16xf32>
    %cst_140 = arith.constant 1.000000e+00 : f32
    %247 = vector.broadcast %cst_140 : f32 to vector<14x16xf32>
    %248 = arith.subf %246, %247 : vector<14x16xf32>
    %cst_141 = arith.constant 1.67326319 : f32
    %249 = vector.broadcast %cst_141 : f32 to vector<14x16xf32>
    %250 = arith.mulf %249, %248 : vector<14x16xf32>
    %251 = arith.select %243, %241, %250 : vector<14x16xi1>, vector<14x16xf32>
    %cst_142 = arith.constant 1.05070102 : f32
    %252 = vector.broadcast %cst_142 : f32 to vector<14x16xf32>
    %253 = arith.mulf %252, %251 : vector<14x16xf32>
    %254 = arith.truncf %234 : vector<15x16xf32> to vector<15x16xbf16>
    %255 = arith.truncf %253 : vector<14x16xf32> to vector<14x16xbf16>
    %256 = vector.extract_strided_slice %254 {offsets = [0, 0], sizes = [14, 16], strides = [1, 1]} : vector<15x16xbf16> to vector<14x16xbf16>
    %cst_143 = arith.constant dense<0.000000e+00> : vector<14x16xf32>
    %257 = tpu.matmul %256, %213, %cst_143 {dimension_numbers = #tpu.dot_dimension_numbers<[1], [0], [0], [1], [0, 0, 1, 1], [], []>} : vector<14x16xbf16>, vector<16x16xbf16>, vector<14x16xf32> -> vector<14x16xf32>
    %cst_144 = arith.constant dense<0.000000e+00> : vector<14x16xf32>
    %258 = tpu.matmul %255, %215, %cst_144 {dimension_numbers = #tpu.dot_dimension_numbers<[1], [0], [0], [1], [0, 0, 1, 1], [], []>} : vector<14x16xbf16>, vector<16x16xbf16>, vector<14x16xf32> -> vector<14x16xf32>
    %259 = arith.addf %257, %258 : vector<14x16xf32>
    %260 = vector.broadcast %205 : vector<1x16xf32> to vector<14x16xf32>
    %261 = arith.addf %259, %260 : vector<14x16xf32>
    %cst_145 = arith.constant 0.000000e+00 : f32
    %262 = vector.broadcast %cst_145 : f32 to vector<14x16xf32>
    %263 = arith.cmpf ogt, %261, %262 : vector<14x16xf32>
    %cst_146 = arith.constant 0.000000e+00 : f32
    %264 = vector.broadcast %cst_146 : f32 to vector<14x16xf32>
    %265 = arith.minimumf %261, %264 : vector<14x16xf32>
    %266 = math.exp %265 : vector<14x16xf32>
    %cst_147 = arith.constant 1.000000e+00 : f32
    %267 = vector.broadcast %cst_147 : f32 to vector<14x16xf32>
    %268 = arith.subf %266, %267 : vector<14x16xf32>
    %cst_148 = arith.constant 1.67326319 : f32
    %269 = vector.broadcast %cst_148 : f32 to vector<14x16xf32>
    %270 = arith.mulf %269, %268 : vector<14x16xf32>
    %271 = arith.select %263, %261, %270 : vector<14x16xi1>, vector<14x16xf32>
    %cst_149 = arith.constant 1.05070102 : f32
    %272 = vector.broadcast %cst_149 : f32 to vector<14x16xf32>
    %273 = arith.mulf %272, %271 : vector<14x16xf32>
    %cst_150 = arith.constant dense<0.000000e+00> : vector<14x16xf32>
    %274 = tpu.matmul %255, %213, %cst_150 {dimension_numbers = #tpu.dot_dimension_numbers<[1], [0], [0], [1], [0, 0, 1, 1], [], []>} : vector<14x16xbf16>, vector<16x16xbf16>, vector<14x16xf32> -> vector<14x16xf32>
    %275 = vector.extract_strided_slice %254 {offsets = [1, 0], sizes = [14, 16], strides = [1, 1]} : vector<15x16xbf16> to vector<14x16xbf16>
    %cst_151 = arith.constant dense<0.000000e+00> : vector<14x16xf32>
    %276 = tpu.matmul %275, %215, %cst_151 {dimension_numbers = #tpu.dot_dimension_numbers<[1], [0], [0], [1], [0, 0, 1, 1], [], []>} : vector<14x16xbf16>, vector<16x16xbf16>, vector<14x16xf32> -> vector<14x16xf32>
    %277 = arith.addf %274, %276 : vector<14x16xf32>
    %278 = vector.broadcast %205 : vector<1x16xf32> to vector<14x16xf32>
    %279 = arith.addf %277, %278 : vector<14x16xf32>
    %cst_152 = arith.constant 0.000000e+00 : f32
    %280 = vector.broadcast %cst_152 : f32 to vector<14x16xf32>
    %281 = arith.cmpf ogt, %279, %280 : vector<14x16xf32>
    %cst_153 = arith.constant 0.000000e+00 : f32
    %282 = vector.broadcast %cst_153 : f32 to vector<14x16xf32>
    %283 = arith.minimumf %279, %282 : vector<14x16xf32>
    %284 = math.exp %283 : vector<14x16xf32>
    %cst_154 = arith.constant 1.000000e+00 : f32
    %285 = vector.broadcast %cst_154 : f32 to vector<14x16xf32>
    %286 = arith.subf %284, %285 : vector<14x16xf32>
    %cst_155 = arith.constant 1.67326319 : f32
    %287 = vector.broadcast %cst_155 : f32 to vector<14x16xf32>
    %288 = arith.mulf %287, %286 : vector<14x16xf32>
    %289 = arith.select %281, %279, %288 : vector<14x16xi1>, vector<14x16xf32>
    %cst_156 = arith.constant 1.05070102 : f32
    %290 = vector.broadcast %cst_156 : f32 to vector<14x16xf32>
    %291 = arith.mulf %290, %289 : vector<14x16xf32>
    %292 = vector.broadcast %206 : vector<1x16xf32> to vector<14x16xf32>
    %293 = arith.mulf %273, %292 : vector<14x16xf32>
    %294 = vector.broadcast %207 : vector<1x16xf32> to vector<14x16xf32>
    %295 = arith.addf %293, %294 : vector<14x16xf32>
    %296 = vector.broadcast %206 : vector<1x16xf32> to vector<14x16xf32>
    %297 = arith.mulf %291, %296 : vector<14x16xf32>
    %298 = vector.broadcast %207 : vector<1x16xf32> to vector<14x16xf32>
    %299 = arith.addf %297, %298 : vector<14x16xf32>
    %300 = arith.maximumf %295, %299 : vector<14x16xf32>
    %301 = arith.truncf %300 : vector<14x16xf32> to vector<14x16xbf16>
    %302 = vector.shape_cast %301 : vector<14x16xbf16> to vector<14x1x16xbf16>
    %c0_157 = arith.constant 0 : index
    %c0_158 = arith.constant 0 : index
    %c0_159 = arith.constant 0 : index
    %303 = vector.load %arg11[%c0_157, %c0_158, %c0_159] : memref<14x16x200xbf16, #tpu.memory_space<vmem>>, vector<14x16x200xbf16>
    %cst_160 = arith.constant dense<0.000000e+00> : vector<14x1x200xf32>
    %304 = tpu.matmul %302, %303, %cst_160 {dimension_numbers = #tpu.dot_dimension_numbers<[2], [1], [1], [2], [0, 0, 0, 1, 1, 2], [0], [0]>} : vector<14x1x16xbf16>, vector<14x16x200xbf16>, vector<14x1x200xf32> -> vector<14x1x200xf32>
    %cst_161 = arith.constant dense<0.000000e+00> : vector<1x200xf32>
    %305 = vector.multi_reduction <add>, %304, %cst_161 [0] : vector<14x1x200xf32> to vector<1x200xf32>
    %c0_162 = arith.constant 0 : index
    %c0_163 = arith.constant 0 : index
    %306 = vector.load %arg12[%c0_162, %c0_163] : memref<1x200xf32, #tpu.memory_space<vmem>>, vector<1x200xf32>
    %307 = arith.addf %305, %306 : vector<1x200xf32>
    %cst_164 = arith.constant 0.000000e+00 : f32
    %308 = vector.broadcast %cst_164 : f32 to vector<1x200xf32>
    %309 = arith.maximumf %307, %308 : vector<1x200xf32>
    %310 = arith.truncf %309 : vector<1x200xf32> to vector<1x200xbf16>
    %c0_165 = arith.constant 0 : index
    %c0_166 = arith.constant 0 : index
    %311 = vector.load %arg13[%c0_165, %c0_166] : memref<200x200xbf16, #tpu.memory_space<vmem>>, vector<200x200xbf16>
    %cst_167 = arith.constant dense<0.000000e+00> : vector<1x200xf32>
    %312 = tpu.matmul %310, %311, %cst_167 {dimension_numbers = #tpu.dot_dimension_numbers<[1], [0], [0], [1], [0, 0, 1, 1], [], []>} : vector<1x200xbf16>, vector<200x200xbf16>, vector<1x200xf32> -> vector<1x200xf32>
    %c0_168 = arith.constant 0 : index
    %c0_169 = arith.constant 0 : index
    %313 = vector.load %arg14[%c0_168, %c0_169] : memref<1x200xf32, #tpu.memory_space<vmem>>, vector<1x200xf32>
    %314 = arith.addf %312, %313 : vector<1x200xf32>
    %cst_170 = arith.constant 0.000000e+00 : f32
    %315 = vector.broadcast %cst_170 : f32 to vector<1x200xf32>
    %316 = arith.maximumf %314, %315 : vector<1x200xf32>
    %317 = arith.truncf %316 : vector<1x200xf32> to vector<1x200xbf16>
    %c0_171 = arith.constant 0 : index
    %c0_172 = arith.constant 0 : index
    %318 = vector.load %arg15[%c0_171, %c0_172] : memref<200x5xbf16, #tpu.memory_space<vmem>>, vector<200x5xbf16>
    %cst_173 = arith.constant dense<0.000000e+00> : vector<1x5xf32>
    %319 = tpu.matmul %317, %318, %cst_173 {dimension_numbers = #tpu.dot_dimension_numbers<[1], [0], [0], [1], [0, 0, 1, 1], [], []>} : vector<1x200xbf16>, vector<200x5xbf16>, vector<1x5xf32> -> vector<1x5xf32>
    %c0_174 = arith.constant 0 : index
    %c0_175 = arith.constant 0 : index
    %320 = vector.load %arg16[%c0_174, %c0_175] : memref<1x5xf32, #tpu.memory_space<vmem>>, vector<1x5xf32>
    %321 = arith.addf %319, %320 : vector<1x5xf32>
    %c0_176 = arith.constant 0 : index
    %c0_177 = arith.constant 0 : index
    %c0_178 = arith.constant 0 : index
    %322 = vector.load %arg17[%c0_176, %c0_177, %c0_178] : memref<1x1x5xf32, #tpu.memory_space<vmem>>, vector<1x1x5xf32>
    %323 = vector.shape_cast %322 : vector<1x1x5xf32> to vector<1x5xf32>
    %324 = vector.shape_cast %321 : vector<1x5xf32> to vector<1x1x5xf32>
    tpu.vector_store %arg17[%c0_176, %c0_177, %c0_178], %324 {strides = array<i32>} : memref<1x1x5xf32, #tpu.memory_space<vmem>>, vector<1x1x5xf32>,
    return
  }
  func.func @transform_0(%arg0: i32) -> (i32, i32, i32) {
    %c0_i32 = arith.constant 0 : i32
    %c0_i32_0 = arith.constant 0 : i32
    %c0_i32_1 = arith.constant 0 : i32
    return %arg0, %c0_i32, %c0_i32_0 : i32, i32, i32
  }
  func.func @transform_1(%arg0: i32) -> (i32, i32, i32) {
    %c0_i32 = arith.constant 0 : i32
    %c0_i32_0 = arith.constant 0 : i32
    %c0_i32_1 = arith.constant 0 : i32
    %c0_i32_2 = arith.constant 0 : i32
    return %c0_i32, %c0_i32_0, %c0_i32_1 : i32, i32, i32
  }
  func.func @transform_2(%arg0: i32) -> (i32, i32, i32) {
    %c0_i32 = arith.constant 0 : i32
    %c0_i32_0 = arith.constant 0 : i32
    %c0_i32_1 = arith.constant 0 : i32
    %c0_i32_2 = arith.constant 0 : i32
    return %c0_i32, %c0_i32_0, %c0_i32_1 : i32, i32, i32
  }
  func.func @transform_3(%arg0: i32) -> (i32, i32) {
    %c0_i32 = arith.constant 0 : i32
    %c0_i32_0 = arith.constant 0 : i32
    %c0_i32_1 = arith.constant 0 : i32
    return %c0_i32, %c0_i32_0 : i32, i32
  }
  func.func @transform_4(%arg0: i32) -> (i32, i32, i32) {
    %c0_i32 = arith.constant 0 : i32
    %c0_i32_0 = arith.constant 0 : i32
    %c0_i32_1 = arith.constant 0 : i32
    %c0_i32_2 = arith.constant 0 : i32
    return %c0_i32, %c0_i32_0, %c0_i32_1 : i32, i32, i32
  }
  func.func @transform_5(%arg0: i32) -> (i32, i32, i32) {
    %c0_i32 = arith.constant 0 : i32
    %c0_i32_0 = arith.constant 0 : i32
    %c0_i32_1 = arith.constant 0 : i32
    %c0_i32_2 = arith.constant 0 : i32
    return %c0_i32, %c0_i32_0, %c0_i32_1 : i32, i32, i32
  }
  func.func @transform_6(%arg0: i32) -> (i32, i32) {
    %c0_i32 = arith.constant 0 : i32
    %c0_i32_0 = arith.constant 0 : i32
    %c0_i32_1 = arith.constant 0 : i32
    return %c0_i32, %c0_i32_0 : i32, i32
  }
  func.func @transform_7(%arg0: i32) -> (i32, i32, i32) {
    %c0_i32 = arith.constant 0 : i32
    %c0_i32_0 = arith.constant 0 : i32
    %c0_i32_1 = arith.constant 0 : i32
    %c0_i32_2 = arith.constant 0 : i32
    return %c0_i32, %c0_i32_0, %c0_i32_1 : i32, i32, i32
  }
  func.func @transform_8(%arg0: i32) -> (i32, i32, i32) {
    %c0_i32 = arith.constant 0 : i32
    %c0_i32_0 = arith.constant 0 : i32
    %c0_i32_1 = arith.constant 0 : i32
    %c0_i32_2 = arith.constant 0 : i32
    return %c0_i32, %c0_i32_0, %c0_i32_1 : i32, i32, i32
  }
  func.func @transform_9(%arg0: i32) -> (i32, i32) {
    %c0_i32 = arith.constant 0 : i32
    %c0_i32_0 = arith.constant 0 : i32
    %c0_i32_1 = arith.constant 0 : i32
    return %c0_i32, %c0_i32_0 : i32, i32
  }
  func.func @transform_10(%arg0: i32) -> (i32, i32, i32) {
    %c0_i32 = arith.constant 0 : i32
    %c0_i32_0 = arith.constant 0 : i32
    %c0_i32_1 = arith.constant 0 : i32
    %c0_i32_2 = arith.constant 0 : i32
    return %c0_i32, %c0_i32_0, %c0_i32_1 : i32, i32, i32
  }
  func.func @transform_11(%arg0: i32) -> (i32, i32) {
    %c0_i32 = arith.constant 0 : i32
    %c0_i32_0 = arith.constant 0 : i32
    %c0_i32_1 = arith.constant 0 : i32
    return %c0_i32, %c0_i32_0 : i32, i32
  }
  func.func @transform_12(%arg0: i32) -> (i32, i32) {
    %c0_i32 = arith.constant 0 : i32
    %c0_i32_0 = arith.constant 0 : i32
    %c0_i32_1 = arith.constant 0 : i32
    return %c0_i32, %c0_i32_0 : i32, i32
  }
  func.func @transform_13(%arg0: i32) -> (i32, i32) {
    %c0_i32 = arith.constant 0 : i32
    %c0_i32_0 = arith.constant 0 : i32
    %c0_i32_1 = arith.constant 0 : i32
    return %c0_i32, %c0_i32_0 : i32, i32
  }
  func.func @transform_14(%arg0: i32) -> (i32, i32) {
    %c0_i32 = arith.constant 0 : i32
    %c0_i32_0 = arith.constant 0 : i32
    %c0_i32_1 = arith.constant 0 : i32
    return %c0_i32, %c0_i32_0 : i32, i32
  }
  func.func @transform_15(%arg0: i32) -> (i32, i32) {
    %c0_i32 = arith.constant 0 : i32
    %c0_i32_0 = arith.constant 0 : i32
    %c0_i32_1 = arith.constant 0 : i32
    return %c0_i32, %c0_i32_0 : i32, i32
  }
  func.func @transform_16(%arg0: i32) -> (i32, i32, i32) {
    %c0_i32 = arith.constant 0 : i32
    %c0_i32_0 = arith.constant 0 : i32
    %c0_i32_1 = arith.constant 0 : i32
    return %arg0, %c0_i32, %c0_i32_0 : i32, i32, i32
  }
}

</mosaic_0001>

<llo_original>
// kernel: conv1d_bn_linear_forward.1
$region0: #{conv1d_bn_linear_forward.1}
  #allocation0 [shape = 'u32[]', space=smem, size = 0x4, offset = 0x4, fixed_abs, tag = 'smem constant byte address 0x4 - core index']
  #allocation1 [shape = 'u32[144,128]{1,0:T(1,128)}', space=vmem, size = 0x12000, scoped, tag = 'internal scratch']
  #allocation2 [shape = 'f32[63,32]{1,0:T(8,128)}', space=vmem, size = 0x8000, scoped, tag = 'scratch operand']
  #allocation3 [shape = 'f32[30,16]{1,0:T(8,128)}', space=vmem, size = 0x4000, scoped, tag = 'scratch operand']
  %s0 = inlined_call_operand.vmem [shape: f32[4,128,4], index: 0, kind: input, shape index: {}]
  %s1 = inlined_call_operand.vmem [shape: bf16[2,4,32], index: 1, kind: input, shape index: {}]
  %s2 = inlined_call_operand.vmem [shape: bf16[2,32,32], index: 2, kind: input, shape index: {}]
  %s3 = inlined_call_operand.vmem [shape: f32[4,32], index: 3, kind: input, shape index: {}]
  %s4 = inlined_call_operand.vmem [shape: bf16[2,32,16], index: 4, kind: input, shape index: {}]
  %s5 = inlined_call_operand.vmem [shape: bf16[2,16,16], index: 5, kind: input, shape index: {}]
  %s6 = inlined_call_operand.vmem [shape: f32[4,16], index: 6, kind: input, shape index: {}]
  %s7 = inlined_call_operand.vmem [shape: bf16[2,16,16], index: 7, kind: input, shape index: {}]
  %s8 = inlined_call_operand.vmem [shape: bf16[2,16,16], index: 8, kind: input, shape index: {}]
  %s9 = inlined_call_operand.vmem [shape: f32[4,16], index: 9, kind: input, shape index: {}]
  %s10 = inlined_call_operand.vmem [shape: bf16[14,16,200], index: 10, kind: input, shape index: {}]
  %s11 = inlined_call_operand.vmem [shape: f32[1,200], index: 11, kind: input, shape index: {}]
  %s12 = inlined_call_operand.vmem [shape: bf16[200,200], index: 12, kind: input, shape index: {}]
  %s13 = inlined_call_operand.vmem [shape: f32[1,200], index: 13, kind: input, shape index: {}]
  %s14 = inlined_call_operand.vmem [shape: bf16[200,5], index: 14, kind: input, shape index: {}]
  %s15 = inlined_call_operand.vmem [shape: f32[1,5], index: 15, kind: input, shape index: {}]
  %s16 = inlined_call_operand.hbm [shape: f32[4,1,5], index: 16, kind: output, shape index: {}]
  %s17 = sld [smem:[#allocation0]]
  $region97: #{conv1d_bn_linear_forward.1} parent=0
    _
  %s19 = ssub.s32 1, %s17
  %s20 = scalar_select 0, %s19, %s17
  $region1: #{conv1d_bn_linear_forward.1} parent=0
    #allocation4 [shape = 'u8[1024]{0}', space=vmem, size = 0x400, scoped, tag = 'output window, operand 0']
    #allocation5 [shape = 's32[2]{0}', space=sflag, size = 0x8, scoped, tag = 'scoped memory for conv1d_bn_linear_forward.1']
    %21 = vsyncpa [#allocation5], 0
    %s22 = scalar_lea.sflag [#allocation5], 1
    %23 = vsyncpa %s22, 0
    loop: start=0, step=1, limit=6
    $region2: #{conv1d_bn_linear_forward.1} parent=1 // loop_pre_header
      _
    $region3: #{conv1d_bn_linear_forward.1} parent=1 // loop_header
      %s25 = sphi 0, %s29
      %p26 = scmp.ge.s32.totalorder %s25, 6
      %s35 = sphi 0, %s37
      %s38 = sphi 0, %s35
      %s39 = sphi 0, %s38
      %s55 = sphi 0, %s39
      %s59 = sphi 0, %s59
      %s61 = sphi 0, %s59
      %s62 = sphi 0, %s61
      %s76 = sphi 0, %s62
      %s80 = sphi 0, %s80
      %s82 = sphi 0, %s80
      %s83 = sphi 0, %s82
      %s97 = sphi 0, %s83
      %s101 = sphi 0, %s101
      %s103 = sphi 0, %s101
      %s104 = sphi 0, %s103
      %s118 = sphi 0, %s104
      %s122 = sphi 0, %s122
      %s124 = sphi 0, %s122
      %s125 = sphi 0, %s124
      %s139 = sphi 0, %s125
      %s143 = sphi 0, %s143
      %s145 = sphi 0, %s143
      %s146 = sphi 0, %s145
      %s160 = sphi 0, %s146
      %s164 = sphi 0, %s164
      %s166 = sphi 0, %s164
      %s167 = sphi 0, %s166
      %s181 = sphi 0, %s167
      %s185 = sphi 0, %s185
      %s187 = sphi 0, %s185
      %s188 = sphi 0, %s187
      %s202 = sphi 0, %s188
      %s206 = sphi 0, %s206
      %s208 = sphi 0, %s206
      %s209 = sphi 0, %s208
      %s223 = sphi 0, %s209
      %s227 = sphi 0, %s227
      %s229 = sphi 0, %s227
      %s230 = sphi 0, %s229
      %s244 = sphi 0, %s230
      %s248 = sphi 0, %s248
      %s250 = sphi 0, %s248
      %s251 = sphi 0, %s250
      %s265 = sphi 0, %s251
      %s269 = sphi 0, %s269
      %s271 = sphi 0, %s269
      %s272 = sphi 0, %s271
      %s286 = sphi 0, %s272
      %s290 = sphi 0, %s290
      %s292 = sphi 0, %s290
      %s293 = sphi 0, %s292
      %s307 = sphi 0, %s293
      %s311 = sphi 0, %s311
      %s313 = sphi 0, %s311
      %s314 = sphi 0, %s313
      %s328 = sphi 0, %s314
      %s332 = sphi 0, %s332
      %s334 = sphi 0, %s332
      %s335 = sphi 0, %s334
      %s349 = sphi 0, %s335
      %s353 = sphi 0, %s353
      %s355 = sphi 0, %s353
      %s356 = sphi 0, %s355
      %s370 = sphi 0, %s356
      %s376 = sphi 0, %s378
      %s379 = sphi 0, %s376
      %s380 = sphi 0, %s379
      %s396 = sphi 0, %s380
    $region4: #{conv1d_bn_linear_forward.1} parent=1 // loop_header_branch
      %28 = sbr.rel (%p26) target = $region8
    $region5: #{conv1d_bn_linear_forward.1} parent=1 // loop_body
      %s30 = ssub.s32 %s25, 1
      %s31 = ssub.s32 %s25, 2
      %s32 = sadd.s32 %s25, 1
      %s33 = ssub.s32 %s25, %s32
      %p34 = scmp.eq.s32.totalorder %s33, 0
      %s36 = sadd.s32 %s35, 1
      %s37 = scalar_select %p34, %s35, %s36
      %p40 = pneg %p34
      %p41 = scmp.eq.s32.totalorder %s25, 3
      %p42 = por %p40, %p41
      %p43 = scmp.ne.s32.totalorder %s35, %s38
      %p44 = scmp.eq.s32.totalorder %s25, 0
      %p45 = por %p43, %p44
      %p46 = scmp.ne.s32.totalorder %s35, %s38
      %p47 = scmp.eq.s32.totalorder %s30, 3
      %p48 = por %p46, %p47
      %p49 = scmp.ne.s32.totalorder %s38, %s39
      %p50 = scmp.eq.s32.totalorder %s30, 0
      %p51 = por %p49, %p50
      %p52 = scmp.ne.s32.totalorder %s38, %s39
      %p53 = scmp.eq.s32.totalorder %s31, 3
      %p54 = por %p52, %p53
      %p56 = scmp.ne.s32.totalorder %s39, %s55
      %p57 = scmp.eq.s32.totalorder %s31, 0
      %p58 = por %p56, %p57
      %s60 = sadd.s32 %s59, 1
      %p63 = scmp.eq.s32.totalorder %s25, 3
      %p64 = scmp.ne.s32.totalorder %s59, %s61
      %p65 = scmp.eq.s32.totalorder %s25, 0
      %p66 = por %p64, %p65
      %p67 = scmp.ne.s32.totalorder %s59, %s61
      %p68 = scmp.eq.s32.totalorder %s30, 3
      %p69 = por %p67, %p68
      %p70 = scmp.ne.s32.totalorder %s61, %s62
      %p71 = scmp.eq.s32.totalorder %s30, 0
      %p72 = por %p70, %p71
      %p73 = scmp.ne.s32.totalorder %s61, %s62
      %p74 = scmp.eq.s32.totalorder %s31, 3
      %p75 = por %p73, %p74
      %p77 = scmp.ne.s32.totalorder %s62, %s76
      %p78 = scmp.eq.s32.totalorder %s31, 0
      %p79 = por %p77, %p78
      %s81 = sadd.s32 %s80, 1
      %p84 = scmp.eq.s32.totalorder %s25, 3
      %p85 = scmp.ne.s32.totalorder %s80, %s82
      %p86 = scmp.eq.s32.totalorder %s25, 0
      %p87 = por %p85, %p86
      %p88 = scmp.ne.s32.totalorder %s80, %s82
      %p89 = scmp.eq.s32.totalorder %s30, 3
      %p90 = por %p88, %p89
      %p91 = scmp.ne.s32.totalorder %s82, %s83
      %p92 = scmp.eq.s32.totalorder %s30, 0
      %p93 = por %p91, %p92
      %p94 = scmp.ne.s32.totalorder %s82, %s83
      %p95 = scmp.eq.s32.totalorder %s31, 3
      %p96 = por %p94, %p95
      %p98 = scmp.ne.s32.totalorder %s83, %s97
      %p99 = scmp.eq.s32.totalorder %s31, 0
      %p100 = por %p98, %p99
      %s102 = sadd.s32 %s101, 1
      %p105 = scmp.eq.s32.totalorder %s25, 3
      %p106 = scmp.ne.s32.totalorder %s101, %s103
      %p107 = scmp.eq.s32.totalorder %s25, 0
      %p108 = por %p106, %p107
      %p109 = scmp.ne.s32.totalorder %s101, %s103
      %p110 = scmp.eq.s32.totalorder %s30, 3
      %p111 = por %p109, %p110
      %p112 = scmp.ne.s32.totalorder %s103, %s104
      %p113 = scmp.eq.s32.totalorder %s30, 0
      %p114 = por %p112, %p113
      %p115 = scmp.ne.s32.totalorder %s103, %s104
      %p116 = scmp.eq.s32.totalorder %s31, 3
      %p117 = por %p115, %p116
      %p119 = scmp.ne.s32.totalorder %s104, %s118
      %p120 = scmp.eq.s32.totalorder %s31, 0
      %p121 = por %p119, %p120
      %s123 = sadd.s32 %s122, 1
      %p126 = scmp.eq.s32.totalorder %s25, 3
      %p127 = scmp.ne.s32.totalorder %s122, %s124
      %p128 = scmp.eq.s32.totalorder %s25, 0
      %p129 = por %p127, %p128
      %p130 = scmp.ne.s32.totalorder %s122, %s124
      %p131 = scmp.eq.s32.totalorder %s30, 3
      %p132 = por %p130, %p131
      %p133 = scmp.ne.s32.totalorder %s124, %s125
      %p134 = scmp.eq.s32.totalorder %s30, 0
      %p135 = por %p133, %p134
      %p136 = scmp.ne.s32.totalorder %s124, %s125
      %p137 = scmp.eq.s32.totalorder %s31, 3
      %p138 = por %p136, %p137
      %p140 = scmp.ne.s32.totalorder %s125, %s139
      %p141 = scmp.eq.s32.totalorder %s31, 0
      %p142 = por %p140, %p141
      %s144 = sadd.s32 %s143, 1
      %p147 = scmp.eq.s32.totalorder %s25, 3
      %p148 = scmp.ne.s32.totalorder %s143, %s145
      %p149 = scmp.eq.s32.totalorder %s25, 0
      %p150 = por %p148, %p149
      %p151 = scmp.ne.s32.totalorder %s143, %s145
      %p152 = scmp.eq.s32.totalorder %s30, 3
      %p153 = por %p151, %p152
      %p154 = scmp.ne.s32.totalorder %s145, %s146
      %p155 = scmp.eq.s32.totalorder %s30, 0
      %p156 = por %p154, %p155
      %p157 = scmp.ne.s32.totalorder %s145, %s146
      %p158 = scmp.eq.s32.totalorder %s31, 3
      %p159 = por %p157, %p158
      %p161 = scmp.ne.s32.totalorder %s146, %s160
      %p162 = scmp.eq.s32.totalorder %s31, 0
      %p163 = por %p161, %p162
      %s165 = sadd.s32 %s164, 1
      %p168 = scmp.eq.s32.totalorder %s25, 3
      %p169 = scmp.ne.s32.totalorder %s164, %s166
      %p170 = scmp.eq.s32.totalorder %s25, 0
      %p171 = por %p169, %p170
      %p172 = scmp.ne.s32.totalorder %s164, %s166
      %p173 = scmp.eq.s32.totalorder %s30, 3
      %p174 = por %p172, %p173
      %p175 = scmp.ne.s32.totalorder %s166, %s167
      %p176 = scmp.eq.s32.totalorder %s30, 0
      %p177 = por %p175, %p176
      %p178 = scmp.ne.s32.totalorder %s166, %s167
      %p179 = scmp.eq.s32.totalorder %s31, 3
      %p180 = por %p178, %p179
      %p182 = scmp.ne.s32.totalorder %s167, %s181
      %p183 = scmp.eq.s32.totalorder %s31, 0
      %p184 = por %p182, %p183
      %s186 = sadd.s32 %s185, 1
      %p189 = scmp.eq.s32.totalorder %s25, 3
      %p190 = scmp.ne.s32.totalorder %s185, %s187
      %p191 = scmp.eq.s32.totalorder %s25, 0
      %p192 = por %p190, %p191
      %p193 = scmp.ne.s32.totalorder %s185, %s187
      %p194 = scmp.eq.s32.totalorder %s30, 3
      %p195 = por %p193, %p194
      %p196 = scmp.ne.s32.totalorder %s187, %s188
      %p197 = scmp.eq.s32.totalorder %s30, 0
      %p198 = por %p196, %p197
      %p199 = scmp.ne.s32.totalorder %s187, %s188
      %p200 = scmp.eq.s32.totalorder %s31, 3
      %p201 = por %p199, %p200
      %p203 = scmp.ne.s32.totalorder %s188, %s202
      %p204 = scmp.eq.s32.totalorder %s31, 0
      %p205 = por %p203, %p204
      %s207 = sadd.s32 %s206, 1
      %p210 = scmp.eq.s32.totalorder %s25, 3
      %p211 = scmp.ne.s32.totalorder %s206, %s208
      %p212 = scmp.eq.s32.totalorder %s25, 0
      %p213 = por %p211, %p212
      %p214 = scmp.ne.s32.totalorder %s206, %s208
      %p215 = scmp.eq.s32.totalorder %s30, 3
      %p216 = por %p214, %p215
      %p217 = scmp.ne.s32.totalorder %s208, %s209
      %p218 = scmp.eq.s32.totalorder %s30, 0
      %p219 = por %p217, %p218
      %p220 = scmp.ne.s32.totalorder %s208, %s209
      %p221 = scmp.eq.s32.totalorder %s31, 3
      %p222 = por %p220, %p221
      %p224 = scmp.ne.s32.totalorder %s209, %s223
      %p225 = scmp.eq.s32.totalorder %s31, 0
      %p226 = por %p224, %p225
      %s228 = sadd.s32 %s227, 1
      %p231 = scmp.eq.s32.totalorder %s25, 3
      %p232 = scmp.ne.s32.totalorder %s227, %s229
      %p233 = scmp.eq.s32.totalorder %s25, 0
      %p234 = por %p232, %p233
      %p235 = scmp.ne.s32.totalorder %s227, %s229
      %p236 = scmp.eq.s32.totalorder %s30, 3
      %p237 = por %p235, %p236
      %p238 = scmp.ne.s32.totalorder %s229, %s230
      %p239 = scmp.eq.s32.totalorder %s30, 0
      %p240 = por %p238, %p239
      %p241 = scmp.ne.s32.totalorder %s229, %s230
      %p242 = scmp.eq.s32.totalorder %s31, 3
      %p243 = por %p241, %p242
      %p245 = scmp.ne.s32.totalorder %s230, %s244
      %p246 = scmp.eq.s32.totalorder %s31, 0
      %p247 = por %p245, %p246
      %s249 = sadd.s32 %s248, 1
      %p252 = scmp.eq.s32.totalorder %s25, 3
      %p253 = scmp.ne.s32.totalorder %s248, %s250
      %p254 = scmp.eq.s32.totalorder %s25, 0
      %p255 = por %p253, %p254
      %p256 = scmp.ne.s32.totalorder %s248, %s250
      %p257 = scmp.eq.s32.totalorder %s30, 3
      %p258 = por %p256, %p257
      %p259 = scmp.ne.s32.totalorder %s250, %s251
      %p260 = scmp.eq.s32.totalorder %s30, 0
      %p261 = por %p259, %p260
      %p262 = scmp.ne.s32.totalorder %s250, %s251
      %p263 = scmp.eq.s32.totalorder %s31, 3
      %p264 = por %p262, %p263
      %p266 = scmp.ne.s32.totalorder %s251, %s265
      %p267 = scmp.eq.s32.totalorder %s31, 0
      %p268 = por %p266, %p267
      %s270 = sadd.s32 %s269, 1
      %p273 = scmp.eq.s32.totalorder %s25, 3
      %p274 = scmp.ne.s32.totalorder %s269, %s271
      %p275 = scmp.eq.s32.totalorder %s25, 0
      %p276 = por %p274, %p275
      %p277 = scmp.ne.s32.totalorder %s269, %s271
      %p278 = scmp.eq.s32.totalorder %s30, 3
      %p279 = por %p277, %p278
      %p280 = scmp.ne.s32.totalorder %s271, %s272
      %p281 = scmp.eq.s32.totalorder %s30, 0
      %p282 = por %p280, %p281
      %p283 = scmp.ne.s32.totalorder %s271, %s272
      %p284 = scmp.eq.s32.totalorder %s31, 3
      %p285 = por %p283, %p284
      %p287 = scmp.ne.s32.totalorder %s272, %s286
      %p288 = scmp.eq.s32.totalorder %s31, 0
      %p289 = por %p287, %p288
      %s291 = sadd.s32 %s290, 1
      %p294 = scmp.eq.s32.totalorder %s25, 3
      %p295 = scmp.ne.s32.totalorder %s290, %s292
      %p296 = scmp.eq.s32.totalorder %s25, 0
      %p297 = por %p295, %p296
      %p298 = scmp.ne.s32.totalorder %s290, %s292
      %p299 = scmp.eq.s32.totalorder %s30, 3
      %p300 = por %p298, %p299
      %p301 = scmp.ne.s32.totalorder %s292, %s293
      %p302 = scmp.eq.s32.totalorder %s30, 0
      %p303 = por %p301, %p302
      %p304 = scmp.ne.s32.totalorder %s292, %s293
      %p305 = scmp.eq.s32.totalorder %s31, 3
      %p306 = por %p304, %p305
      %p308 = scmp.ne.s32.totalorder %s293, %s307
      %p309 = scmp.eq.s32.totalorder %s31, 0
      %p310 = por %p308, %p309
      %s312 = sadd.s32 %s311, 1
      %p315 = scmp.eq.s32.totalorder %s25, 3
      %p316 = scmp.ne.s32.totalorder %s311, %s313
      %p317 = scmp.eq.s32.totalorder %s25, 0
      %p318 = por %p316, %p317
      %p319 = scmp.ne.s32.totalorder %s311, %s313
      %p320 = scmp.eq.s32.totalorder %s30, 3
      %p321 = por %p319, %p320
      %p322 = scmp.ne.s32.totalorder %s313, %s314
      %p323 = scmp.eq.s32.totalorder %s30, 0
      %p324 = por %p322, %p323
      %p325 = scmp.ne.s32.totalorder %s313, %s314
      %p326 = scmp.eq.s32.totalorder %s31, 3
      %p327 = por %p325, %p326
      %p329 = scmp.ne.s32.totalorder %s314, %s328
      %p330 = scmp.eq.s32.totalorder %s31, 0
      %p331 = por %p329, %p330
      %s333 = sadd.s32 %s332, 1
      %p336 = scmp.eq.s32.totalorder %s25, 3
      %p337 = scmp.ne.s32.totalorder %s332, %s334
      %p338 = scmp.eq.s32.totalorder %s25, 0
      %p339 = por %p337, %p338
      %p340 = scmp.ne.s32.totalorder %s332, %s334
      %p341 = scmp.eq.s32.totalorder %s30, 3
      %p342 = por %p340, %p341
      %p343 = scmp.ne.s32.totalorder %s334, %s335
      %p344 = scmp.eq.s32.totalorder %s30, 0
      %p345 = por %p343, %p344
      %p346 = scmp.ne.s32.totalorder %s334, %s335
      %p347 = scmp.eq.s32.totalorder %s31, 3
      %p348 = por %p346, %p347
      %p350 = scmp.ne.s32.totalorder %s335, %s349
      %p351 = scmp.eq.s32.totalorder %s31, 0
      %p352 = por %p350, %p351
      %s354 = sadd.s32 %s353, 1
      %p357 = scmp.eq.s32.totalorder %s25, 3
      %p358 = scmp.ne.s32.totalorder %s353, %s355
      %p359 = scmp.eq.s32.totalorder %s25, 0
      %p360 = por %p358, %p359
      %p361 = scmp.ne.s32.totalorder %s353, %s355
      %p362 = scmp.eq.s32.totalorder %s30, 3
      %p363 = por %p361, %p362
      %p364 = scmp.ne.s32.totalorder %s355, %s356
      %p365 = scmp.eq.s32.totalorder %s30, 0
      %p366 = por %p364, %p365
      %p367 = scmp.ne.s32.totalorder %s355, %s356
      %p368 = scmp.eq.s32.totalorder %s31, 3
      %p369 = por %p367, %p368
      %p371 = scmp.ne.s32.totalorder %s356, %s370
      %p372 = scmp.eq.s32.totalorder %s31, 0
      %p373 = por %p371, %p372
      %s374 = ssub.s32 %s25, %s32
      %p375 = scmp.eq.s32.totalorder %s374, 0
      %s377 = sadd.s32 %s376, 1
      %s378 = scalar_select %p375, %s376, %s377
      %p381 = pneg %p375
      %p382 = scmp.eq.s32.totalorder %s25, 3
      %p383 = por %p381, %p382
      %p384 = scmp.ne.s32.totalorder %s376, %s379
      %p385 = scmp.eq.s32.totalorder %s25, 0
      %p386 = por %p384, %p385
      %p387 = scmp.ne.s32.totalorder %s376, %s379
      %p388 = scmp.eq.s32.totalorder %s30, 3
      %p389 = por %p387, %p388
      %p390 = scmp.ne.s32.totalorder %s379, %s380
      %p391 = scmp.eq.s32.totalorder %s30, 0
      %p392 = por %p390, %p391
      %p393 = scmp.ne.s32.totalorder %s379, %s380
      %p394 = scmp.eq.s32.totalorder %s31, 3
      %p395 = por %p393, %p394
      %p397 = scmp.ne.s32.totalorder %s380, %s396
      %p398 = scmp.eq.s32.totalorder %s31, 0
      %p399 = por %p397, %p398
      %p400 = scmp.le.s32.totalorder 1, %s25
      %p401 = scmp.lt.s32.totalorder %s25, 5
      %p402 = pnand %p400, %p401
      %p403 = pneg %p402
      // Predicated region
      $region9: #{conv1d_bn_linear_forward.1} parent=5 // pred_check
        _
      $region10: #{conv1d_bn_linear_forward.1} parent=5 // pred_check_branch
        %405 = sbr.rel (%p402) target = $region12
      $region11: #{conv1d_bn_linear_forward.1} parent=5 // pred_region
        %s406 = ssub.s32 %s25, 1
        // Predicated region
        $region13: #{conv1d_bn_linear_forward.1} parent=11 // pred_check
          %p407 = pneg %p72
        $region14: #{conv1d_bn_linear_forward.1} parent=11 // pred_check_branch
          %409 = sbr.rel (%p407) target = $region16
        $region15: #{conv1d_bn_linear_forward.1} parent=11 // pred_region
          _
        $region16: #{conv1d_bn_linear_forward.1} parent=11 // pred_fallthru
          _
        // Predicated region
        $region17: #{conv1d_bn_linear_forward.1} parent=11 // pred_check
          %p410 = pneg %p93
        $region18: #{conv1d_bn_linear_forward.1} parent=11 // pred_check_branch
          %412 = sbr.rel (%p410) target = $region20
        $region19: #{conv1d_bn_linear_forward.1} parent=11 // pred_region
          _
        $region20: #{conv1d_bn_linear_forward.1} parent=11 // pred_fallthru
          _
        // Predicated region
        $region21: #{conv1d_bn_linear_forward.1} parent=11 // pred_check
          %p413 = pneg %p114
        $region22: #{conv1d_bn_linear_forward.1} parent=11 // pred_check_branch
          %415 = sbr.rel (%p413) target = $region24
        $region23: #{conv1d_bn_linear_forward.1} parent=11 // pred_region
          _
        $region24: #{conv1d_bn_linear_forward.1} parent=11 // pred_fallthru
          _
        // Predicated region
        $region25: #{conv1d_bn_linear_forward.1} parent=11 // pred_check
          %p416 = pneg %p135
        $region26: #{conv1d_bn_linear_forward.1} parent=11 // pred_check_branch
          %418 = sbr.rel (%p416) target = $region28
        $region27: #{conv1d_bn_linear_forward.1} parent=11 // pred_region
          _
        $region28: #{conv1d_bn_linear_forward.1} parent=11 // pred_fallthru
          _
        // Predicated region
        $region29: #{conv1d_bn_linear_forward.1} parent=11 // pred_check
          %p419 = pneg %p156
        $region30: #{conv1d_bn_linear_forward.1} parent=11 // pred_check_branch
          %421 = sbr.rel (%p419) target = $region32
        $region31: #{conv1d_bn_linear_forward.1} parent=11 // pred_region
          _
        $region32: #{conv1d_bn_linear_forward.1} parent=11 // pred_fallthru
          _
        // Predicated region
        $region33: #{conv1d_bn_linear_forward.1} parent=11 // pred_check
          %p422 = pneg %p177
        $region34: #{conv1d_bn_linear_forward.1} parent=11 // pred_check_branch
          %424 = sbr.rel (%p422) target = $region36
        $region35: #{conv1d_bn_linear_forward.1} parent=11 // pred_region
          _
        $region36: #{conv1d_bn_linear_forward.1} parent=11 // pred_fallthru
          _
        // Predicated region
        $region37: #{conv1d_bn_linear_forward.1} parent=11 // pred_check
          %p425 = pneg %p198
        $region38: #{conv1d_bn_linear_forward.1} parent=11 // pred_check_branch
          %427 = sbr.rel (%p425) target = $region40
        $region39: #{conv1d_bn_linear_forward.1} parent=11 // pred_region
          _
        $region40: #{conv1d_bn_linear_forward.1} parent=11 // pred_fallthru
          _
        // Predicated region
        $region41: #{conv1d_bn_linear_forward.1} parent=11 // pred_check
          %p428 = pneg %p219
        $region42: #{conv1d_bn_linear_forward.1} parent=11 // pred_check_branch
          %430 = sbr.rel (%p428) target = $region44
        $region43: #{conv1d_bn_linear_forward.1} parent=11 // pred_region
          _
        $region44: #{conv1d_bn_linear_forward.1} parent=11 // pred_fallthru
          _
        // Predicated region
        $region45: #{conv1d_bn_linear_forward.1} parent=11 // pred_check
          %p431 = pneg %p240
        $region46: #{conv1d_bn_linear_forward.1} parent=11 // pred_check_branch
          %433 = sbr.rel (%p431) target = $region48
        $region47: #{conv1d_bn_linear_forward.1} parent=11 // pred_region
          _
        $region48: #{conv1d_bn_linear_forward.1} parent=11 // pred_fallthru
          _
        // Predicated region
        $region49: #{conv1d_bn_linear_forward.1} parent=11 // pred_check
          %p434 = pneg %p261
        $region50: #{conv1d_bn_linear_forward.1} parent=11 // pred_check_branch
          %436 = sbr.rel (%p434) target = $region52
        $region51: #{conv1d_bn_linear_forward.1} parent=11 // pred_region
          _
        $region52: #{conv1d_bn_linear_forward.1} parent=11 // pred_fallthru
          _
        // Predicated region
        $region53: #{conv1d_bn_linear_forward.1} parent=11 // pred_check
          %p437 = pneg %p282
        $region54: #{conv1d_bn_linear_forward.1} parent=11 // pred_check_branch
          %439 = sbr.rel (%p437) target = $region56
        $region55: #{conv1d_bn_linear_forward.1} parent=11 // pred_region
          _
        $region56: #{conv1d_bn_linear_forward.1} parent=11 // pred_fallthru
          _
        // Predicated region
        $region57: #{conv1d_bn_linear_forward.1} parent=11 // pred_check
          %p440 = pneg %p303
        $region58: #{conv1d_bn_linear_forward.1} parent=11 // pred_check_branch
          %442 = sbr.rel (%p440) target = $region60
        $region59: #{conv1d_bn_linear_forward.1} parent=11 // pred_region
          _
        $region60: #{conv1d_bn_linear_forward.1} parent=11 // pred_fallthru
          _
        // Predicated region
        $region61: #{conv1d_bn_linear_forward.1} parent=11 // pred_check
          %p443 = pneg %p324
        $region62: #{conv1d_bn_linear_forward.1} parent=11 // pred_check_branch
          %445 = sbr.rel (%p443) target = $region64
        $region63: #{conv1d_bn_linear_forward.1} parent=11 // pred_region
          _
        $region64: #{conv1d_bn_linear_forward.1} parent=11 // pred_fallthru
          _
        // Predicated region
        $region65: #{conv1d_bn_linear_forward.1} parent=11 // pred_check
          %p446 = pneg %p345
        $region66: #{conv1d_bn_linear_forward.1} parent=11 // pred_check_branch
          %448 = sbr.rel (%p446) target = $region68
        $region67: #{conv1d_bn_linear_forward.1} parent=11 // pred_region
          _
        $region68: #{conv1d_bn_linear_forward.1} parent=11 // pred_fallthru
          _
        // Predicated region
        $region69: #{conv1d_bn_linear_forward.1} parent=11 // pred_check
          %p449 = pneg %p366
        $region70: #{conv1d_bn_linear_forward.1} parent=11 // pred_check_branch
          %451 = sbr.rel (%p449) target = $region72
        $region71: #{conv1d_bn_linear_forward.1} parent=11 // pred_region
          _
        $region72: #{conv1d_bn_linear_forward.1} parent=11 // pred_fallthru
          _
      $region12: #{conv1d_bn_linear_forward.1} parent=5 // pred_fallthru
        _
      %p452 = scmp.lt.s32.totalorder %s25, 4
      // Predicated region
      $region73: #{conv1d_bn_linear_forward.1} parent=5 // pred_check
        %p453 = pneg %p452
      $region74: #{conv1d_bn_linear_forward.1} parent=5 // pred_check_branch
        %455 = sbr.rel (%p453) target = $region76
      $region75: #{conv1d_bn_linear_forward.1} parent=5 // pred_region
        // Predicated region
        $region77: #{conv1d_bn_linear_forward.1} parent=75 // pred_check
          %p456 = pneg %p45
        $region78: #{conv1d_bn_linear_forward.1} parent=75 // pred_check_branch
          %458 = sbr.rel (%p456) target = $region80
        $region79: #{conv1d_bn_linear_forward.1} parent=75 // pred_region
          %p459 = scmp.lt.s32.totalorder %s25, 3
          %s460 = scalar_select %p459, %s25, 3
          %s461 = smul.addr %s460, 16
          %s462 = smul.addr %s461, 8
          %s463 = scalar_lea.vmem %s0, %s462
        $region80: #{conv1d_bn_linear_forward.1} parent=75 // pred_fallthru
          _
      $region76: #{conv1d_bn_linear_forward.1} parent=5 // pred_fallthru
        _
      %p464 = scmp.le.s32.totalorder 1, %s25
      %p465 = scmp.lt.s32.totalorder %s25, 5
      %p466 = pnand %p464, %p465
      %p467 = pneg %p466
      // Predicated region
      $region81: #{conv1d_bn_linear_forward.1} parent=5 // pred_check
        _
      $region82: #{conv1d_bn_linear_forward.1} parent=5 // pred_check_branch
        %469 = sbr.rel (%p466) target = $region84
      $region83: #{conv1d_bn_linear_forward.1} parent=5 // pred_region
        %s470 = ssub.s32 %s25, 1
        %p471 = scmp.lt.s32.totalorder %s30, 3
        %s472 = scalar_select %p471, %s30, 3
        %s473 = smul.addr %s472, 16
        %s474 = smul.addr %s473, 8
        %s475 = scalar_lea.vmem %s0, %s474
        %p476 = pneg %p51
        %p477 = pneg %p48
        %p478 = pneg %p72
        %p479 = pneg %p69
        %p480 = pneg %p93
        %p481 = pneg %p90
        %p482 = pneg %p114
        %p483 = pneg %p111
        %p484 = pneg %p135
        %p485 = pneg %p132
        %p486 = pneg %p156
        %p487 = pneg %p153
        %p488 = pneg %p177
        %p489 = pneg %p174
        %p490 = pneg %p198
        %p491 = pneg %p195
        %p492 = pneg %p219
        %p493 = pneg %p216
        %p494 = pneg %p240
        %p495 = pneg %p237
        %p496 = pneg %p261
        %p497 = pneg %p258
        %p498 = pneg %p282
        %p499 = pneg %p279
        %p500 = pneg %p303
        %p501 = pneg %p300
        %p502 = pneg %p324
        %p503 = pneg %p321
        %p504 = pneg %p345
        %p505 = pneg %p342
        %p506 = pneg %p366
        %p507 = pneg %p363
        %p508 = pneg %p392
        %p509 = pneg %p389
        %s510 = sand.u32 %s379, 1
        %s511 = scalar_lea.sflag [#allocation5], %s510
        %s512 = sand.u32 %s379, 1
        %s513 = scalar_lea.vmem [#allocation4], %s512
        %p514 = scmp.lt.s32.totalorder %s30, 3
        %s515 = scalar_select %p514, %s30, 3
        %s516 = smul.addr %s515, 16
        %s517 = smul.addr %s516, 8
        %s518 = scalar_lea.vmem %s0, %s517
        %v520 = vld [vmem:[%s518] ss:$2 sm:$0xff]
        %s521 = scalar_lea.vmem %s518, 16
        %v522 = vld [vmem:[%s521] ss:$2 sm:$0xff]
        %s523 = scalar_lea.vmem %s518, 32
        %v524 = vld [vmem:[%s523] ss:$2 sm:$0xff]
        %s525 = scalar_lea.vmem %s518, 48
        %v526 = vld [vmem:[%s525] ss:$2 sm:$0xff]
        %s527 = scalar_lea.vmem %s518, 64
        %v528 = vld [vmem:[%s527] ss:$2 sm:$0xff]
        %s529 = scalar_lea.vmem %s518, 80
        %v530 = vld [vmem:[%s529] ss:$2 sm:$0xff]
        %s531 = scalar_lea.vmem %s518, 96
        %v532 = vld [vmem:[%s531] ss:$2 sm:$0xff]
        %s533 = scalar_lea.vmem %s518, 112
        %v534 = vld [vmem:[%s533] ss:$2 sm:$0xff]
        %s535 = scalar_lea.vmem %s518, 1
        %v536 = vld [vmem:[%s535] ss:$2 sm:$0xff]
        %s537 = scalar_lea.vmem %s518, 17
        %v538 = vld [vmem:[%s537] ss:$2 sm:$0xff]
        %s539 = scalar_lea.vmem %s518, 33
        %v540 = vld [vmem:[%s539] ss:$2 sm:$0xff]
        %s541 = scalar_lea.vmem %s518, 49
        %v542 = vld [vmem:[%s541] ss:$2 sm:$0xff]
        %s543 = scalar_lea.vmem %s518, 65
        %v544 = vld [vmem:[%s543] ss:$2 sm:$0xff]
        %s545 = scalar_lea.vmem %s518, 81
        %v546 = vld [vmem:[%s545] ss:$2 sm:$0xff]
        %s547 = scalar_lea.vmem %s518, 97
        %v548 = vld [vmem:[%s547] ss:$2 sm:$0xff]
        %s549 = scalar_lea.vmem %s518, 113
        %v550 = vld [vmem:[%s549] ss:$2 sm:$0xff]
        %v551 = vld [vmem:[%s3] sm:$0x1]
        %v552 = vld [vmem:[%s3 + $0x1] sm:$0x1]
        %v553 = vld [vmem:[%s3 + $0x2] sm:$0x1]
        %v554 = vld [vmem:[%s3 + $0x3] sm:$0x1]
        %v555 = vld [vmem:[%s1] sm:$0x3]
        %s556 = scalar_lea.vmem %s1, 2
        %v557 = vld [vmem:[%s556] sm:$0x3]
        %v558 = vld [vmem:[%s2] sm:$0xf]
        %v559 = vld [vmem:[%s2 + $0x4] sm:$0xf]
        %v560 = vld [vmem:[%s2 + $0x8] sm:$0xf]
        %v561 = vld [vmem:[%s2 + $0xc] sm:$0xf]
        %s562 = scalar_lea.vmem %s2, 16
        %v563 = vld [vmem:[%s562] sm:$0xf]
        %v564 = vld [vmem:[%s562 + $0x4] sm:$0xf]
        %v565 = vld [vmem:[%s562 + $0x8] sm:$0xf]
        %v566 = vld [vmem:[%s562 + $0xc] sm:$0xf]
        %v567 = vpack.c.bf16 %v522, %v520
        %v568 = vpack.c.bf16 %v526, %v524
        %v569 = vpack.c.bf16 %v530, %v528
        %v570 = vpack.c.bf16 %v534, %v532
        %v571 = vpack.c.bf16 %v538, %v536
        %v572 = vpack.c.bf16 %v542, %v540
        %v573 = vpack.c.bf16 %v546, %v544
        %v574 = vpack.c.bf16 %v550, %v548
        %vm575 = vcmask 31744
        %v577 = vsel %vm575, %v571, 0
        %v580 = vsel %vm575, %v572, 0
        %v583 = vsel %vm575, %v573, 0
        %v586 = vsel %vm575, %v574, 0
        %vm588 = vcmask 1041408
        %v590 = vsel %vm588, %v557, 0
        %592 = vmatprep.subr.bf16.mxu0 0
        %593 = vmatpush1.bf16.msra.mxu0 %v590
        %594 = vmatprep.subr.bf16.mxu0 0
        %595 = vmatpush1.bf16.msra.mxu0 0
        %596 = vmatprep.subr.bf16.mxu0 0
        %597 = vmatpush1.bf16.msra.mxu0 0
        %598 = vmatprep.subr.bf16.mxu0 0
        %599 = vmatpush1.bf16.msra.mxu0 0
        %600 = vmatprep.subr.bf16.mxu0 0
        %601 = vmatpush1.bf16.msra.mxu0 0
        %602 = vmatprep.subr.bf16.mxu0 0
        %603 = vmatpush1.bf16.msra.mxu0 0
        %604 = vmatprep.subr.bf16.mxu0 0
        %605 = vmatpush1.bf16.msra.mxu0 0
        %606 = vmatprep.subr.bf16.mxu0 0
        %607 = vmatpush1.bf16.msra.mxu0 0
        %608 = vmatprep.subr.bf16.mxu0 0
        %609 = vmatpush1.bf16.msra.mxu0 0
        %610 = vmatprep.subr.bf16.mxu0 0
        %611 = vmatpush1.bf16.msra.mxu0 0
        %612 = vmatprep.subr.bf16.mxu0 0
        %613 = vmatpush1.bf16.msra.mxu0 0
        %614 = vmatprep.subr.bf16.mxu0 0
        %615 = vmatpush1.bf16.msra.mxu0 0
        %616 = vmatprep.subr.bf16.mxu0 0
        %617 = vmatpush1.bf16.msra.mxu0 0
        %618 = vmatprep.subr.bf16.mxu0 0
        %619 = vmatpush1.bf16.msra.mxu0 0
        %620 = vmatprep.subr.bf16.mxu0 0
        %621 = vmatpush1.bf16.msra.mxu0 0
        %622 = vmatprep.subr.bf16.mxu0 0
        %623 = vmatpush1.bf16.msra.mxu0 0
        %624 = vmatprep.mubr.bf16.mxu0 0
        %625 = vmatmul.mubr.bf16.gmra.mrb[0].mxu0 %v577
        %v626 = vpop.f32.mrb[0].mxu0
        %v627 = vadd.f32 0.0, %v626
        %v628 = vpop.f32.mrb[0].mxu0
        %v629 = vpop.f32.mrb[0].mxu0
        %v630 = vadd.f32 0.0, %v629
        %v631 = vpop.f32.mrb[0].mxu0
        %632 = vmatprep.mubr.bf16.mxu0 0
        %633 = vmatmul.mubr.bf16.gmra.mrb[0].mxu0 %v580
        %v634 = vpop.f32.mrb[0].mxu0
        %v635 = vadd.f32 0.0, %v634
        %v636 = vpop.f32.mrb[0].mxu0
        %v637 = vpop.f32.mrb[0].mxu0
        %v638 = vadd.f32 0.0, %v637
        %v639 = vpop.f32.mrb[0].mxu0
        %640 = vmatprep.mubr.bf16.mxu0 0
        %641 = vmatmul.mubr.bf16.gmra.mrb[0].mxu0 %v583
        %v642 = vpop.f32.mrb[0].mxu0
        %v643 = vadd.f32 0.0, %v642
        %v644 = vpop.f32.mrb[0].mxu0
        %v645 = vpop.f32.mrb[0].mxu0
        %v646 = vadd.f32 0.0, %v645
        %v647 = vpop.f32.mrb[0].mxu0
        %648 = vmatprep.mubr.bf16.mxu0 0
        %649 = vmatmul.mubr.bf16.gmra.mrb[0].mxu0 %v586
        %v650 = vpop.f32.mrb[0].mxu0
        %v651 = vadd.f32 0.0, %v650
        %v652 = vpop.f32.mrb[0].mxu0
        %v653 = vpop.f32.mrb[0].mxu0
        %v654 = vadd.f32 0.0, %v653
        %v655 = vpop.f32.mrb[0].mxu0
        %656 = vdwg.mxu0
        %v658 = vsel %vm575, %v567, 0
        %v661 = vsel %vm575, %v568, 0
        %v664 = vsel %vm575, %v569, 0
        %v667 = vsel %vm575, %v570, 0
        %v670 = vsel %vm588, %v555, 0
        %672 = vmatprep.subr.bf16.mxu0 0
        %673 = vmatpush1.bf16.msra.mxu0 %v670
        %674 = vmatprep.subr.bf16.mxu0 0
        %675 = vmatpush1.bf16.msra.mxu0 0
        %676 = vmatprep.subr.bf16.mxu0 0
        %677 = vmatpush1.bf16.msra.mxu0 0
        %678 = vmatprep.subr.bf16.mxu0 0
        %679 = vmatpush1.bf16.msra.mxu0 0
        %680 = vmatprep.subr.bf16.mxu0 0
        %681 = vmatpush1.bf16.msra.mxu0 0
        %682 = vmatprep.subr.bf16.mxu0 0
        %683 = vmatpush1.bf16.msra.mxu0 0
        %684 = vmatprep.subr.bf16.mxu0 0
        %685 = vmatpush1.bf16.msra.mxu0 0
        %686 = vmatprep.subr.bf16.mxu0 0
        %687 = vmatpush1.bf16.msra.mxu0 0
        %688 = vmatprep.subr.bf16.mxu0 0
        %689 = vmatpush1.bf16.msra.mxu0 0
        %690 = vmatprep.subr.bf16.mxu0 0
        %691 = vmatpush1.bf16.msra.mxu0 0
        %692 = vmatprep.subr.bf16.mxu0 0
        %693 = vmatpush1.bf16.msra.mxu0 0
        %694 = vmatprep.subr.bf16.mxu0 0
        %695 = vmatpush1.bf16.msra.mxu0 0
        %696 = vmatprep.subr.bf16.mxu0 0
        %697 = vmatpush1.bf16.msra.mxu0 0
        %698 = vmatprep.subr.bf16.mxu0 0
        %699 = vmatpush1.bf16.msra.mxu0 0
        %700 = vmatprep.subr.bf16.mxu0 0
        %701 = vmatpush1.bf16.msra.mxu0 0
        %702 = vmatprep.subr.bf16.mxu0 0
        %703 = vmatpush1.bf16.msra.mxu0 0
        %704 = vmatprep.mubr.bf16.mxu0 0
        %705 = vmatmul.mubr.bf16.gmra.mrb[0].mxu0 %v658
        %v706 = vpop.f32.mrb[0].mxu0
        %v707 = vadd.f32 %v627, %v706
        %v708 = vpop.f32.mrb[0].mxu0
        %v709 = vpop.f32.mrb[0].mxu0
        %v710 = vadd.f32 %v630, %v709
        %v711 = vpop.f32.mrb[0].mxu0
        %712 = vmatprep.mubr.bf16.mxu0 0
        %713 = vmatmul.mubr.bf16.gmra.mrb[0].mxu0 %v661
        %v714 = vpop.f32.mrb[0].mxu0
        %v715 = vadd.f32 %v635, %v714
        %v716 = vpop.f32.mrb[0].mxu0
        %v717 = vpop.f32.mrb[0].mxu0
        %v718 = vadd.f32 %v638, %v717
        %v719 = vpop.f32.mrb[0].mxu0
        %720 = vmatprep.mubr.bf16.mxu0 0
        %721 = vmatmul.mubr.bf16.gmra.mrb[0].mxu0 %v664
        %v722 = vpop.f32.mrb[0].mxu0
        %v723 = vadd.f32 %v643, %v722
        %v724 = vpop.f32.mrb[0].mxu0
        %v725 = vpop.f32.mrb[0].mxu0
        %v726 = vadd.f32 %v646, %v725
        %v727 = vpop.f32.mrb[0].mxu0
        %728 = vmatprep.mubr.bf16.mxu0 0
        %729 = vmatmul.mubr.bf16.gmra.mrb[0].mxu0 %v667
        %v730 = vpop.f32.mrb[0].mxu0
        %v731 = vadd.f32 %v651, %v730
        %v732 = vpop.f32.mrb[0].mxu0
        %v733 = vpop.f32.mrb[0].mxu0
        %v734 = vadd.f32 %v654, %v733
        %v735 = vpop.f32.mrb[0].mxu0
        %736 = vdwg.mxu0
        %v737 = vlaneseq
        %v738 = vshrl.u32 %v737, 7
        %v739 = vsub.s32 0, %v738
        %v740 = vrot.slane %v551, %v739
        %v741 = vadd.f32 %v707, %v740
        %v742 = vadd.f32 %v710, %v740
        %v743 = vadd.f32 %v715, %v740
        %v744 = vadd.f32 %v718, %v740
        %v745 = vadd.f32 %v723, %v740
        %v746 = vadd.f32 %v726, %v740
        %v747 = vadd.f32 %v731, %v740
        %v748 = vadd.f32 %v734, %v740
        %vm749 = vcmp.gt.f32.partialorder %v741, 0.0
        %vm750 = vcmp.gt.f32.partialorder %v742, 0.0
        %vm751 = vcmp.gt.f32.partialorder %v743, 0.0
        %vm752 = vcmp.gt.f32.partialorder %v744, 0.0
        %vm753 = vcmp.gt.f32.partialorder %v745, 0.0
        %vm754 = vcmp.gt.f32.partialorder %v746, 0.0
        %vm755 = vcmp.gt.f32.partialorder %v747, 0.0
        %vm756 = vcmp.gt.f32.partialorder %v748, 0.0
        %v757 = vmin.f32 %v741, 0.0
        %v758 = vmin.f32 %v742, 0.0
        %v759 = vmin.f32 %v743, 0.0
        %v760 = vmin.f32 %v744, 0.0
        %v761 = vmin.f32 %v745, 0.0
        %v762 = vmin.f32 %v746, 0.0
        %v763 = vmin.f32 %v747, 0.0
        %v764 = vmin.f32 %v748, 0.0
        %v765 = vmul.f32 %v757, 1.442695
        %v766 = vpow.pop %v765
        %v767 = vmul.f32 %v758, 1.442695
        %v768 = vpow.pop %v767
        %v769 = vmul.f32 %v759, 1.442695
        %v770 = vpow.pop %v769
        %v771 = vmul.f32 %v760, 1.442695
        %v772 = vpow.pop %v771
        %v773 = vmul.f32 %v761, 1.442695
        %v774 = vpow.pop %v773
        %v775 = vmul.f32 %v762, 1.442695
        %v776 = vpow.pop %v775
        %v777 = vmul.f32 %v763, 1.442695
        %v778 = vpow.pop %v777
        %v779 = vmul.f32 %v764, 1.442695
        %v780 = vpow.pop %v779
        %v781 = vsub.f32 %v766, 1.0
        %v782 = vsub.f32 %v768, 1.0
        %v783 = vsub.f32 %v770, 1.0
        %v784 = vsub.f32 %v772, 1.0
        %v785 = vsub.f32 %v774, 1.0
        %v786 = vsub.f32 %v776, 1.0
        %v787 = vsub.f32 %v778, 1.0
        %v788 = vsub.f32 %v780, 1.0
        %v789 = vmul.f32 %v781, 1.6732632
        %v790 = vmul.f32 %v782, 1.6732632
        %v791 = vmul.f32 %v783, 1.6732632
        %v792 = vmul.f32 %v784, 1.6732632
        %v793 = vmul.f32 %v785, 1.6732632
        %v794 = vmul.f32 %v786, 1.6732632
        %v795 = vmul.f32 %v787, 1.6732632
        %v796 = vmul.f32 %v788, 1.6732632
        %v797 = vsel %vm749, %v741, %v789
        %v798 = vsel %vm750, %v742, %v790
        %v799 = vsel %vm751, %v743, %v791
        %v800 = vsel %vm752, %v744, %v792
        %v801 = vsel %vm753, %v745, %v793
        %v802 = vsel %vm754, %v746, %v794
        %v803 = vsel %vm755, %v747, %v795
        %v804 = vsel %vm756, %v748, %v796
        %v805 = vmul.f32 %v797, 1.050701
        %v806 = vmul.f32 %v798, 1.050701
        %v807 = vmul.f32 %v799, 1.050701
        %v808 = vmul.f32 %v800, 1.050701
        %v809 = vmul.f32 %v801, 1.050701
        %v810 = vmul.f32 %v802, 1.050701
        %v811 = vmul.f32 %v803, 1.050701
        %v812 = vmul.f32 %v804, 1.050701
        %vm813 = vsmask.f32 7424
        %v814 = vshrl.u32 %v567, 16
        %v816 = vshll.u32 %v567, 16
        %v818 = vrot.slane %v816, 1
        %v819 = vor.u32 %v814, %v818
        %v820 = vshll.u32 %v568, 16
        %v822 = vrot.slane %v820, 1
        %v823 = vsel %vm813, %v819, %v822
        %v824 = vshrl.u32 %v568, 16
        %v826 = vor.u32 %v824, %v822
        %v827 = vshll.u32 %v569, 16
        %v829 = vrot.slane %v827, 1
        %v830 = vsel %vm813, %v826, %v829
        %v831 = vshrl.u32 %v569, 16
        %v833 = vor.u32 %v831, %v829
        %v834 = vshll.u32 %v570, 16
        %v836 = vrot.slane %v834, 1
        %v837 = vsel %vm813, %v833, %v836
        %v838 = vshrl.u32 %v570, 16
        %v840 = vor.u32 %v838, %v836
        %v842 = vsel %vm575, %v823, 0
        %v845 = vsel %vm575, %v830, 0
        %v848 = vsel %vm575, %v837, 0
        %v851 = vsel %vm575, %v840, 0
        %853 = vmatprep.subr.bf16.mxu0 0
        %854 = vmatpush1.bf16.msra.mxu0 %v590
        %855 = vmatprep.subr.bf16.mxu0 0
        %856 = vmatpush1.bf16.msra.mxu0 0
        %857 = vmatprep.subr.bf16.mxu0 0
        %858 = vmatpush1.bf16.msra.mxu0 0
        %859 = vmatprep.subr.bf16.mxu0 0
        %860 = vmatpush1.bf16.msra.mxu0 0
        %861 = vmatprep.subr.bf16.mxu0 0
        %862 = vmatpush1.bf16.msra.mxu0 0
        %863 = vmatprep.subr.bf16.mxu0 0
        %864 = vmatpush1.bf16.msra.mxu0 0
        %865 = vmatprep.subr.bf16.mxu0 0
        %866 = vmatpush1.bf16.msra.mxu0 0
        %867 = vmatprep.subr.bf16.mxu0 0
        %868 = vmatpush1.bf16.msra.mxu0 0
        %869 = vmatprep.subr.bf16.mxu0 0
        %870 = vmatpush1.bf16.msra.mxu0 0
        %871 = vmatprep.subr.bf16.mxu0 0
        %872 = vmatpush1.bf16.msra.mxu0 0
        %873 = vmatprep.subr.bf16.mxu0 0
        %874 = vmatpush1.bf16.msra.mxu0 0
        %875 = vmatprep.subr.bf16.mxu0 0
        %876 = vmatpush1.bf16.msra.mxu0 0
        %877 = vmatprep.subr.bf16.mxu0 0
        %878 = vmatpush1.bf16.msra.mxu0 0
        %879 = vmatprep.subr.bf16.mxu0 0
        %880 = vmatpush1.bf16.msra.mxu0 0
        %881 = vmatprep.subr.bf16.mxu0 0
        %882 = vmatpush1.bf16.msra.mxu0 0
        %883 = vmatprep.subr.bf16.mxu0 0
        %884 = vmatpush1.bf16.msra.mxu0 0
        %885 = vmatprep.mubr.bf16.mxu0 0
        %886 = vmatmul.mubr.bf16.gmra.mrb[0].mxu0 %v842
        %v887 = vpop.f32.mrb[0].mxu0
        %v888 = vadd.f32 0.0, %v887
        %v889 = vpop.f32.mrb[0].mxu0
        %v890 = vpop.f32.mrb[0].mxu0
        %v891 = vadd.f32 0.0, %v890
        %v892 = vpop.f32.mrb[0].mxu0
        %893 = vmatprep.mubr.bf16.mxu0 0
        %894 = vmatmul.mubr.bf16.gmra.mrb[0].mxu0 %v845
        %v895 = vpop.f32.mrb[0].mxu0
        %v896 = vadd.f32 0.0, %v895
        %v897 = vpop.f32.mrb[0].mxu0
        %v898 = vpop.f32.mrb[0].mxu0
        %v899 = vadd.f32 0.0, %v898
        %v900 = vpop.f32.mrb[0].mxu0
        %901 = vmatprep.mubr.bf16.mxu0 0
        %902 = vmatmul.mubr.bf16.gmra.mrb[0].mxu0 %v848
        %v903 = vpop.f32.mrb[0].mxu0
        %v904 = vadd.f32 0.0, %v903
        %v905 = vpop.f32.mrb[0].mxu0
        %v906 = vpop.f32.mrb[0].mxu0
        %v907 = vadd.f32 0.0, %v906
        %v908 = vpop.f32.mrb[0].mxu0
        %909 = vmatprep.mubr.bf16.mxu0 0
        %910 = vmatmul.mubr.bf16.gmra.mrb[0].mxu0 %v851
        %v911 = vpop.f32.mrb[0].mxu0
        %v912 = vadd.f32 0.0, %v911
        %v913 = vpop.f32.mrb[0].mxu0
        %v914 = vpop.f32.mrb[0].mxu0
        %v915 = vadd.f32 0.0, %v914
        %v916 = vpop.f32.mrb[0].mxu0
        %917 = vdwg.mxu0
        %918 = vmatprep.subr.bf16.mxu0 0
        %919 = vmatpush1.bf16.msra.mxu0 %v670
        %920 = vmatprep.subr.bf16.mxu0 0
        %921 = vmatpush1.bf16.msra.mxu0 0
        %922 = vmatprep.subr.bf16.mxu0 0
        %923 = vmatpush1.bf16.msra.mxu0 0
        %924 = vmatprep.subr.bf16.mxu0 0
        %925 = vmatpush1.bf16.msra.mxu0 0
        %926 = vmatprep.subr.bf16.mxu0 0
        %927 = vmatpush1.bf16.msra.mxu0 0
        %928 = vmatprep.subr.bf16.mxu0 0
        %929 = vmatpush1.bf16.msra.mxu0 0
        %930 = vmatprep.subr.bf16.mxu0 0
        %931 = vmatpush1.bf16.msra.mxu0 0
        %932 = vmatprep.subr.bf16.mxu0 0
        %933 = vmatpush1.bf16.msra.mxu0 0
        %934 = vmatprep.subr.bf16.mxu0 0
        %935 = vmatpush1.bf16.msra.mxu0 0
        %936 = vmatprep.subr.bf16.mxu0 0
        %937 = vmatpush1.bf16.msra.mxu0 0
        %938 = vmatprep.subr.bf16.mxu0 0
        %939 = vmatpush1.bf16.msra.mxu0 0
        %940 = vmatprep.subr.bf16.mxu0 0
        %941 = vmatpush1.bf16.msra.mxu0 0
        %942 = vmatprep.subr.bf16.mxu0 0
        %943 = vmatpush1.bf16.msra.mxu0 0
        %944 = vmatprep.subr.bf16.mxu0 0
        %945 = vmatpush1.bf16.msra.mxu0 0
        %946 = vmatprep.subr.bf16.mxu0 0
        %947 = vmatpush1.bf16.msra.mxu0 0
        %948 = vmatprep.subr.bf16.mxu0 0
        %949 = vmatpush1.bf16.msra.mxu0 0
        %950 = vmatprep.mubr.bf16.mxu0 0
        %951 = vmatmul.mubr.bf16.gmra.mrb[0].mxu0 %v577
        %v952 = vpop.f32.mrb[0].mxu0
        %v953 = vadd.f32 %v888, %v952
        %v954 = vpop.f32.mrb[0].mxu0
        %v955 = vpop.f32.mrb[0].mxu0
        %v956 = vadd.f32 %v891, %v955
        %v957 = vpop.f32.mrb[0].mxu0
        %958 = vmatprep.mubr.bf16.mxu0 0
        %959 = vmatmul.mubr.bf16.gmra.mrb[0].mxu0 %v580
        %v960 = vpop.f32.mrb[0].mxu0
        %v961 = vadd.f32 %v896, %v960
        %v962 = vpop.f32.mrb[0].mxu0
        %v963 = vpop.f32.mrb[0].mxu0
        %v964 = vadd.f32 %v899, %v963
        %v965 = vpop.f32.mrb[0].mxu0
        %966 = vmatprep.mubr.bf16.mxu0 0
        %967 = vmatmul.mubr.bf16.gmra.mrb[0].mxu0 %v583
        %v968 = vpop.f32.mrb[0].mxu0
        %v969 = vadd.f32 %v904, %v968
        %v970 = vpop.f32.mrb[0].mxu0
        %v971 = vpop.f32.mrb[0].mxu0
        %v972 = vadd.f32 %v907, %v971
        %v973 = vpop.f32.mrb[0].mxu0
        %974 = vmatprep.mubr.bf16.mxu0 0
        %975 = vmatmul.mubr.bf16.gmra.mrb[0].mxu0 %v586
        %v976 = vpop.f32.mrb[0].mxu0
        %v977 = vadd.f32 %v912, %v976
        %v978 = vpop.f32.mrb[0].mxu0
        %v979 = vpop.f32.mrb[0].mxu0
        %v980 = vadd.f32 %v915, %v979
        %v981 = vpop.f32.mrb[0].mxu0
        %982 = vdwg.mxu0
        %v983 = vadd.f32 %v953, %v740
        %v984 = vadd.f32 %v956, %v740
        %v985 = vadd.f32 %v961, %v740
        %v986 = vadd.f32 %v964, %v740
        %v987 = vadd.f32 %v969, %v740
        %v988 = vadd.f32 %v972, %v740
        %v989 = vadd.f32 %v977, %v740
        %v990 = vadd.f32 %v980, %v740
        %vm991 = vcmp.gt.f32.partialorder %v983, 0.0
        %vm992 = vcmp.gt.f32.partialorder %v984, 0.0
        %vm993 = vcmp.gt.f32.partialorder %v985, 0.0
        %vm994 = vcmp.gt.f32.partialorder %v986, 0.0
        %vm995 = vcmp.gt.f32.partialorder %v987, 0.0
        %vm996 = vcmp.gt.f32.partialorder %v988, 0.0
        %vm997 = vcmp.gt.f32.partialorder %v989, 0.0
        %vm998 = vcmp.gt.f32.partialorder %v990, 0.0
        %v999 = vmin.f32 %v983, 0.0
        %v1000 = vmin.f32 %v984, 0.0
        %v1001 = vmin.f32 %v985, 0.0
        %v1002 = vmin.f32 %v986, 0.0
        %v1003 = vmin.f32 %v987, 0.0
        %v1004 = vmin.f32 %v988, 0.0
        %v1005 = vmin.f32 %v989, 0.0
        %v1006 = vmin.f32 %v990, 0.0
        %v1007 = vmul.f32 %v999, 1.442695
        %v1008 = vpow.pop %v1007
        %v1009 = vmul.f32 %v1000, 1.442695
        %v1010 = vpow.pop %v1009
        %v1011 = vmul.f32 %v1001, 1.442695
        %v1012 = vpow.pop %v1011
        %v1013 = vmul.f32 %v1002, 1.442695
        %v1014 = vpow.pop %v1013
        %v1015 = vmul.f32 %v1003, 1.442695
        %v1016 = vpow.pop %v1015
        %v1017 = vmul.f32 %v1004, 1.442695
        %v1018 = vpow.pop %v1017
        %v1019 = vmul.f32 %v1005, 1.442695
        %v1020 = vpow.pop %v1019
        %v1021 = vmul.f32 %v1006, 1.442695
        %v1022 = vpow.pop %v1021
        %v1023 = vsub.f32 %v1008, 1.0
        %v1024 = vsub.f32 %v1010, 1.0
        %v1025 = vsub.f32 %v1012, 1.0
        %v1026 = vsub.f32 %v1014, 1.0
        %v1027 = vsub.f32 %v1016, 1.0
        %v1028 = vsub.f32 %v1018, 1.0
        %v1029 = vsub.f32 %v1020, 1.0
        %v1030 = vsub.f32 %v1022, 1.0
        %v1031 = vmul.f32 %v1023, 1.6732632
        %v1032 = vmul.f32 %v1024, 1.6732632
        %v1033 = vmul.f32 %v1025, 1.6732632
        %v1034 = vmul.f32 %v1026, 1.6732632
        %v1035 = vmul.f32 %v1027, 1.6732632
        %v1036 = vmul.f32 %v1028, 1.6732632
        %v1037 = vmul.f32 %v1029, 1.6732632
        %v1038 = vmul.f32 %v1030, 1.6732632
        %v1039 = vsel %vm991, %v983, %v1031
        %v1040 = vsel %vm992, %v984, %v1032
        %v1041 = vsel %vm993, %v985, %v1033
        %v1042 = vsel %vm994, %v986, %v1034
        %v1043 = vsel %vm995, %v987, %v1035
        %v1044 = vsel %vm996, %v988, %v1036
        %v1045 = vsel %vm997, %v989, %v1037
        %v1046 = vsel %vm998, %v990, %v1038
        %v1047 = vmul.f32 %v1039, 1.050701
        %v1048 = vmul.f32 %v1040, 1.050701
        %v1049 = vmul.f32 %v1041, 1.050701
        %v1050 = vmul.f32 %v1042, 1.050701
        %v1051 = vmul.f32 %v1043, 1.050701
        %v1052 = vmul.f32 %v1044, 1.050701
        %v1053 = vmul.f32 %v1045, 1.050701
        %v1054 = vmul.f32 %v1046, 1.050701
        %v1055 = vpack.c.bf16 %v806, %v805
        %v1056 = vpack.c.bf16 %v808, %v807
        %v1057 = vpack.c.bf16 %v810, %v809
        %v1058 = vpack.c.bf16 %v812, %v811
        %v1059 = vpack.c.bf16 %v1048, %v1047
        %v1060 = vpack.c.bf16 %v1050, %v1049
        %v1061 = vpack.c.bf16 %v1052, %v1051
        %v1062 = vpack.c.bf16 %v1054, %v1053
        %v1067 = vunpack.c.l.b16 %v563
        %v1068 = vunpack.c.l.b16 %v564
        %v1069 = vunpack.c.l.b16 %v565
        %v1070 = vunpack.c.l.b16 %v566
        %v1071 = vpack.c.b16 %v1068, %v1067
        %v1072 = vpack.c.b16 %v1070, %v1069
        %vm1075 = vcmask 261120
        %v1077 = vsel %vm1075, %v1059, 0
        %v1080 = vsel %vm1075, %v1060, 0
        %v1083 = vsel %vm1075, %v1061, 0
        %v1086 = vsel %vm1075, %v1062, 0
        %1088 = vmatprep.subr.bf16.mxu0 0
        %1089 = vmatpush1.bf16.msra.mxu0 %v1071
        %1090 = vmatprep.subr.bf16.mxu0 0
        %1091 = vmatpush1.bf16.msra.mxu0 %v1072
        %1092 = vmatprep.subr.bf16.mxu0 0
        %1093 = vmatpush1.bf16.msra.mxu0 0
        %1094 = vmatprep.subr.bf16.mxu0 0
        %1095 = vmatpush1.bf16.msra.mxu0 0
        %1096 = vmatprep.subr.bf16.mxu0 0
        %1097 = vmatpush1.bf16.msra.mxu0 0
        %1098 = vmatprep.subr.bf16.mxu0 0
        %1099 = vmatpush1.bf16.msra.mxu0 0
        %1100 = vmatprep.subr.bf16.mxu0 0
        %1101 = vmatpush1.bf16.msra.mxu0 0
        %1102 = vmatprep.subr.bf16.mxu0 0
        %1103 = vmatpush1.bf16.msra.mxu0 0
        %1104 = vmatprep.subr.bf16.mxu0 0
        %1105 = vmatpush1.bf16.msra.mxu0 0
        %1106 = vmatprep.subr.bf16.mxu0 0
        %1107 = vmatpush1.bf16.msra.mxu0 0
        %1108 = vmatprep.subr.bf16.mxu0 0
        %1109 = vmatpush1.bf16.msra.mxu0 0
        %1110 = vmatprep.subr.bf16.mxu0 0
        %1111 = vmatpush1.bf16.msra.mxu0 0
        %1112 = vmatprep.subr.bf16.mxu0 0
        %1113 = vmatpush1.bf16.msra.mxu0 0
        %1114 = vmatprep.subr.bf16.mxu0 0
        %1115 = vmatpush1.bf16.msra.mxu0 0
        %1116 = vmatprep.subr.bf16.mxu0 0
        %1117 = vmatpush1.bf16.msra.mxu0 0
        %1118 = vmatprep.subr.bf16.mxu0 0
        %1119 = vmatpush1.bf16.msra.mxu0 0
        %1120 = vmatprep.mubr.bf16.mxu0 0
        %1121 = vmatmul.mubr.bf16.gmra.mrb[0].mxu0 %v1077
        %v1122 = vpop.f32.mrb[0].mxu0
        %v1123 = vadd.f32 0.0, %v1122
        %v1124 = vpop.f32.mrb[0].mxu0
        %v1125 = vpop.f32.mrb[0].mxu0
        %v1126 = vadd.f32 0.0, %v1125
        %v1127 = vpop.f32.mrb[0].mxu0
        %1128 = vmatprep.mubr.bf16.mxu0 0
        %1129 = vmatmul.mubr.bf16.gmra.mrb[0].mxu0 %v1080
        %v1130 = vpop.f32.mrb[0].mxu0
        %v1131 = vadd.f32 0.0, %v1130
        %v1132 = vpop.f32.mrb[0].mxu0
        %v1133 = vpop.f32.mrb[0].mxu0
        %v1134 = vadd.f32 0.0, %v1133
        %v1135 = vpop.f32.mrb[0].mxu0
        %1136 = vmatprep.mubr.bf16.mxu0 0
        %1137 = vmatmul.mubr.bf16.gmra.mrb[0].mxu0 %v1083
        %v1138 = vpop.f32.mrb[0].mxu0
        %v1139 = vadd.f32 0.0, %v1138
        %v1140 = vpop.f32.mrb[0].mxu0
        %v1141 = vpop.f32.mrb[0].mxu0
        %v1142 = vadd.f32 0.0, %v1141
        %v1143 = vpop.f32.mrb[0].mxu0
        %1144 = vmatprep.mubr.bf16.mxu0 0
        %1145 = vmatmul.mubr.bf16.gmra.mrb[0].mxu0 %v1086
        %v1146 = vpop.f32.mrb[0].mxu0
        %v1147 = vadd.f32 0.0, %v1146
        %v1148 = vpop.f32.mrb[0].mxu0
        %v1149 = vpop.f32.mrb[0].mxu0
        %v1150 = vadd.f32 0.0, %v1149
        %v1151 = vpop.f32.mrb[0].mxu0
        %1152 = vdwg.mxu0
        %v1157 = vunpack.c.l.b16 %v558
        %v1158 = vunpack.c.l.b16 %v559
        %v1159 = vunpack.c.l.b16 %v560
        %v1160 = vunpack.c.l.b16 %v561
        %v1161 = vpack.c.b16 %v1158, %v1157
        %v1162 = vpack.c.b16 %v1160, %v1159
        %v1166 = vsel %vm1075, %v1055, 0
        %v1169 = vsel %vm1075, %v1056, 0
        %v1172 = vsel %vm1075, %v1057, 0
        %v1175 = vsel %vm1075, %v1058, 0
        %1177 = vmatprep.subr.bf16.mxu0 0
        %1178 = vmatpush1.bf16.msra.mxu0 %v1161
        %1179 = vmatprep.subr.bf16.mxu0 0
        %1180 = vmatpush1.bf16.msra.mxu0 %v1162
        %1181 = vmatprep.subr.bf16.mxu0 0
        %1182 = vmatpush1.bf16.msra.mxu0 0
        %1183 = vmatprep.subr.bf16.mxu0 0
        %1184 = vmatpush1.bf16.msra.mxu0 0
        %1185 = vmatprep.subr.bf16.mxu0 0
        %1186 = vmatpush1.bf16.msra.mxu0 0
        %1187 = vmatprep.subr.bf16.mxu0 0
        %1188 = vmatpush1.bf16.msra.mxu0 0
        %1189 = vmatprep.subr.bf16.mxu0 0
        %1190 = vmatpush1.bf16.msra.mxu0 0
        %1191 = vmatprep.subr.bf16.mxu0 0
        %1192 = vmatpush1.bf16.msra.mxu0 0
        %1193 = vmatprep.subr.bf16.mxu0 0
        %1194 = vmatpush1.bf16.msra.mxu0 0
        %1195 = vmatprep.subr.bf16.mxu0 0
        %1196 = vmatpush1.bf16.msra.mxu0 0
        %1197 = vmatprep.subr.bf16.mxu0 0
        %1198 = vmatpush1.bf16.msra.mxu0 0
        %1199 = vmatprep.subr.bf16.mxu0 0
        %1200 = vmatpush1.bf16.msra.mxu0 0
        %1201 = vmatprep.subr.bf16.mxu0 0
        %1202 = vmatpush1.bf16.msra.mxu0 0
        %1203 = vmatprep.subr.bf16.mxu0 0
        %1204 = vmatpush1.bf16.msra.mxu0 0
        %1205 = vmatprep.subr.bf16.mxu0 0
        %1206 = vmatpush1.bf16.msra.mxu0 0
        %1207 = vmatprep.subr.bf16.mxu0 0
        %1208 = vmatpush1.bf16.msra.mxu0 0
        %1209 = vmatprep.mubr.bf16.mxu0 0
        %1210 = vmatmul.mubr.bf16.gmra.mrb[0].mxu0 %v1166
        %v1211 = vpop.f32.mrb[0].mxu0
        %v1212 = vadd.f32 %v1123, %v1211
        %v1213 = vpop.f32.mrb[0].mxu0
        %v1214 = vpop.f32.mrb[0].mxu0
        %v1215 = vadd.f32 %v1126, %v1214
        %v1216 = vpop.f32.mrb[0].mxu0
        %1217 = vmatprep.mubr.bf16.mxu0 0
        %1218 = vmatmul.mubr.bf16.gmra.mrb[0].mxu0 %v1169
        %v1219 = vpop.f32.mrb[0].mxu0
        %v1220 = vadd.f32 %v1131, %v1219
        %v1221 = vpop.f32.mrb[0].mxu0
        %v1222 = vpop.f32.mrb[0].mxu0
        %v1223 = vadd.f32 %v1134, %v1222
        %v1224 = vpop.f32.mrb[0].mxu0
        %1225 = vmatprep.mubr.bf16.mxu0 0
        %1226 = vmatmul.mubr.bf16.gmra.mrb[0].mxu0 %v1172
        %v1227 = vpop.f32.mrb[0].mxu0
        %v1228 = vadd.f32 %v1139, %v1227
        %v1229 = vpop.f32.mrb[0].mxu0
        %v1230 = vpop.f32.mrb[0].mxu0
        %v1231 = vadd.f32 %v1142, %v1230
        %v1232 = vpop.f32.mrb[0].mxu0
        %1233 = vmatprep.mubr.bf16.mxu0 0
        %1234 = vmatmul.mubr.bf16.gmra.mrb[0].mxu0 %v1175
        %v1235 = vpop.f32.mrb[0].mxu0
        %v1236 = vadd.f32 %v1147, %v1235
        %v1237 = vpop.f32.mrb[0].mxu0
        %v1238 = vpop.f32.mrb[0].mxu0
        %v1239 = vadd.f32 %v1150, %v1238
        %v1240 = vpop.f32.mrb[0].mxu0
        %1241 = vdwg.mxu0
        %v1242 = vlaneseq
        %v1243 = vshrl.u32 %v1242, 7
        %v1244 = vsub.s32 0, %v1243
        %v1245 = vrot.slane %v552, %v1244
        %v1246 = vadd.f32 %v1212, %v1245
        %v1247 = vadd.f32 %v1215, %v1245
        %v1248 = vadd.f32 %v1220, %v1245
        %v1249 = vadd.f32 %v1223, %v1245
        %v1250 = vadd.f32 %v1228, %v1245
        %v1251 = vadd.f32 %v1231, %v1245
        %v1252 = vadd.f32 %v1236, %v1245
        %v1253 = vadd.f32 %v1239, %v1245
        %vm1254 = vcmp.gt.f32.partialorder %v1246, 0.0
        %vm1255 = vcmp.gt.f32.partialorder %v1247, 0.0
        %vm1256 = vcmp.gt.f32.partialorder %v1248, 0.0
        %vm1257 = vcmp.gt.f32.partialorder %v1249, 0.0
        %vm1258 = vcmp.gt.f32.partialorder %v1250, 0.0
        %vm1259 = vcmp.gt.f32.partialorder %v1251, 0.0
        %vm1260 = vcmp.gt.f32.partialorder %v1252, 0.0
        %vm1261 = vcmp.gt.f32.partialorder %v1253, 0.0
        %v1262 = vmin.f32 %v1246, 0.0
        %v1263 = vmin.f32 %v1247, 0.0
        %v1264 = vmin.f32 %v1248, 0.0
        %v1265 = vmin.f32 %v1249, 0.0
        %v1266 = vmin.f32 %v1250, 0.0
        %v1267 = vmin.f32 %v1251, 0.0
        %v1268 = vmin.f32 %v1252, 0.0
        %v1269 = vmin.f32 %v1253, 0.0
        %v1270 = vmul.f32 %v1262, 1.442695
        %v1271 = vpow.pop %v1270
        %v1272 = vmul.f32 %v1263, 1.442695
        %v1273 = vpow.pop %v1272
        %v1274 = vmul.f32 %v1264, 1.442695
        %v1275 = vpow.pop %v1274
        %v1276 = vmul.f32 %v1265, 1.442695
        %v1277 = vpow.pop %v1276
        %v1278 = vmul.f32 %v1266, 1.442695
        %v1279 = vpow.pop %v1278
        %v1280 = vmul.f32 %v1267, 1.442695
        %v1281 = vpow.pop %v1280
        %v1282 = vmul.f32 %v1268, 1.442695
        %v1283 = vpow.pop %v1282
        %v1284 = vmul.f32 %v1269, 1.442695
        %v1285 = vpow.pop %v1284
        %v1286 = vsub.f32 %v1271, 1.0
        %v1287 = vsub.f32 %v1273, 1.0
        %v1288 = vsub.f32 %v1275, 1.0
        %v1289 = vsub.f32 %v1277, 1.0
        %v1290 = vsub.f32 %v1279, 1.0
        %v1291 = vsub.f32 %v1281, 1.0
        %v1292 = vsub.f32 %v1283, 1.0
        %v1293 = vsub.f32 %v1285, 1.0
        %v1294 = vmul.f32 %v1286, 1.6732632
        %v1295 = vmul.f32 %v1287, 1.6732632
        %v1296 = vmul.f32 %v1288, 1.6732632
        %v1297 = vmul.f32 %v1289, 1.6732632
        %v1298 = vmul.f32 %v1290, 1.6732632
        %v1299 = vmul.f32 %v1291, 1.6732632
        %v1300 = vmul.f32 %v1292, 1.6732632
        %v1301 = vmul.f32 %v1293, 1.6732632
        %v1302 = vsel %vm1254, %v1246, %v1294
        %v1303 = vsel %vm1255, %v1247, %v1295
        %v1304 = vsel %vm1256, %v1248, %v1296
        %v1305 = vsel %vm1257, %v1249, %v1297
        %v1306 = vsel %vm1258, %v1250, %v1298
        %v1307 = vsel %vm1259, %v1251, %v1299
        %v1308 = vsel %vm1260, %v1252, %v1300
        %v1309 = vsel %vm1261, %v1253, %v1301
        %v1310 = vmul.f32 %v1302, 1.050701
        %v1311 = vmul.f32 %v1303, 1.050701
        %v1312 = vmul.f32 %v1304, 1.050701
        %v1313 = vmul.f32 %v1305, 1.050701
        %v1314 = vmul.f32 %v1306, 1.050701
        %v1315 = vmul.f32 %v1307, 1.050701
        %v1316 = vmul.f32 %v1308, 1.050701
        %v1317 = vmul.f32 %v1309, 1.050701
        %v1318 = vshrl.u32 %v1055, 16
        %v1320 = vshll.u32 %v1055, 16
        %v1322 = vrot.slane %v1320, 1
        %v1323 = vor.u32 %v1318, %v1322
        %v1324 = vshll.u32 %v1056, 16
        %v1326 = vrot.slane %v1324, 1
        %v1327 = vsel %vm813, %v1323, %v1326
        %v1328 = vshrl.u32 %v1056, 16
        %v1330 = vor.u32 %v1328, %v1326
        %v1331 = vshll.u32 %v1057, 16
        %v1333 = vrot.slane %v1331, 1
        %v1334 = vsel %vm813, %v1330, %v1333
        %v1335 = vshrl.u32 %v1057, 16
        %v1337 = vor.u32 %v1335, %v1333
        %v1338 = vshll.u32 %v1058, 16
        %v1340 = vrot.slane %v1338, 1
        %v1341 = vsel %vm813, %v1337, %v1340
        %v1342 = vshrl.u32 %v1058, 16
        %v1344 = vor.u32 %v1342, %v1340
        %v1346 = vsel %vm1075, %v1327, 0
        %v1349 = vsel %vm1075, %v1334, 0
        %v1352 = vsel %vm1075, %v1341, 0
        %v1355 = vsel %vm1075, %v1344, 0
        %1357 = vmatprep.subr.bf16.mxu0 0
        %1358 = vmatpush1.bf16.msra.mxu0 %v1071
        %1359 = vmatprep.subr.bf16.mxu0 0
        %1360 = vmatpush1.bf16.msra.mxu0 %v1072
        %1361 = vmatprep.subr.bf16.mxu0 0
        %1362 = vmatpush1.bf16.msra.mxu0 0
        %1363 = vmatprep.subr.bf16.mxu0 0
        %1364 = vmatpush1.bf16.msra.mxu0 0
        %1365 = vmatprep.subr.bf16.mxu0 0
        %1366 = vmatpush1.bf16.msra.mxu0 0
        %1367 = vmatprep.subr.bf16.mxu0 0
        %1368 = vmatpush1.bf16.msra.mxu0 0
        %1369 = vmatprep.subr.bf16.mxu0 0
        %1370 = vmatpush1.bf16.msra.mxu0 0
        %1371 = vmatprep.subr.bf16.mxu0 0
        %1372 = vmatpush1.bf16.msra.mxu0 0
        %1373 = vmatprep.subr.bf16.mxu0 0
        %1374 = vmatpush1.bf16.msra.mxu0 0
        %1375 = vmatprep.subr.bf16.mxu0 0
        %1376 = vmatpush1.bf16.msra.mxu0 0
        %1377 = vmatprep.subr.bf16.mxu0 0
        %1378 = vmatpush1.bf16.msra.mxu0 0
        %1379 = vmatprep.subr.bf16.mxu0 0
        %1380 = vmatpush1.bf16.msra.mxu0 0
        %1381 = vmatprep.subr.bf16.mxu0 0
        %1382 = vmatpush1.bf16.msra.mxu0 0
        %1383 = vmatprep.subr.bf16.mxu0 0
        %1384 = vmatpush1.bf16.msra.mxu0 0
        %1385 = vmatprep.subr.bf16.mxu0 0
        %1386 = vmatpush1.bf16.msra.mxu0 0
        %1387 = vmatprep.subr.bf16.mxu0 0
        %1388 = vmatpush1.bf16.msra.mxu0 0
        %1389 = vmatprep.mubr.bf16.mxu0 0
        %1390 = vmatmul.mubr.bf16.gmra.mrb[0].mxu0 %v1346
        %v1391 = vpop.f32.mrb[0].mxu0
        %v1392 = vadd.f32 0.0, %v1391
        %v1393 = vpop.f32.mrb[0].mxu0
        %v1394 = vpop.f32.mrb[0].mxu0
        %v1395 = vadd.f32 0.0, %v1394
        %v1396 = vpop.f32.mrb[0].mxu0
        %1397 = vmatprep.mubr.bf16.mxu0 0
        %1398 = vmatmul.mubr.bf16.gmra.mrb[0].mxu0 %v1349
        %v1399 = vpop.f32.mrb[0].mxu0
        %v1400 = vadd.f32 0.0, %v1399
        %v1401 = vpop.f32.mrb[0].mxu0
        %v1402 = vpop.f32.mrb[0].mxu0
        %v1403 = vadd.f32 0.0, %v1402
        %v1404 = vpop.f32.mrb[0].mxu0
        %1405 = vmatprep.mubr.bf16.mxu0 0
        %1406 = vmatmul.mubr.bf16.gmra.mrb[0].mxu0 %v1352
        %v1407 = vpop.f32.mrb[0].mxu0
        %v1408 = vadd.f32 0.0, %v1407
        %v1409 = vpop.f32.mrb[0].mxu0
        %v1410 = vpop.f32.mrb[0].mxu0
        %v1411 = vadd.f32 0.0, %v1410
        %v1412 = vpop.f32.mrb[0].mxu0
        %1413 = vmatprep.mubr.bf16.mxu0 0
        %1414 = vmatmul.mubr.bf16.gmra.mrb[0].mxu0 %v1355
        %v1415 = vpop.f32.mrb[0].mxu0
        %v1416 = vadd.f32 0.0, %v1415
        %v1417 = vpop.f32.mrb[0].mxu0
        %v1418 = vpop.f32.mrb[0].mxu0
        %v1419 = vadd.f32 0.0, %v1418
        %v1420 = vpop.f32.mrb[0].mxu0
        %1421 = vdwg.mxu0
        %1422 = vmatprep.subr.bf16.mxu0 0
        %1423 = vmatpush1.bf16.msra.mxu0 %v1161
        %1424 = vmatprep.subr.bf16.mxu0 0
        %1425 = vmatpush1.bf16.msra.mxu0 %v1162
        %1426 = vmatprep.subr.bf16.mxu0 0
        %1427 = vmatpush1.bf16.msra.mxu0 0
        %1428 = vmatprep.subr.bf16.mxu0 0
        %1429 = vmatpush1.bf16.msra.mxu0 0
        %1430 = vmatprep.subr.bf16.mxu0 0
        %1431 = vmatpush1.bf16.msra.mxu0 0
        %1432 = vmatprep.subr.bf16.mxu0 0
        %1433 = vmatpush1.bf16.msra.mxu0 0
        %1434 = vmatprep.subr.bf16.mxu0 0
        %1435 = vmatpush1.bf16.msra.mxu0 0
        %1436 = vmatprep.subr.bf16.mxu0 0
        %1437 = vmatpush1.bf16.msra.mxu0 0
        %1438 = vmatprep.subr.bf16.mxu0 0
        %1439 = vmatpush1.bf16.msra.mxu0 0
        %1440 = vmatprep.subr.bf16.mxu0 0
        %1441 = vmatpush1.bf16.msra.mxu0 0
        %1442 = vmatprep.subr.bf16.mxu0 0
        %1443 = vmatpush1.bf16.msra.mxu0 0
        %1444 = vmatprep.subr.bf16.mxu0 0
        %1445 = vmatpush1.bf16.msra.mxu0 0
        %1446 = vmatprep.subr.bf16.mxu0 0
        %1447 = vmatpush1.bf16.msra.mxu0 0
        %1448 = vmatprep.subr.bf16.mxu0 0
        %1449 = vmatpush1.bf16.msra.mxu0 0
        %1450 = vmatprep.subr.bf16.mxu0 0
        %1451 = vmatpush1.bf16.msra.mxu0 0
        %1452 = vmatprep.subr.bf16.mxu0 0
        %1453 = vmatpush1.bf16.msra.mxu0 0
        %1454 = vmatprep.mubr.bf16.mxu0 0
        %1455 = vmatmul.mubr.bf16.gmra.mrb[0].mxu0 %v1077
        %v1456 = vpop.f32.mrb[0].mxu0
        %v1457 = vadd.f32 %v1392, %v1456
        %v1458 = vpop.f32.mrb[0].mxu0
        %v1459 = vpop.f32.mrb[0].mxu0
        %v1460 = vadd.f32 %v1395, %v1459
        %v1461 = vpop.f32.mrb[0].mxu0
        %1462 = vmatprep.mubr.bf16.mxu0 0
        %1463 = vmatmul.mubr.bf16.gmra.mrb[0].mxu0 %v1080
        %v1464 = vpop.f32.mrb[0].mxu0
        %v1465 = vadd.f32 %v1400, %v1464
        %v1466 = vpop.f32.mrb[0].mxu0
        %v1467 = vpop.f32.mrb[0].mxu0
        %v1468 = vadd.f32 %v1403, %v1467
        %v1469 = vpop.f32.mrb[0].mxu0
        %1470 = vmatprep.mubr.bf16.mxu0 0
        %1471 = vmatmul.mubr.bf16.gmra.mrb[0].mxu0 %v1083
        %v1472 = vpop.f32.mrb[0].mxu0
        %v1473 = vadd.f32 %v1408, %v1472
        %v1474 = vpop.f32.mrb[0].mxu0
        %v1475 = vpop.f32.mrb[0].mxu0
        %v1476 = vadd.f32 %v1411, %v1475
        %v1477 = vpop.f32.mrb[0].mxu0
        %1478 = vmatprep.mubr.bf16.mxu0 0
        %1479 = vmatmul.mubr.bf16.gmra.mrb[0].mxu0 %v1086
        %v1480 = vpop.f32.mrb[0].mxu0
        %v1481 = vadd.f32 %v1416, %v1480
        %v1482 = vpop.f32.mrb[0].mxu0
        %v1483 = vpop.f32.mrb[0].mxu0
        %v1484 = vadd.f32 %v1419, %v1483
        %v1485 = vpop.f32.mrb[0].mxu0
        %1486 = vdwg.mxu0
        %v1487 = vadd.f32 %v1457, %v1245
        %v1488 = vadd.f32 %v1460, %v1245
        %v1489 = vadd.f32 %v1465, %v1245
        %v1490 = vadd.f32 %v1468, %v1245
        %v1491 = vadd.f32 %v1473, %v1245
        %v1492 = vadd.f32 %v1476, %v1245
        %v1493 = vadd.f32 %v1481, %v1245
        %v1494 = vadd.f32 %v1484, %v1245
        %vm1495 = vcmp.gt.f32.partialorder %v1487, 0.0
        %vm1496 = vcmp.gt.f32.partialorder %v1488, 0.0
        %vm1497 = vcmp.gt.f32.partialorder %v1489, 0.0
        %vm1498 = vcmp.gt.f32.partialorder %v1490, 0.0
        %vm1499 = vcmp.gt.f32.partialorder %v1491, 0.0
        %vm1500 = vcmp.gt.f32.partialorder %v1492, 0.0
        %vm1501 = vcmp.gt.f32.partialorder %v1493, 0.0
        %vm1502 = vcmp.gt.f32.partialorder %v1494, 0.0
        %v1503 = vmin.f32 %v1487, 0.0
        %v1504 = vmin.f32 %v1488, 0.0
        %v1505 = vmin.f32 %v1489, 0.0
        %v1506 = vmin.f32 %v1490, 0.0
        %v1507 = vmin.f32 %v1491, 0.0
        %v1508 = vmin.f32 %v1492, 0.0
        %v1509 = vmin.f32 %v1493, 0.0
        %v1510 = vmin.f32 %v1494, 0.0
        %v1511 = vmul.f32 %v1503, 1.442695
        %v1512 = vpow.pop %v1511
        %v1513 = vmul.f32 %v1504, 1.442695
        %v1514 = vpow.pop %v1513
        %v1515 = vmul.f32 %v1505, 1.442695
        %v1516 = vpow.pop %v1515
        %v1517 = vmul.f32 %v1506, 1.442695
        %v1518 = vpow.pop %v1517
        %v1519 = vmul.f32 %v1507, 1.442695
        %v1520 = vpow.pop %v1519
        %v1521 = vmul.f32 %v1508, 1.442695
        %v1522 = vpow.pop %v1521
        %v1523 = vmul.f32 %v1509, 1.442695
        %v1524 = vpow.pop %v1523
        %v1525 = vmul.f32 %v1510, 1.442695
        %v1526 = vpow.pop %v1525
        %v1527 = vsub.f32 %v1512, 1.0
        %v1528 = vsub.f32 %v1514, 1.0
        %v1529 = vsub.f32 %v1516, 1.0
        %v1530 = vsub.f32 %v1518, 1.0
        %v1531 = vsub.f32 %v1520, 1.0
        %v1532 = vsub.f32 %v1522, 1.0
        %v1533 = vsub.f32 %v1524, 1.0
        %v1534 = vsub.f32 %v1526, 1.0
        %v1535 = vmul.f32 %v1527, 1.6732632
        %v1536 = vmul.f32 %v1528, 1.6732632
        %v1537 = vmul.f32 %v1529, 1.6732632
        %v1538 = vmul.f32 %v1530, 1.6732632
        %v1539 = vmul.f32 %v1531, 1.6732632
        %v1540 = vmul.f32 %v1532, 1.6732632
        %v1541 = vmul.f32 %v1533, 1.6732632
        %v1542 = vmul.f32 %v1534, 1.6732632
        %v1543 = vsel %vm1495, %v1487, %v1535
        %v1544 = vsel %vm1496, %v1488, %v1536
        %v1545 = vsel %vm1497, %v1489, %v1537
        %v1546 = vsel %vm1498, %v1490, %v1538
        %v1547 = vsel %vm1499, %v1491, %v1539
        %v1548 = vsel %vm1500, %v1492, %v1540
        %v1549 = vsel %vm1501, %v1493, %v1541
        %v1550 = vsel %vm1502, %v1494, %v1542
        %v1551 = vmul.f32 %v1543, 1.050701
        %v1552 = vmul.f32 %v1544, 1.050701
        %v1553 = vmul.f32 %v1545, 1.050701
        %v1554 = vmul.f32 %v1546, 1.050701
        %v1555 = vmul.f32 %v1547, 1.050701
        %v1556 = vmul.f32 %v1548, 1.050701
        %v1557 = vmul.f32 %v1549, 1.050701
        %v1558 = vmul.f32 %v1550, 1.050701
        %v1559 = vlaneseq
        %v1560 = vshrl.u32 %v1559, 7
        %v1561 = vsub.s32 0, %v1560
        %v1562 = vrot.slane %v553, %v1561
        %v1563 = vmul.f32 %v1310, %v1562
        %v1564 = vmul.f32 %v1311, %v1562
        %v1565 = vmul.f32 %v1312, %v1562
        %v1566 = vmul.f32 %v1313, %v1562
        %v1567 = vmul.f32 %v1314, %v1562
        %v1568 = vmul.f32 %v1315, %v1562
        %v1569 = vmul.f32 %v1316, %v1562
        %v1570 = vmul.f32 %v1317, %v1562
        %v1571 = vlaneseq
        %v1572 = vshrl.u32 %v1571, 7
        %v1573 = vsub.s32 0, %v1572
        %v1574 = vrot.slane %v554, %v1573
        %v1575 = vadd.f32 %v1563, %v1574
        %v1576 = vadd.f32 %v1564, %v1574
        %v1577 = vadd.f32 %v1565, %v1574
        %v1578 = vadd.f32 %v1566, %v1574
        %v1579 = vadd.f32 %v1567, %v1574
        %v1580 = vadd.f32 %v1568, %v1574
        %v1581 = vadd.f32 %v1569, %v1574
        %v1582 = vadd.f32 %v1570, %v1574
        %v1583 = vmul.f32 %v1551, %v1562
        %v1584 = vmul.f32 %v1552, %v1562
        %v1585 = vmul.f32 %v1553, %v1562
        %v1586 = vmul.f32 %v1554, %v1562
        %v1587 = vmul.f32 %v1555, %v1562
        %v1588 = vmul.f32 %v1556, %v1562
        %v1589 = vmul.f32 %v1557, %v1562
        %v1590 = vmul.f32 %v1558, %v1562
        %v1591 = vadd.f32 %v1583, %v1574
        %v1592 = vadd.f32 %v1584, %v1574
        %v1593 = vadd.f32 %v1585, %v1574
        %v1594 = vadd.f32 %v1586, %v1574
        %v1595 = vadd.f32 %v1587, %v1574
        %v1596 = vadd.f32 %v1588, %v1574
        %v1597 = vadd.f32 %v1589, %v1574
        %v1598 = vadd.f32 %v1590, %v1574
        %v1599 = vmax.f32 %v1575, %v1591
        %v1600 = vmax.f32 %v1576, %v1592
        %v1601 = vmax.f32 %v1577, %v1593
        %v1602 = vmax.f32 %v1578, %v1594
        %v1603 = vmax.f32 %v1579, %v1595
        %v1604 = vmax.f32 %v1580, %v1596
        %v1605 = vmax.f32 %v1581, %v1597
        %v1606 = vmax.f32 %v1582, %v1598
        %1607 = vst.msk [vmem:[#allocation2] sm:$0xff] %vm1075, %v1599
        %1608 = vst.msk [vmem:[#allocation2 + $0x8] sm:$0xff] %vm1075, %v1600
        %1609 = vst.msk [vmem:[#allocation2 + $0x10] sm:$0xff] %vm1075, %v1601
        %1610 = vst.msk [vmem:[#allocation2 + $0x18] sm:$0xff] %vm1075, %v1602
        %1611 = vst.msk [vmem:[#allocation2 + $0x20] sm:$0xff] %vm1075, %v1603
        %1612 = vst.msk [vmem:[#allocation2 + $0x28] sm:$0xff] %vm1075, %v1604
        %1613 = vst.msk [vmem:[#allocation2 + $0x30] sm:$0xff] %vm1075, %v1605
        %vm1614 = vcmask 260096
        %1615 = vst.msk [vmem:[#allocation2 + $0x38] sm:$0x7f] %vm1614, %v1606
        %v1616 = vld [vmem:[#allocation2] ss:$2 sm:$0xff]
        %s1617 = scalar_lea.vmem [#allocation2], 16
        %v1618 = vld [vmem:[%s1617] ss:$2 sm:$0xff]
        %s1619 = scalar_lea.vmem [#allocation2], 32
        %v1620 = vld [vmem:[%s1619] ss:$2 sm:$0xff]
        %s1621 = scalar_lea.vmem [#allocation2], 48
        %v1622 = vld [vmem:[%s1621] ss:$2 sm:$0x7f]
        %s1623 = scalar_lea.vmem [#allocation2], 1
        %v1624 = vld [vmem:[%s1623] ss:$2 sm:$0xff]
        %s1625 = scalar_lea.vmem [#allocation2], 17
        %v1626 = vld [vmem:[%s1625] ss:$2 sm:$0xff]
        %s1627 = scalar_lea.vmem [#allocation2], 33
        %v1628 = vld [vmem:[%s1627] ss:$2 sm:$0xff]
        %s1629 = scalar_lea.vmem [#allocation2], 49
        %v1630 = vld [vmem:[%s1629] ss:$2 sm:$0x7f]
        %v1631 = vld [vmem:[%s6] sm:$0x1]
        %v1632 = vld [vmem:[%s6 + $0x1] sm:$0x1]
        %v1633 = vld [vmem:[%s6 + $0x2] sm:$0x1]
        %v1634 = vld [vmem:[%s6 + $0x3] sm:$0x1]
        %v1635 = vld [vmem:[%s4] sm:$0xf]
        %v1636 = vld [vmem:[%s4 + $0x4] sm:$0xf]
        %v1637 = vld [vmem:[%s4 + $0x8] sm:$0xf]
        %v1638 = vld [vmem:[%s4 + $0xc] sm:$0xf]
        %s1639 = scalar_lea.vmem %s4, 16
        %v1640 = vld [vmem:[%s1639] sm:$0xf]
        %v1641 = vld [vmem:[%s1639 + $0x4] sm:$0xf]
        %v1642 = vld [vmem:[%s1639 + $0x8] sm:$0xf]
        %v1643 = vld [vmem:[%s1639 + $0xc] sm:$0xf]
        %v1644 = vld [vmem:[%s5] sm:$0xf]
        %v1645 = vld [vmem:[%s5 + $0x4] sm:$0xf]
        %s1646 = scalar_lea.vmem %s5, 8
        %v1647 = vld [vmem:[%s1646] sm:$0xf]
        %v1648 = vld [vmem:[%s1646 + $0x4] sm:$0xf]
        %v1649 = vpack.c.bf16 %v1618, %v1616
        %v1650 = vpack.c.bf16 %v1622, %v1620
        %v1651 = vpack.c.bf16 %v1626, %v1624
        %v1652 = vpack.c.bf16 %v1630, %v1628
        %v1657 = vunpack.c.l.b16 %v1640
        %v1658 = vunpack.c.l.b16 %v1641
        %v1659 = vunpack.c.l.b16 %v1642
        %v1660 = vunpack.c.l.b16 %v1643
        %v1661 = vpack.c.b16 %v1658, %v1657
        %v1662 = vpack.c.b16 %v1660, %v1659
        %v1666 = vsel %vm1075, %v1651, 0
        %v1669 = vsel %vm1075, %v1652, 0
        %1671 = vmatprep.subr.bf16.mxu0 0
        %1672 = vmatpush1.bf16.msra.mxu0 %v1661
        %1673 = vmatprep.subr.bf16.mxu0 0
        %1674 = vmatpush1.bf16.msra.mxu0 %v1662
        %1675 = vmatprep.subr.bf16.mxu0 0
        %1676 = vmatpush1.bf16.msra.mxu0 0
        %1677 = vmatprep.subr.bf16.mxu0 0
        %1678 = vmatpush1.bf16.msra.mxu0 0
        %1679 = vmatprep.subr.bf16.mxu0 0
        %1680 = vmatpush1.bf16.msra.mxu0 0
        %1681 = vmatprep.subr.bf16.mxu0 0
        %1682 = vmatpush1.bf16.msra.mxu0 0
        %1683 = vmatprep.subr.bf16.mxu0 0
        %1684 = vmatpush1.bf16.msra.mxu0 0
        %1685 = vmatprep.subr.bf16.mxu0 0
        %1686 = vmatpush1.bf16.msra.mxu0 0
        %1687 = vmatprep.subr.bf16.mxu0 0
        %1688 = vmatpush1.bf16.msra.mxu0 0
        %1689 = vmatprep.subr.bf16.mxu0 0
        %1690 = vmatpush1.bf16.msra.mxu0 0
        %1691 = vmatprep.subr.bf16.mxu0 0
        %1692 = vmatpush1.bf16.msra.mxu0 0
        %1693 = vmatprep.subr.bf16.mxu0 0
        %1694 = vmatpush1.bf16.msra.mxu0 0
        %1695 = vmatprep.subr.bf16.mxu0 0
        %1696 = vmatpush1.bf16.msra.mxu0 0
        %1697 = vmatprep.subr.bf16.mxu0 0
        %1698 = vmatpush1.bf16.msra.mxu0 0
        %1699 = vmatprep.subr.bf16.mxu0 0
        %1700 = vmatpush1.bf16.msra.mxu0 0
        %1701 = vmatprep.subr.bf16.mxu0 0
        %1702 = vmatpush1.bf16.msra.mxu0 0
        %1703 = vmatprep.mubr.bf16.mxu0 0
        %1704 = vmatmul.mubr.bf16.gmra.mrb[0].mxu0 %v1666
        %v1705 = vpop.f32.mrb[0].mxu0
        %v1706 = vadd.f32 0.0, %v1705
        %v1707 = vpop.f32.mrb[0].mxu0
        %v1708 = vpop.f32.mrb[0].mxu0
        %v1709 = vadd.f32 0.0, %v1708
        %v1710 = vpop.f32.mrb[0].mxu0
        %1711 = vmatprep.mubr.bf16.mxu0 0
        %1712 = vmatmul.mubr.bf16.gmra.mrb[0].mxu0 %v1669
        %v1713 = vpop.f32.mrb[0].mxu0
        %v1714 = vadd.f32 0.0, %v1713
        %v1715 = vpop.f32.mrb[0].mxu0
        %v1716 = vpop.f32.mrb[0].mxu0
        %v1717 = vadd.f32 0.0, %v1716
        %v1718 = vpop.f32.mrb[0].mxu0
        %1719 = vdwg.mxu0
        %v1724 = vunpack.c.l.b16 %v1635
        %v1725 = vunpack.c.l.b16 %v1636
        %v1726 = vunpack.c.l.b16 %v1637
        %v1727 = vunpack.c.l.b16 %v1638
        %v1728 = vpack.c.b16 %v1725, %v1724
        %v1729 = vpack.c.b16 %v1727, %v1726
        %v1733 = vsel %vm1075, %v1649, 0
        %v1736 = vsel %vm1075, %v1650, 0
        %1738 = vmatprep.subr.bf16.mxu0 0
        %1739 = vmatpush1.bf16.msra.mxu0 %v1728
        %1740 = vmatprep.subr.bf16.mxu0 0
        %1741 = vmatpush1.bf16.msra.mxu0 %v1729
        %1742 = vmatprep.subr.bf16.mxu0 0
        %1743 = vmatpush1.bf16.msra.mxu0 0
        %1744 = vmatprep.subr.bf16.mxu0 0
        %1745 = vmatpush1.bf16.msra.mxu0 0
        %1746 = vmatprep.subr.bf16.mxu0 0
        %1747 = vmatpush1.bf16.msra.mxu0 0
        %1748 = vmatprep.subr.bf16.mxu0 0
        %1749 = vmatpush1.bf16.msra.mxu0 0
        %1750 = vmatprep.subr.bf16.mxu0 0
        %1751 = vmatpush1.bf16.msra.mxu0 0
        %1752 = vmatprep.subr.bf16.mxu0 0
        %1753 = vmatpush1.bf16.msra.mxu0 0
        %1754 = vmatprep.subr.bf16.mxu0 0
        %1755 = vmatpush1.bf16.msra.mxu0 0
        %1756 = vmatprep.subr.bf16.mxu0 0
        %1757 = vmatpush1.bf16.msra.mxu0 0
        %1758 = vmatprep.subr.bf16.mxu0 0
        %1759 = vmatpush1.bf16.msra.mxu0 0
        %1760 = vmatprep.subr.bf16.mxu0 0
        %1761 = vmatpush1.bf16.msra.mxu0 0
        %1762 = vmatprep.subr.bf16.mxu0 0
        %1763 = vmatpush1.bf16.msra.mxu0 0
        %1764 = vmatprep.subr.bf16.mxu0 0
        %1765 = vmatpush1.bf16.msra.mxu0 0
        %1766 = vmatprep.subr.bf16.mxu0 0
        %1767 = vmatpush1.bf16.msra.mxu0 0
        %1768 = vmatprep.subr.bf16.mxu0 0
        %1769 = vmatpush1.bf16.msra.mxu0 0
        %1770 = vmatprep.mubr.bf16.mxu0 0
        %1771 = vmatmul.mubr.bf16.gmra.mrb[0].mxu0 %v1733
        %v1772 = vpop.f32.mrb[0].mxu0
        %v1773 = vadd.f32 %v1706, %v1772
        %v1774 = vpop.f32.mrb[0].mxu0
        %v1775 = vpop.f32.mrb[0].mxu0
        %v1776 = vadd.f32 %v1709, %v1775
        %v1777 = vpop.f32.mrb[0].mxu0
        %1778 = vmatprep.mubr.bf16.mxu0 0
        %1779 = vmatmul.mubr.bf16.gmra.mrb[0].mxu0 %v1736
        %v1780 = vpop.f32.mrb[0].mxu0
        %v1781 = vadd.f32 %v1714, %v1780
        %v1782 = vpop.f32.mrb[0].mxu0
        %v1783 = vpop.f32.mrb[0].mxu0
        %v1784 = vadd.f32 %v1717, %v1783
        %v1785 = vpop.f32.mrb[0].mxu0
        %1786 = vdwg.mxu0
        %v1787 = vlaneseq
        %v1788 = vshrl.u32 %v1787, 7
        %v1789 = vsub.s32 0, %v1788
        %v1790 = vrot.slane %v1631, %v1789
        %v1791 = vadd.f32 %v1773, %v1790
        %v1792 = vadd.f32 %v1776, %v1790
        %v1793 = vadd.f32 %v1781, %v1790
        %v1794 = vadd.f32 %v1784, %v1790
        %vm1795 = vcmp.gt.f32.partialorder %v1791, 0.0
        %vm1796 = vcmp.gt.f32.partialorder %v1792, 0.0
        %vm1797 = vcmp.gt.f32.partialorder %v1793, 0.0
        %vm1798 = vcmp.gt.f32.partialorder %v1794, 0.0
        %v1799 = vmin.f32 %v1791, 0.0
        %v1800 = vmin.f32 %v1792, 0.0
        %v1801 = vmin.f32 %v1793, 0.0
        %v1802 = vmin.f32 %v1794, 0.0
        %v1803 = vmul.f32 %v1799, 1.442695
        %v1804 = vpow.pop %v1803
        %v1805 = vmul.f32 %v1800, 1.442695
        %v1806 = vpow.pop %v1805
        %v1807 = vmul.f32 %v1801, 1.442695
        %v1808 = vpow.pop %v1807
        %v1809 = vmul.f32 %v1802, 1.442695
        %v1810 = vpow.pop %v1809
        %v1811 = vsub.f32 %v1804, 1.0
        %v1812 = vsub.f32 %v1806, 1.0
        %v1813 = vsub.f32 %v1808, 1.0
        %v1814 = vsub.f32 %v1810, 1.0
        %v1815 = vmul.f32 %v1811, 1.6732632
        %v1816 = vmul.f32 %v1812, 1.6732632
        %v1817 = vmul.f32 %v1813, 1.6732632
        %v1818 = vmul.f32 %v1814, 1.6732632
        %v1819 = vsel %vm1795, %v1791, %v1815
        %v1820 = vsel %vm1796, %v1792, %v1816
        %v1821 = vsel %vm1797, %v1793, %v1817
        %v1822 = vsel %vm1798, %v1794, %v1818
        %v1823 = vmul.f32 %v1819, 1.050701
        %v1824 = vmul.f32 %v1820, 1.050701
        %v1825 = vmul.f32 %v1821, 1.050701
        %v1826 = vmul.f32 %v1822, 1.050701
        %v1827 = vshrl.u32 %v1649, 16
        %v1829 = vshll.u32 %v1649, 16
        %v1831 = vrot.slane %v1829, 1
        %v1832 = vor.u32 %v1827, %v1831
        %v1833 = vshll.u32 %v1650, 16
        %v1835 = vrot.slane %v1833, 1
        %v1836 = vsel %vm813, %v1832, %v1835
        %v1837 = vshrl.u32 %v1650, 16
        %v1839 = vor.u32 %v1837, %v1835
        %v1841 = vsel %vm1075, %v1836, 0
        %v1844 = vsel %vm1075, %v1839, 0
        %1846 = vmatprep.subr.bf16.mxu0 0
        %1847 = vmatpush1.bf16.msra.mxu0 %v1661
        %1848 = vmatprep.subr.bf16.mxu0 0
        %1849 = vmatpush1.bf16.msra.mxu0 %v1662
        %1850 = vmatprep.subr.bf16.mxu0 0
        %1851 = vmatpush1.bf16.msra.mxu0 0
        %1852 = vmatprep.subr.bf16.mxu0 0
        %1853 = vmatpush1.bf16.msra.mxu0 0
        %1854 = vmatprep.subr.bf16.mxu0 0
        %1855 = vmatpush1.bf16.msra.mxu0 0
        %1856 = vmatprep.subr.bf16.mxu0 0
        %1857 = vmatpush1.bf16.msra.mxu0 0
        %1858 = vmatprep.subr.bf16.mxu0 0
        %1859 = vmatpush1.bf16.msra.mxu0 0
        %1860 = vmatprep.subr.bf16.mxu0 0
        %1861 = vmatpush1.bf16.msra.mxu0 0
        %1862 = vmatprep.subr.bf16.mxu0 0
        %1863 = vmatpush1.bf16.msra.mxu0 0
        %1864 = vmatprep.subr.bf16.mxu0 0
        %1865 = vmatpush1.bf16.msra.mxu0 0
        %1866 = vmatprep.subr.bf16.mxu0 0
        %1867 = vmatpush1.bf16.msra.mxu0 0
        %1868 = vmatprep.subr.bf16.mxu0 0
        %1869 = vmatpush1.bf16.msra.mxu0 0
        %1870 = vmatprep.subr.bf16.mxu0 0
        %1871 = vmatpush1.bf16.msra.mxu0 0
        %1872 = vmatprep.subr.bf16.mxu0 0
        %1873 = vmatpush1.bf16.msra.mxu0 0
        %1874 = vmatprep.subr.bf16.mxu0 0
        %1875 = vmatpush1.bf16.msra.mxu0 0
        %1876 = vmatprep.subr.bf16.mxu0 0
        %1877 = vmatpush1.bf16.msra.mxu0 0
        %1878 = vmatprep.mubr.bf16.mxu0 0
        %1879 = vmatmul.mubr.bf16.gmra.mrb[0].mxu0 %v1841
        %v1880 = vpop.f32.mrb[0].mxu0
        %v1881 = vadd.f32 0.0, %v1880
        %v1882 = vpop.f32.mrb[0].mxu0
        %v1883 = vpop.f32.mrb[0].mxu0
        %v1884 = vadd.f32 0.0, %v1883
        %v1885 = vpop.f32.mrb[0].mxu0
        %1886 = vmatprep.mubr.bf16.mxu0 0
        %1887 = vmatmul.mubr.bf16.gmra.mrb[0].mxu0 %v1844
        %v1888 = vpop.f32.mrb[0].mxu0
        %v1889 = vadd.f32 0.0, %v1888
        %v1890 = vpop.f32.mrb[0].mxu0
        %v1891 = vpop.f32.mrb[0].mxu0
        %v1892 = vadd.f32 0.0, %v1891
        %v1893 = vpop.f32.mrb[0].mxu0
        %1894 = vdwg.mxu0
        %1895 = vmatprep.subr.bf16.mxu0 0
        %1896 = vmatpush1.bf16.msra.mxu0 %v1728
        %1897 = vmatprep.subr.bf16.mxu0 0
        %1898 = vmatpush1.bf16.msra.mxu0 %v1729
        %1899 = vmatprep.subr.bf16.mxu0 0
        %1900 = vmatpush1.bf16.msra.mxu0 0
        %1901 = vmatprep.subr.bf16.mxu0 0
        %1902 = vmatpush1.bf16.msra.mxu0 0
        %1903 = vmatprep.subr.bf16.mxu0 0
        %1904 = vmatpush1.bf16.msra.mxu0 0
        %1905 = vmatprep.subr.bf16.mxu0 0
        %1906 = vmatpush1.bf16.msra.mxu0 0
        %1907 = vmatprep.subr.bf16.mxu0 0
        %1908 = vmatpush1.bf16.msra.mxu0 0
        %1909 = vmatprep.subr.bf16.mxu0 0
        %1910 = vmatpush1.bf16.msra.mxu0 0
        %1911 = vmatprep.subr.bf16.mxu0 0
        %1912 = vmatpush1.bf16.msra.mxu0 0
        %1913 = vmatprep.subr.bf16.mxu0 0
        %1914 = vmatpush1.bf16.msra.mxu0 0
        %1915 = vmatprep.subr.bf16.mxu0 0
        %1916 = vmatpush1.bf16.msra.mxu0 0
        %1917 = vmatprep.subr.bf16.mxu0 0
        %1918 = vmatpush1.bf16.msra.mxu0 0
        %1919 = vmatprep.subr.bf16.mxu0 0
        %1920 = vmatpush1.bf16.msra.mxu0 0
        %1921 = vmatprep.subr.bf16.mxu0 0
        %1922 = vmatpush1.bf16.msra.mxu0 0
        %1923 = vmatprep.subr.bf16.mxu0 0
        %1924 = vmatpush1.bf16.msra.mxu0 0
        %1925 = vmatprep.subr.bf16.mxu0 0
        %1926 = vmatpush1.bf16.msra.mxu0 0
        %1927 = vmatprep.mubr.bf16.mxu0 0
        %1928 = vmatmul.mubr.bf16.gmra.mrb[0].mxu0 %v1666
        %v1929 = vpop.f32.mrb[0].mxu0
        %v1930 = vadd.f32 %v1881, %v1929
        %v1931 = vpop.f32.mrb[0].mxu0
        %v1932 = vpop.f32.mrb[0].mxu0
        %v1933 = vadd.f32 %v1884, %v1932
        %v1934 = vpop.f32.mrb[0].mxu0
        %1935 = vmatprep.mubr.bf16.mxu0 0
        %1936 = vmatmul.mubr.bf16.gmra.mrb[0].mxu0 %v1669
        %v1937 = vpop.f32.mrb[0].mxu0
        %v1938 = vadd.f32 %v1889, %v1937
        %v1939 = vpop.f32.mrb[0].mxu0
        %v1940 = vpop.f32.mrb[0].mxu0
        %v1941 = vadd.f32 %v1892, %v1940
        %v1942 = vpop.f32.mrb[0].mxu0
        %1943 = vdwg.mxu0
        %v1944 = vadd.f32 %v1930, %v1790
        %v1945 = vadd.f32 %v1933, %v1790
        %v1946 = vadd.f32 %v1938, %v1790
        %v1947 = vadd.f32 %v1941, %v1790
        %vm1948 = vcmp.gt.f32.partialorder %v1944, 0.0
        %vm1949 = vcmp.gt.f32.partialorder %v1945, 0.0
        %vm1950 = vcmp.gt.f32.partialorder %v1946, 0.0
        %vm1951 = vcmp.gt.f32.partialorder %v1947, 0.0
        %v1952 = vmin.f32 %v1944, 0.0
        %v1953 = vmin.f32 %v1945, 0.0
        %v1954 = vmin.f32 %v1946, 0.0
        %v1955 = vmin.f32 %v1947, 0.0
        %v1956 = vmul.f32 %v1952, 1.442695
        %v1957 = vpow.pop %v1956
        %v1958 = vmul.f32 %v1953, 1.442695
        %v1959 = vpow.pop %v1958
        %v1960 = vmul.f32 %v1954, 1.442695
        %v1961 = vpow.pop %v1960
        %v1962 = vmul.f32 %v1955, 1.442695
        %v1963 = vpow.pop %v1962
        %v1964 = vsub.f32 %v1957, 1.0
        %v1965 = vsub.f32 %v1959, 1.0
        %v1966 = vsub.f32 %v1961, 1.0
        %v1967 = vsub.f32 %v1963, 1.0
        %v1968 = vmul.f32 %v1964, 1.6732632
        %v1969 = vmul.f32 %v1965, 1.6732632
        %v1970 = vmul.f32 %v1966, 1.6732632
        %v1971 = vmul.f32 %v1967, 1.6732632
        %v1972 = vsel %vm1948, %v1944, %v1968
        %v1973 = vsel %vm1949, %v1945, %v1969
        %v1974 = vsel %vm1950, %v1946, %v1970
        %v1975 = vsel %vm1951, %v1947, %v1971
        %v1976 = vmul.f32 %v1972, 1.050701
        %v1977 = vmul.f32 %v1973, 1.050701
        %v1978 = vmul.f32 %v1974, 1.050701
        %v1979 = vmul.f32 %v1975, 1.050701
        %v1980 = vpack.c.bf16 %v1824, %v1823
        %v1981 = vpack.c.bf16 %v1826, %v1825
        %v1982 = vpack.c.bf16 %v1977, %v1976
        %v1983 = vpack.c.bf16 %v1979, %v1978
        %v1986 = vunpack.c.l.b16 %v1647
        %v1987 = vunpack.c.l.b16 %v1648
        %v1988 = vpack.c.b16 %v1987, %v1986
        %vm1990 = vcmask 130048
        %v1992 = vsel %vm1990, %v1982, 0
        %v1995 = vsel %vm1990, %v1983, 0
        %1997 = vmatprep.subr.bf16.mxu0 0
        %1998 = vmatpush1.bf16.msra.mxu0 %v1988
        %1999 = vmatprep.subr.bf16.mxu0 0
        %2000 = vmatpush1.bf16.msra.mxu0 0
        %2001 = vmatprep.subr.bf16.mxu0 0
        %2002 = vmatpush1.bf16.msra.mxu0 0
        %2003 = vmatprep.subr.bf16.mxu0 0
        %2004 = vmatpush1.bf16.msra.mxu0 0
        %2005 = vmatprep.subr.bf16.mxu0 0
        %2006 = vmatpush1.bf16.msra.mxu0 0
        %2007 = vmatprep.subr.bf16.mxu0 0
        %2008 = vmatpush1.bf16.msra.mxu0 0
        %2009 = vmatprep.subr.bf16.mxu0 0
        %2010 = vmatpush1.bf16.msra.mxu0 0
        %2011 = vmatprep.subr.bf16.mxu0 0
        %2012 = vmatpush1.bf16.msra.mxu0 0
        %2013 = vmatprep.subr.bf16.mxu0 0
        %2014 = vmatpush1.bf16.msra.mxu0 0
        %2015 = vmatprep.subr.bf16.mxu0 0
        %2016 = vmatpush1.bf16.msra.mxu0 0
        %2017 = vmatprep.subr.bf16.mxu0 0
        %2018 = vmatpush1.bf16.msra.mxu0 0
        %2019 = vmatprep.subr.bf16.mxu0 0
        %2020 = vmatpush1.bf16.msra.mxu0 0
        %2021 = vmatprep.subr.bf16.mxu0 0
        %2022 = vmatpush1.bf16.msra.mxu0 0
        %2023 = vmatprep.subr.bf16.mxu0 0
        %2024 = vmatpush1.bf16.msra.mxu0 0
        %2025 = vmatprep.subr.bf16.mxu0 0
        %2026 = vmatpush1.bf16.msra.mxu0 0
        %2027 = vmatprep.subr.bf16.mxu0 0
        %2028 = vmatpush1.bf16.msra.mxu0 0
        %2029 = vmatprep.mubr.bf16.mxu0 0
        %2030 = vmatmul.mubr.bf16.gmra.mrb[0].mxu0 %v1992
        %v2031 = vpop.f32.mrb[0].mxu0
        %v2032 = vadd.f32 0.0, %v2031
        %v2033 = vpop.f32.mrb[0].mxu0
        %v2034 = vpop.f32.mrb[0].mxu0
        %v2035 = vadd.f32 0.0, %v2034
        %v2036 = vpop.f32.mrb[0].mxu0
        %2037 = vmatprep.mubr.bf16.mxu0 0
        %2038 = vmatmul.mubr.bf16.gmra.mrb[0].mxu0 %v1995
        %v2039 = vpop.f32.mrb[0].mxu0
        %v2040 = vadd.f32 0.0, %v2039
        %v2041 = vpop.f32.mrb[0].mxu0
        %v2042 = vpop.f32.mrb[0].mxu0
        %v2043 = vadd.f32 0.0, %v2042
        %v2044 = vpop.f32.mrb[0].mxu0
        %2045 = vdwg.mxu0
        %v2048 = vunpack.c.l.b16 %v1644
        %v2049 = vunpack.c.l.b16 %v1645
        %v2050 = vpack.c.b16 %v2049, %v2048
        %v2053 = vsel %vm1990, %v1980, 0
        %v2056 = vsel %vm1990, %v1981, 0
        %2058 = vmatprep.subr.bf16.mxu0 0
        %2059 = vmatpush1.bf16.msra.mxu0 %v2050
        %2060 = vmatprep.subr.bf16.mxu0 0
        %2061 = vmatpush1.bf16.msra.mxu0 0
        %2062 = vmatprep.subr.bf16.mxu0 0
        %2063 = vmatpush1.bf16.msra.mxu0 0
        %2064 = vmatprep.subr.bf16.mxu0 0
        %2065 = vmatpush1.bf16.msra.mxu0 0
        %2066 = vmatprep.subr.bf16.mxu0 0
        %2067 = vmatpush1.bf16.msra.mxu0 0
        %2068 = vmatprep.subr.bf16.mxu0 0
        %2069 = vmatpush1.bf16.msra.mxu0 0
        %2070 = vmatprep.subr.bf16.mxu0 0
        %2071 = vmatpush1.bf16.msra.mxu0 0
        %2072 = vmatprep.subr.bf16.mxu0 0
        %2073 = vmatpush1.bf16.msra.mxu0 0
        %2074 = vmatprep.subr.bf16.mxu0 0
        %2075 = vmatpush1.bf16.msra.mxu0 0
        %2076 = vmatprep.subr.bf16.mxu0 0
        %2077 = vmatpush1.bf16.msra.mxu0 0
        %2078 = vmatprep.subr.bf16.mxu0 0
        %2079 = vmatpush1.bf16.msra.mxu0 0
        %2080 = vmatprep.subr.bf16.mxu0 0
        %2081 = vmatpush1.bf16.msra.mxu0 0
        %2082 = vmatprep.subr.bf16.mxu0 0
        %2083 = vmatpush1.bf16.msra.mxu0 0
        %2084 = vmatprep.subr.bf16.mxu0 0
        %2085 = vmatpush1.bf16.msra.mxu0 0
        %2086 = vmatprep.subr.bf16.mxu0 0
        %2087 = vmatpush1.bf16.msra.mxu0 0
        %2088 = vmatprep.subr.bf16.mxu0 0
        %2089 = vmatpush1.bf16.msra.mxu0 0
        %2090 = vmatprep.mubr.bf16.mxu0 0
        %2091 = vmatmul.mubr.bf16.gmra.mrb[0].mxu0 %v2053
        %v2092 = vpop.f32.mrb[0].mxu0
        %v2093 = vadd.f32 %v2032, %v2092
        %v2094 = vpop.f32.mrb[0].mxu0
        %v2095 = vpop.f32.mrb[0].mxu0
        %v2096 = vadd.f32 %v2035, %v2095
        %v2097 = vpop.f32.mrb[0].mxu0
        %2098 = vmatprep.mubr.bf16.mxu0 0
        %2099 = vmatmul.mubr.bf16.gmra.mrb[0].mxu0 %v2056
        %v2100 = vpop.f32.mrb[0].mxu0
        %v2101 = vadd.f32 %v2040, %v2100
        %v2102 = vpop.f32.mrb[0].mxu0
        %v2103 = vpop.f32.mrb[0].mxu0
        %v2104 = vadd.f32 %v2043, %v2103
        %v2105 = vpop.f32.mrb[0].mxu0
        %2106 = vdwg.mxu0
        %v2107 = vlaneseq
        %v2108 = vshrl.u32 %v2107, 7
        %v2109 = vsub.s32 0, %v2108
        %v2110 = vrot.slane %v1632, %v2109
        %v2111 = vadd.f32 %v2093, %v2110
        %v2112 = vadd.f32 %v2096, %v2110
        %v2113 = vadd.f32 %v2101, %v2110
        %v2114 = vadd.f32 %v2104, %v2110
        %vm2115 = vcmp.gt.f32.partialorder %v2111, 0.0
        %vm2116 = vcmp.gt.f32.partialorder %v2112, 0.0
        %vm2117 = vcmp.gt.f32.partialorder %v2113, 0.0
        %vm2118 = vcmp.gt.f32.partialorder %v2114, 0.0
        %v2119 = vmin.f32 %v2111, 0.0
        %v2120 = vmin.f32 %v2112, 0.0
        %v2121 = vmin.f32 %v2113, 0.0
        %v2122 = vmin.f32 %v2114, 0.0
        %v2123 = vmul.f32 %v2119, 1.442695
        %v2124 = vpow.pop %v2123
        %v2125 = vmul.f32 %v2120, 1.442695
        %v2126 = vpow.pop %v2125
        %v2127 = vmul.f32 %v2121, 1.442695
        %v2128 = vpow.pop %v2127
        %v2129 = vmul.f32 %v2122, 1.442695
        %v2130 = vpow.pop %v2129
        %v2131 = vsub.f32 %v2124, 1.0
        %v2132 = vsub.f32 %v2126, 1.0
        %v2133 = vsub.f32 %v2128, 1.0
        %v2134 = vsub.f32 %v2130, 1.0
        %v2135 = vmul.f32 %v2131, 1.6732632
        %v2136 = vmul.f32 %v2132, 1.6732632
        %v2137 = vmul.f32 %v2133, 1.6732632
        %v2138 = vmul.f32 %v2134, 1.6732632
        %v2139 = vsel %vm2115, %v2111, %v2135
        %v2140 = vsel %vm2116, %v2112, %v2136
        %v2141 = vsel %vm2117, %v2113, %v2137
        %v2142 = vsel %vm2118, %v2114, %v2138
        %v2143 = vmul.f32 %v2139, 1.050701
        %v2144 = vmul.f32 %v2140, 1.050701
        %v2145 = vmul.f32 %v2141, 1.050701
        %v2146 = vmul.f32 %v2142, 1.050701
        %v2147 = vshrl.u32 %v1980, 16
        %v2149 = vshll.u32 %v1980, 16
        %v2151 = vrot.slane %v2149, 1
        %v2152 = vor.u32 %v2147, %v2151
        %v2153 = vshll.u32 %v1981, 16
        %v2155 = vrot.slane %v2153, 1
        %v2156 = vsel %vm813, %v2152, %v2155
        %v2157 = vshrl.u32 %v1981, 16
        %v2159 = vor.u32 %v2157, %v2155
        %v2161 = vsel %vm1990, %v2156, 0
        %v2164 = vsel %vm1990, %v2159, 0
        %2166 = vmatprep.subr.bf16.mxu0 0
        %2167 = vmatpush1.bf16.msra.mxu0 %v1988
        %2168 = vmatprep.subr.bf16.mxu0 0
        %2169 = vmatpush1.bf16.msra.mxu0 0
        %2170 = vmatprep.subr.bf16.mxu0 0
        %2171 = vmatpush1.bf16.msra.mxu0 0
        %2172 = vmatprep.subr.bf16.mxu0 0
        %2173 = vmatpush1.bf16.msra.mxu0 0
        %2174 = vmatprep.subr.bf16.mxu0 0
        %2175 = vmatpush1.bf16.msra.mxu0 0
        %2176 = vmatprep.subr.bf16.mxu0 0
        %2177 = vmatpush1.bf16.msra.mxu0 0
        %2178 = vmatprep.subr.bf16.mxu0 0
        %2179 = vmatpush1.bf16.msra.mxu0 0
        %2180 = vmatprep.subr.bf16.mxu0 0
        %2181 = vmatpush1.bf16.msra.mxu0 0
        %2182 = vmatprep.subr.bf16.mxu0 0
        %2183 = vmatpush1.bf16.msra.mxu0 0
        %2184 = vmatprep.subr.bf16.mxu0 0
        %2185 = vmatpush1.bf16.msra.mxu0 0
        %2186 = vmatprep.subr.bf16.mxu0 0
        %2187 = vmatpush1.bf16.msra.mxu0 0
        %2188 = vmatprep.subr.bf16.mxu0 0
        %2189 = vmatpush1.bf16.msra.mxu0 0
        %2190 = vmatprep.subr.bf16.mxu0 0
        %2191 = vmatpush1.bf16.msra.mxu0 0
        %2192 = vmatprep.subr.bf16.mxu0 0
        %2193 = vmatpush1.bf16.msra.mxu0 0
        %2194 = vmatprep.subr.bf16.mxu0 0
        %2195 = vmatpush1.bf16.msra.mxu0 0
        %2196 = vmatprep.subr.bf16.mxu0 0
        %2197 = vmatpush1.bf16.msra.mxu0 0
        %2198 = vmatprep.mubr.bf16.mxu0 0
        %2199 = vmatmul.mubr.bf16.gmra.mrb[0].mxu0 %v2161
        %v2200 = vpop.f32.mrb[0].mxu0
        %v2201 = vadd.f32 0.0, %v2200
        %v2202 = vpop.f32.mrb[0].mxu0
        %v2203 = vpop.f32.mrb[0].mxu0
        %v2204 = vadd.f32 0.0, %v2203
        %v2205 = vpop.f32.mrb[0].mxu0
        %2206 = vmatprep.mubr.bf16.mxu0 0
        %2207 = vmatmul.mubr.bf16.gmra.mrb[0].mxu0 %v2164
        %v2208 = vpop.f32.mrb[0].mxu0
        %v2209 = vadd.f32 0.0, %v2208
        %v2210 = vpop.f32.mrb[0].mxu0
        %v2211 = vpop.f32.mrb[0].mxu0
        %v2212 = vadd.f32 0.0, %v2211
        %v2213 = vpop.f32.mrb[0].mxu0
        %2214 = vdwg.mxu0
        %2215 = vmatprep.subr.bf16.mxu0 0
        %2216 = vmatpush1.bf16.msra.mxu0 %v2050
        %2217 = vmatprep.subr.bf16.mxu0 0
        %2218 = vmatpush1.bf16.msra.mxu0 0
        %2219 = vmatprep.subr.bf16.mxu0 0
        %2220 = vmatpush1.bf16.msra.mxu0 0
        %2221 = vmatprep.subr.bf16.mxu0 0
        %2222 = vmatpush1.bf16.msra.mxu0 0
        %2223 = vmatprep.subr.bf16.mxu0 0
        %2224 = vmatpush1.bf16.msra.mxu0 0
        %2225 = vmatprep.subr.bf16.mxu0 0
        %2226 = vmatpush1.bf16.msra.mxu0 0
        %2227 = vmatprep.subr.bf16.mxu0 0
        %2228 = vmatpush1.bf16.msra.mxu0 0
        %2229 = vmatprep.subr.bf16.mxu0 0
        %2230 = vmatpush1.bf16.msra.mxu0 0
        %2231 = vmatprep.subr.bf16.mxu0 0
        %2232 = vmatpush1.bf16.msra.mxu0 0
        %2233 = vmatprep.subr.bf16.mxu0 0
        %2234 = vmatpush1.bf16.msra.mxu0 0
        %2235 = vmatprep.subr.bf16.mxu0 0
        %2236 = vmatpush1.bf16.msra.mxu0 0
        %2237 = vmatprep.subr.bf16.mxu0 0
        %2238 = vmatpush1.bf16.msra.mxu0 0
        %2239 = vmatprep.subr.bf16.mxu0 0
        %2240 = vmatpush1.bf16.msra.mxu0 0
        %2241 = vmatprep.subr.bf16.mxu0 0
        %2242 = vmatpush1.bf16.msra.mxu0 0
        %2243 = vmatprep.subr.bf16.mxu0 0
        %2244 = vmatpush1.bf16.msra.mxu0 0
        %2245 = vmatprep.subr.bf16.mxu0 0
        %2246 = vmatpush1.bf16.msra.mxu0 0
        %2247 = vmatprep.mubr.bf16.mxu0 0
        %2248 = vmatmul.mubr.bf16.gmra.mrb[0].mxu0 %v1992
        %v2249 = vpop.f32.mrb[0].mxu0
        %v2250 = vadd.f32 %v2201, %v2249
        %v2251 = vpop.f32.mrb[0].mxu0
        %v2252 = vpop.f32.mrb[0].mxu0
        %v2253 = vadd.f32 %v2204, %v2252
        %v2254 = vpop.f32.mrb[0].mxu0
        %2255 = vmatprep.mubr.bf16.mxu0 0
        %2256 = vmatmul.mubr.bf16.gmra.mrb[0].mxu0 %v1995
        %v2257 = vpop.f32.mrb[0].mxu0
        %v2258 = vadd.f32 %v2209, %v2257
        %v2259 = vpop.f32.mrb[0].mxu0
        %v2260 = vpop.f32.mrb[0].mxu0
        %v2261 = vadd.f32 %v2212, %v2260
        %v2262 = vpop.f32.mrb[0].mxu0
        %2263 = vdwg.mxu0
        %v2264 = vadd.f32 %v2250, %v2110
        %v2265 = vadd.f32 %v2253, %v2110
        %v2266 = vadd.f32 %v2258, %v2110
        %v2267 = vadd.f32 %v2261, %v2110
        %vm2268 = vcmp.gt.f32.partialorder %v2264, 0.0
        %vm2269 = vcmp.gt.f32.partialorder %v2265, 0.0
        %vm2270 = vcmp.gt.f32.partialorder %v2266, 0.0
        %vm2271 = vcmp.gt.f32.partialorder %v2267, 0.0
        %v2272 = vmin.f32 %v2264, 0.0
        %v2273 = vmin.f32 %v2265, 0.0
        %v2274 = vmin.f32 %v2266, 0.0
        %v2275 = vmin.f32 %v2267, 0.0
        %v2276 = vmul.f32 %v2272, 1.442695
        %v2277 = vpow.pop %v2276
        %v2278 = vmul.f32 %v2273, 1.442695
        %v2279 = vpow.pop %v2278
        %v2280 = vmul.f32 %v2274, 1.442695
        %v2281 = vpow.pop %v2280
        %v2282 = vmul.f32 %v2275, 1.442695
        %v2283 = vpow.pop %v2282
        %v2284 = vsub.f32 %v2277, 1.0
        %v2285 = vsub.f32 %v2279, 1.0
        %v2286 = vsub.f32 %v2281, 1.0
        %v2287 = vsub.f32 %v2283, 1.0
        %v2288 = vmul.f32 %v2284, 1.6732632
        %v2289 = vmul.f32 %v2285, 1.6732632
        %v2290 = vmul.f32 %v2286, 1.6732632
        %v2291 = vmul.f32 %v2287, 1.6732632
        %v2292 = vsel %vm2268, %v2264, %v2288
        %v2293 = vsel %vm2269, %v2265, %v2289
        %v2294 = vsel %vm2270, %v2266, %v2290
        %v2295 = vsel %vm2271, %v2267, %v2291
        %v2296 = vmul.f32 %v2292, 1.050701
        %v2297 = vmul.f32 %v2293, 1.050701
        %v2298 = vmul.f32 %v2294, 1.050701
        %v2299 = vmul.f32 %v2295, 1.050701
        %v2300 = vlaneseq
        %v2301 = vshrl.u32 %v2300, 7
        %v2302 = vsub.s32 0, %v2301
        %v2303 = vrot.slane %v1633, %v2302
        %v2304 = vmul.f32 %v2143, %v2303
        %v2305 = vmul.f32 %v2144, %v2303
        %v2306 = vmul.f32 %v2145, %v2303
        %v2307 = vmul.f32 %v2146, %v2303
        %v2308 = vlaneseq
        %v2309 = vshrl.u32 %v2308, 7
        %v2310 = vsub.s32 0, %v2309
        %v2311 = vrot.slane %v1634, %v2310
        %v2312 = vadd.f32 %v2304, %v2311
        %v2313 = vadd.f32 %v2305, %v2311
        %v2314 = vadd.f32 %v2306, %v2311
        %v2315 = vadd.f32 %v2307, %v2311
        %v2316 = vmul.f32 %v2296, %v2303
        %v2317 = vmul.f32 %v2297, %v2303
        %v2318 = vmul.f32 %v2298, %v2303
        %v2319 = vmul.f32 %v2299, %v2303
        %v2320 = vadd.f32 %v2316, %v2311
        %v2321 = vadd.f32 %v2317, %v2311
        %v2322 = vadd.f32 %v2318, %v2311
        %v2323 = vadd.f32 %v2319, %v2311
        %v2324 = vmax.f32 %v2312, %v2320
        %v2325 = vmax.f32 %v2313, %v2321
        %v2326 = vmax.f32 %v2314, %v2322
        %v2327 = vmax.f32 %v2315, %v2323
        %2328 = vst.msk [vmem:[#allocation3] sm:$0xff] %vm1990, %v2324
        %2329 = vst.msk [vmem:[#allocation3 + $0x8] sm:$0xff] %vm1990, %v2325
        %2330 = vst.msk [vmem:[#allocation3 + $0x10] sm:$0xff] %vm1990, %v2326
        %vm2331 = vcmask 128000
        %2332 = vst.msk [vmem:[#allocation3 + $0x18] sm:$0x3f] %vm2331, %v2327
        %v2333 = vld [vmem:[#allocation3] ss:$2 sm:$0xff]
        %s2334 = scalar_lea.vmem [#allocation3], 16
        %v2335 = vld [vmem:[%s2334] ss:$2 sm:$0x7f]
        %s2336 = scalar_lea.vmem [#allocation3], 1
        %v2337 = vld [vmem:[%s2336] ss:$2 sm:$0xff]
        %s2338 = scalar_lea.vmem [#allocation3], 17
        %v2339 = vld [vmem:[%s2338] ss:$2 sm:$0x7f]
        %v2340 = vld [vmem:[%s9] sm:$0x1]
        %v2341 = vld [vmem:[%s9 + $0x1] sm:$0x1]
        %v2342 = vld [vmem:[%s9 + $0x2] sm:$0x1]
        %v2343 = vld [vmem:[%s9 + $0x3] sm:$0x1]
        %v2344 = vld [vmem:[%s7] sm:$0xf]
        %v2345 = vld [vmem:[%s7 + $0x4] sm:$0xf]
        %s2346 = scalar_lea.vmem %s7, 8
        %v2347 = vld [vmem:[%s2346] sm:$0xf]
        %v2348 = vld [vmem:[%s2346 + $0x4] sm:$0xf]
        %v2349 = vld [vmem:[%s8] sm:$0xf]
        %v2350 = vld [vmem:[%s8 + $0x4] sm:$0xf]
        %s2351 = scalar_lea.vmem %s8, 8
        %v2352 = vld [vmem:[%s2351] sm:$0xf]
        %v2353 = vld [vmem:[%s2351 + $0x4] sm:$0xf]
        %v2354 = vpack.c.bf16 %v2335, %v2333
        %v2355 = vpack.c.bf16 %v2339, %v2337
        %v2358 = vunpack.c.l.b16 %v2347
        %v2359 = vunpack.c.l.b16 %v2348
        %v2360 = vpack.c.b16 %v2359, %v2358
        %v2363 = vsel %vm1990, %v2355, 0
        %2365 = vmatprep.subr.bf16.mxu0 0
        %2366 = vmatpush1.bf16.msra.mxu0 %v2360
        %2367 = vmatprep.subr.bf16.mxu0 0
        %2368 = vmatpush1.bf16.msra.mxu0 0
        %2369 = vmatprep.subr.bf16.mxu0 0
        %2370 = vmatpush1.bf16.msra.mxu0 0
        %2371 = vmatprep.subr.bf16.mxu0 0
        %2372 = vmatpush1.bf16.msra.mxu0 0
        %2373 = vmatprep.subr.bf16.mxu0 0
        %2374 = vmatpush1.bf16.msra.mxu0 0
        %2375 = vmatprep.subr.bf16.mxu0 0
        %2376 = vmatpush1.bf16.msra.mxu0 0
        %2377 = vmatprep.subr.bf16.mxu0 0
        %2378 = vmatpush1.bf16.msra.mxu0 0
        %2379 = vmatprep.subr.bf16.mxu0 0
        %2380 = vmatpush1.bf16.msra.mxu0 0
        %2381 = vmatprep.subr.bf16.mxu0 0
        %2382 = vmatpush1.bf16.msra.mxu0 0
        %2383 = vmatprep.subr.bf16.mxu0 0
        %2384 = vmatpush1.bf16.msra.mxu0 0
        %2385 = vmatprep.subr.bf16.mxu0 0
        %2386 = vmatpush1.bf16.msra.mxu0 0
        %2387 = vmatprep.subr.bf16.mxu0 0
        %2388 = vmatpush1.bf16.msra.mxu0 0
        %2389 = vmatprep.subr.bf16.mxu0 0
        %2390 = vmatpush1.bf16.msra.mxu0 0
        %2391 = vmatprep.subr.bf16.mxu0 0
        %2392 = vmatpush1.bf16.msra.mxu0 0
        %2393 = vmatprep.subr.bf16.mxu0 0
        %2394 = vmatpush1.bf16.msra.mxu0 0
        %2395 = vmatprep.subr.bf16.mxu0 0
        %2396 = vmatpush1.bf16.msra.mxu0 0
        %2397 = vmatprep.mubr.bf16.mxu0 0
        %2398 = vmatmul.mubr.bf16.gmra.mrb[0].mxu0 %v2363
        %v2399 = vpop.f32.mrb[0].mxu0
        %v2400 = vadd.f32 0.0, %v2399
        %v2401 = vpop.f32.mrb[0].mxu0
        %v2402 = vpop.f32.mrb[0].mxu0
        %v2403 = vadd.f32 0.0, %v2402
        %v2404 = vpop.f32.mrb[0].mxu0
        %2405 = vdwg.mxu0
        %v2408 = vunpack.c.l.b16 %v2344
        %v2409 = vunpack.c.l.b16 %v2345
        %v2410 = vpack.c.b16 %v2409, %v2408
        %v2413 = vsel %vm1990, %v2354, 0
        %2415 = vmatprep.subr.bf16.mxu0 0
        %2416 = vmatpush1.bf16.msra.mxu0 %v2410
        %2417 = vmatprep.subr.bf16.mxu0 0
        %2418 = vmatpush1.bf16.msra.mxu0 0
        %2419 = vmatprep.subr.bf16.mxu0 0
        %2420 = vmatpush1.bf16.msra.mxu0 0
        %2421 = vmatprep.subr.bf16.mxu0 0
        %2422 = vmatpush1.bf16.msra.mxu0 0
        %2423 = vmatprep.subr.bf16.mxu0 0
        %2424 = vmatpush1.bf16.msra.mxu0 0
        %2425 = vmatprep.subr.bf16.mxu0 0
        %2426 = vmatpush1.bf16.msra.mxu0 0
        %2427 = vmatprep.subr.bf16.mxu0 0
        %2428 = vmatpush1.bf16.msra.mxu0 0
        %2429 = vmatprep.subr.bf16.mxu0 0
        %2430 = vmatpush1.bf16.msra.mxu0 0
        %2431 = vmatprep.subr.bf16.mxu0 0
        %2432 = vmatpush1.bf16.msra.mxu0 0
        %2433 = vmatprep.subr.bf16.mxu0 0
        %2434 = vmatpush1.bf16.msra.mxu0 0
        %2435 = vmatprep.subr.bf16.mxu0 0
        %2436 = vmatpush1.bf16.msra.mxu0 0
        %2437 = vmatprep.subr.bf16.mxu0 0
        %2438 = vmatpush1.bf16.msra.mxu0 0
        %2439 = vmatprep.subr.bf16.mxu0 0
        %2440 = vmatpush1.bf16.msra.mxu0 0
        %2441 = vmatprep.subr.bf16.mxu0 0
        %2442 = vmatpush1.bf16.msra.mxu0 0
        %2443 = vmatprep.subr.bf16.mxu0 0
        %2444 = vmatpush1.bf16.msra.mxu0 0
        %2445 = vmatprep.subr.bf16.mxu0 0
        %2446 = vmatpush1.bf16.msra.mxu0 0
        %2447 = vmatprep.mubr.bf16.mxu0 0
        %2448 = vmatmul.mubr.bf16.gmra.mrb[0].mxu0 %v2413
        %v2449 = vpop.f32.mrb[0].mxu0
        %v2450 = vadd.f32 %v2400, %v2449
        %v2451 = vpop.f32.mrb[0].mxu0
        %v2452 = vpop.f32.mrb[0].mxu0
        %v2453 = vadd.f32 %v2403, %v2452
        %v2454 = vpop.f32.mrb[0].mxu0
        %2455 = vdwg.mxu0
        %v2456 = vlaneseq
        %v2457 = vshrl.u32 %v2456, 7
        %v2458 = vsub.s32 0, %v2457
        %v2459 = vrot.slane %v2340, %v2458
        %v2460 = vadd.f32 %v2450, %v2459
        %v2461 = vadd.f32 %v2453, %v2459
        %vm2462 = vcmp.gt.f32.partialorder %v2460, 0.0
        %vm2463 = vcmp.gt.f32.partialorder %v2461, 0.0
        %v2464 = vmin.f32 %v2460, 0.0
        %v2465 = vmin.f32 %v2461, 0.0
        %v2466 = vmul.f32 %v2464, 1.442695
        %v2467 = vpow.pop %v2466
        %v2468 = vmul.f32 %v2465, 1.442695
        %v2469 = vpow.pop %v2468
        %v2470 = vsub.f32 %v2467, 1.0
        %v2471 = vsub.f32 %v2469, 1.0
        %v2472 = vmul.f32 %v2470, 1.6732632
        %v2473 = vmul.f32 %v2471, 1.6732632
        %v2474 = vsel %vm2462, %v2460, %v2472
        %v2475 = vsel %vm2463, %v2461, %v2473
        %v2476 = vmul.f32 %v2474, 1.050701
        %v2477 = vmul.f32 %v2475, 1.050701
        %v2478 = vshrl.u32 %v2354, 16
        %v2480 = vshll.u32 %v2354, 16
        %v2482 = vrot.slane %v2480, 1
        %v2483 = vor.u32 %v2478, %v2482
        %v2485 = vsel %vm1990, %v2483, 0
        %2487 = vmatprep.subr.bf16.mxu0 0
        %2488 = vmatpush1.bf16.msra.mxu0 %v2360
        %2489 = vmatprep.subr.bf16.mxu0 0
        %2490 = vmatpush1.bf16.msra.mxu0 0
        %2491 = vmatprep.subr.bf16.mxu0 0
        %2492 = vmatpush1.bf16.msra.mxu0 0
        %2493 = vmatprep.subr.bf16.mxu0 0
        %2494 = vmatpush1.bf16.msra.mxu0 0
        %2495 = vmatprep.subr.bf16.mxu0 0
        %2496 = vmatpush1.bf16.msra.mxu0 0
        %2497 = vmatprep.subr.bf16.mxu0 0
        %2498 = vmatpush1.bf16.msra.mxu0 0
        %2499 = vmatprep.subr.bf16.mxu0 0
        %2500 = vmatpush1.bf16.msra.mxu0 0
        %2501 = vmatprep.subr.bf16.mxu0 0
        %2502 = vmatpush1.bf16.msra.mxu0 0
        %2503 = vmatprep.subr.bf16.mxu0 0
        %2504 = vmatpush1.bf16.msra.mxu0 0
        %2505 = vmatprep.subr.bf16.mxu0 0
        %2506 = vmatpush1.bf16.msra.mxu0 0
        %2507 = vmatprep.subr.bf16.mxu0 0
        %2508 = vmatpush1.bf16.msra.mxu0 0
        %2509 = vmatprep.subr.bf16.mxu0 0
        %2510 = vmatpush1.bf16.msra.mxu0 0
        %2511 = vmatprep.subr.bf16.mxu0 0
        %2512 = vmatpush1.bf16.msra.mxu0 0
        %2513 = vmatprep.subr.bf16.mxu0 0
        %2514 = vmatpush1.bf16.msra.mxu0 0
        %2515 = vmatprep.subr.bf16.mxu0 0
        %2516 = vmatpush1.bf16.msra.mxu0 0
        %2517 = vmatprep.subr.bf16.mxu0 0
        %2518 = vmatpush1.bf16.msra.mxu0 0
        %2519 = vmatprep.mubr.bf16.mxu0 0
        %2520 = vmatmul.mubr.bf16.gmra.mrb[0].mxu0 %v2485
        %v2521 = vpop.f32.mrb[0].mxu0
        %v2522 = vadd.f32 0.0, %v2521
        %v2523 = vpop.f32.mrb[0].mxu0
        %v2524 = vpop.f32.mrb[0].mxu0
        %v2525 = vadd.f32 0.0, %v2524
        %v2526 = vpop.f32.mrb[0].mxu0
        %2527 = vdwg.mxu0
        %2528 = vmatprep.subr.bf16.mxu0 0
        %2529 = vmatpush1.bf16.msra.mxu0 %v2410
        %2530 = vmatprep.subr.bf16.mxu0 0
        %2531 = vmatpush1.bf16.msra.mxu0 0
        %2532 = vmatprep.subr.bf16.mxu0 0
        %2533 = vmatpush1.bf16.msra.mxu0 0
        %2534 = vmatprep.subr.bf16.mxu0 0
        %2535 = vmatpush1.bf16.msra.mxu0 0
        %2536 = vmatprep.subr.bf16.mxu0 0
        %2537 = vmatpush1.bf16.msra.mxu0 0
        %2538 = vmatprep.subr.bf16.mxu0 0
        %2539 = vmatpush1.bf16.msra.mxu0 0
        %2540 = vmatprep.subr.bf16.mxu0 0
        %2541 = vmatpush1.bf16.msra.mxu0 0
        %2542 = vmatprep.subr.bf16.mxu0 0
        %2543 = vmatpush1.bf16.msra.mxu0 0
        %2544 = vmatprep.subr.bf16.mxu0 0
        %2545 = vmatpush1.bf16.msra.mxu0 0
        %2546 = vmatprep.subr.bf16.mxu0 0
        %2547 = vmatpush1.bf16.msra.mxu0 0
        %2548 = vmatprep.subr.bf16.mxu0 0
        %2549 = vmatpush1.bf16.msra.mxu0 0
        %2550 = vmatprep.subr.bf16.mxu0 0
        %2551 = vmatpush1.bf16.msra.mxu0 0
        %2552 = vmatprep.subr.bf16.mxu0 0
        %2553 = vmatpush1.bf16.msra.mxu0 0
        %2554 = vmatprep.subr.bf16.mxu0 0
        %2555 = vmatpush1.bf16.msra.mxu0 0
        %2556 = vmatprep.subr.bf16.mxu0 0
        %2557 = vmatpush1.bf16.msra.mxu0 0
        %2558 = vmatprep.subr.bf16.mxu0 0
        %2559 = vmatpush1.bf16.msra.mxu0 0
        %2560 = vmatprep.mubr.bf16.mxu0 0
        %2561 = vmatmul.mubr.bf16.gmra.mrb[0].mxu0 %v2363
        %v2562 = vpop.f32.mrb[0].mxu0
        %v2563 = vadd.f32 %v2522, %v2562
        %v2564 = vpop.f32.mrb[0].mxu0
        %v2565 = vpop.f32.mrb[0].mxu0
        %v2566 = vadd.f32 %v2525, %v2565
        %v2567 = vpop.f32.mrb[0].mxu0
        %2568 = vdwg.mxu0
        %v2569 = vadd.f32 %v2563, %v2459
        %v2570 = vadd.f32 %v2566, %v2459
        %vm2571 = vcmp.gt.f32.partialorder %v2569, 0.0
        %vm2572 = vcmp.gt.f32.partialorder %v2570, 0.0
        %v2573 = vmin.f32 %v2569, 0.0
        %v2574 = vmin.f32 %v2570, 0.0
        %v2575 = vmul.f32 %v2573, 1.442695
        %v2576 = vpow.pop %v2575
        %v2577 = vmul.f32 %v2574, 1.442695
        %v2578 = vpow.pop %v2577
        %v2579 = vsub.f32 %v2576, 1.0
        %v2580 = vsub.f32 %v2578, 1.0
        %v2581 = vmul.f32 %v2579, 1.6732632
        %v2582 = vmul.f32 %v2580, 1.6732632
        %v2583 = vsel %vm2571, %v2569, %v2581
        %v2584 = vsel %vm2572, %v2570, %v2582
        %v2585 = vmul.f32 %v2583, 1.050701
        %v2586 = vmul.f32 %v2584, 1.050701
        %v2587 = vpack.c.bf16 %v2477, %v2476
        %v2588 = vpack.c.bf16 %v2586, %v2585
        %v2591 = vunpack.c.l.b16 %v2352
        %v2592 = vunpack.c.l.b16 %v2353
        %v2593 = vpack.c.b16 %v2592, %v2591
        %v2596 = vsel %vm1990, %v2588, 0
        %2598 = vmatprep.subr.bf16.mxu0 0
        %2599 = vmatpush1.bf16.msra.mxu0 %v2593
        %2600 = vmatprep.subr.bf16.mxu0 0
        %2601 = vmatpush1.bf16.msra.mxu0 0
        %2602 = vmatprep.subr.bf16.mxu0 0
        %2603 = vmatpush1.bf16.msra.mxu0 0
        %2604 = vmatprep.subr.bf16.mxu0 0
        %2605 = vmatpush1.bf16.msra.mxu0 0
        %2606 = vmatprep.subr.bf16.mxu0 0
        %2607 = vmatpush1.bf16.msra.mxu0 0
        %2608 = vmatprep.subr.bf16.mxu0 0
        %2609 = vmatpush1.bf16.msra.mxu0 0
        %2610 = vmatprep.subr.bf16.mxu0 0
        %2611 = vmatpush1.bf16.msra.mxu0 0
        %2612 = vmatprep.subr.bf16.mxu0 0
        %2613 = vmatpush1.bf16.msra.mxu0 0
        %2614 = vmatprep.subr.bf16.mxu0 0
        %2615 = vmatpush1.bf16.msra.mxu0 0
        %2616 = vmatprep.subr.bf16.mxu0 0
        %2617 = vmatpush1.bf16.msra.mxu0 0
        %2618 = vmatprep.subr.bf16.mxu0 0
        %2619 = vmatpush1.bf16.msra.mxu0 0
        %2620 = vmatprep.subr.bf16.mxu0 0
        %2621 = vmatpush1.bf16.msra.mxu0 0
        %2622 = vmatprep.subr.bf16.mxu0 0
        %2623 = vmatpush1.bf16.msra.mxu0 0
        %2624 = vmatprep.subr.bf16.mxu0 0
        %2625 = vmatpush1.bf16.msra.mxu0 0
        %2626 = vmatprep.subr.bf16.mxu0 0
        %2627 = vmatpush1.bf16.msra.mxu0 0
        %2628 = vmatprep.subr.bf16.mxu0 0
        %2629 = vmatpush1.bf16.msra.mxu0 0
        %2630 = vmatprep.mubr.bf16.mxu0 0
        %2631 = vmatmul.mubr.bf16.gmra.mrb[0].mxu0 %v2596
        %v2632 = vpop.f32.mrb[0].mxu0
        %v2633 = vadd.f32 0.0, %v2632
        %v2634 = vpop.f32.mrb[0].mxu0
        %v2635 = vpop.f32.mrb[0].mxu0
        %v2636 = vadd.f32 0.0, %v2635
        %v2637 = vpop.f32.mrb[0].mxu0
        %2638 = vdwg.mxu0
        %v2641 = vunpack.c.l.b16 %v2349
        %v2642 = vunpack.c.l.b16 %v2350
        %v2643 = vpack.c.b16 %v2642, %v2641
        %v2646 = vsel %vm1990, %v2587, 0
        %2648 = vmatprep.subr.bf16.mxu0 0
        %2649 = vmatpush1.bf16.msra.mxu0 %v2643
        %2650 = vmatprep.subr.bf16.mxu0 0
        %2651 = vmatpush1.bf16.msra.mxu0 0
        %2652 = vmatprep.subr.bf16.mxu0 0
        %2653 = vmatpush1.bf16.msra.mxu0 0
        %2654 = vmatprep.subr.bf16.mxu0 0
        %2655 = vmatpush1.bf16.msra.mxu0 0
        %2656 = vmatprep.subr.bf16.mxu0 0
        %2657 = vmatpush1.bf16.msra.mxu0 0
        %2658 = vmatprep.subr.bf16.mxu0 0
        %2659 = vmatpush1.bf16.msra.mxu0 0
        %2660 = vmatprep.subr.bf16.mxu0 0
        %2661 = vmatpush1.bf16.msra.mxu0 0
        %2662 = vmatprep.subr.bf16.mxu0 0
        %2663 = vmatpush1.bf16.msra.mxu0 0
        %2664 = vmatprep.subr.bf16.mxu0 0
        %2665 = vmatpush1.bf16.msra.mxu0 0
        %2666 = vmatprep.subr.bf16.mxu0 0
        %2667 = vmatpush1.bf16.msra.mxu0 0
        %2668 = vmatprep.subr.bf16.mxu0 0
        %2669 = vmatpush1.bf16.msra.mxu0 0
        %2670 = vmatprep.subr.bf16.mxu0 0
        %2671 = vmatpush1.bf16.msra.mxu0 0
        %2672 = vmatprep.subr.bf16.mxu0 0
        %2673 = vmatpush1.bf16.msra.mxu0 0
        %2674 = vmatprep.subr.bf16.mxu0 0
        %2675 = vmatpush1.bf16.msra.mxu0 0
        %2676 = vmatprep.subr.bf16.mxu0 0
        %2677 = vmatpush1.bf16.msra.mxu0 0
        %2678 = vmatprep.subr.bf16.mxu0 0
        %2679 = vmatpush1.bf16.msra.mxu0 0
        %2680 = vmatprep.mubr.bf16.mxu0 0
        %2681 = vmatmul.mubr.bf16.gmra.mrb[0].mxu0 %v2646
        %v2682 = vpop.f32.mrb[0].mxu0
        %v2683 = vadd.f32 %v2633, %v2682
        %v2684 = vpop.f32.mrb[0].mxu0
        %v2685 = vpop.f32.mrb[0].mxu0
        %v2686 = vadd.f32 %v2636, %v2685
        %v2687 = vpop.f32.mrb[0].mxu0
        %2688 = vdwg.mxu0
        %v2689 = vlaneseq
        %v2690 = vshrl.u32 %v2689, 7
        %v2691 = vsub.s32 0, %v2690
        %v2692 = vrot.slane %v2341, %v2691
        %v2693 = vadd.f32 %v2683, %v2692
        %v2694 = vadd.f32 %v2686, %v2692
        %vm2695 = vcmp.gt.f32.partialorder %v2693, 0.0
        %vm2696 = vcmp.gt.f32.partialorder %v2694, 0.0
        %v2697 = vmin.f32 %v2693, 0.0
        %v2698 = vmin.f32 %v2694, 0.0
        %v2699 = vmul.f32 %v2697, 1.442695
        %v2700 = vpow.pop %v2699
        %v2701 = vmul.f32 %v2698, 1.442695
        %v2702 = vpow.pop %v2701
        %v2703 = vsub.f32 %v2700, 1.0
        %v2704 = vsub.f32 %v2702, 1.0
        %v2705 = vmul.f32 %v2703, 1.6732632
        %v2706 = vmul.f32 %v2704, 1.6732632
        %v2707 = vsel %vm2695, %v2693, %v2705
        %v2708 = vsel %vm2696, %v2694, %v2706
        %v2709 = vmul.f32 %v2707, 1.050701
        %v2710 = vmul.f32 %v2708, 1.050701
        %v2711 = vshrl.u32 %v2587, 16
        %v2713 = vshll.u32 %v2587, 16
        %v2715 = vrot.slane %v2713, 1
        %v2716 = vor.u32 %v2711, %v2715
        %v2718 = vsel %vm1990, %v2716, 0
        %2720 = vmatprep.subr.bf16.mxu0 0
        %2721 = vmatpush1.bf16.msra.mxu0 %v2593
        %2722 = vmatprep.subr.bf16.mxu0 0
        %2723 = vmatpush1.bf16.msra.mxu0 0
        %2724 = vmatprep.subr.bf16.mxu0 0
        %2725 = vmatpush1.bf16.msra.mxu0 0
        %2726 = vmatprep.subr.bf16.mxu0 0
        %2727 = vmatpush1.bf16.msra.mxu0 0
        %2728 = vmatprep.subr.bf16.mxu0 0
        %2729 = vmatpush1.bf16.msra.mxu0 0
        %2730 = vmatprep.subr.bf16.mxu0 0
        %2731 = vmatpush1.bf16.msra.mxu0 0
        %2732 = vmatprep.subr.bf16.mxu0 0
        %2733 = vmatpush1.bf16.msra.mxu0 0
        %2734 = vmatprep.subr.bf16.mxu0 0
        %2735 = vmatpush1.bf16.msra.mxu0 0
        %2736 = vmatprep.subr.bf16.mxu0 0
        %2737 = vmatpush1.bf16.msra.mxu0 0
        %2738 = vmatprep.subr.bf16.mxu0 0
        %2739 = vmatpush1.bf16.msra.mxu0 0
        %2740 = vmatprep.subr.bf16.mxu0 0
        %2741 = vmatpush1.bf16.msra.mxu0 0
        %2742 = vmatprep.subr.bf16.mxu0 0
        %2743 = vmatpush1.bf16.msra.mxu0 0
        %2744 = vmatprep.subr.bf16.mxu0 0
        %2745 = vmatpush1.bf16.msra.mxu0 0
        %2746 = vmatprep.subr.bf16.mxu0 0
        %2747 = vmatpush1.bf16.msra.mxu0 0
        %2748 = vmatprep.subr.bf16.mxu0 0
        %2749 = vmatpush1.bf16.msra.mxu0 0
        %2750 = vmatprep.subr.bf16.mxu0 0
        %2751 = vmatpush1.bf16.msra.mxu0 0
        %2752 = vmatprep.mubr.bf16.mxu0 0
        %2753 = vmatmul.mubr.bf16.gmra.mrb[0].mxu0 %v2718
        %v2754 = vpop.f32.mrb[0].mxu0
        %v2755 = vadd.f32 0.0, %v2754
        %v2756 = vpop.f32.mrb[0].mxu0
        %v2757 = vpop.f32.mrb[0].mxu0
        %v2758 = vadd.f32 0.0, %v2757
        %v2759 = vpop.f32.mrb[0].mxu0
        %2760 = vdwg.mxu0
        %2761 = vmatprep.subr.bf16.mxu0 0
        %2762 = vmatpush1.bf16.msra.mxu0 %v2643
        %2763 = vmatprep.subr.bf16.mxu0 0
        %2764 = vmatpush1.bf16.msra.mxu0 0
        %2765 = vmatprep.subr.bf16.mxu0 0
        %2766 = vmatpush1.bf16.msra.mxu0 0
        %2767 = vmatprep.subr.bf16.mxu0 0
        %2768 = vmatpush1.bf16.msra.mxu0 0
        %2769 = vmatprep.subr.bf16.mxu0 0
        %2770 = vmatpush1.bf16.msra.mxu0 0
        %2771 = vmatprep.subr.bf16.mxu0 0
        %2772 = vmatpush1.bf16.msra.mxu0 0
        %2773 = vmatprep.subr.bf16.mxu0 0
        %2774 = vmatpush1.bf16.msra.mxu0 0
        %2775 = vmatprep.subr.bf16.mxu0 0
        %2776 = vmatpush1.bf16.msra.mxu0 0
        %2777 = vmatprep.subr.bf16.mxu0 0
        %2778 = vmatpush1.bf16.msra.mxu0 0
        %2779 = vmatprep.subr.bf16.mxu0 0
        %2780 = vmatpush1.bf16.msra.mxu0 0
        %2781 = vmatprep.subr.bf16.mxu0 0
        %2782 = vmatpush1.bf16.msra.mxu0 0
        %2783 = vmatprep.subr.bf16.mxu0 0
        %2784 = vmatpush1.bf16.msra.mxu0 0
        %2785 = vmatprep.subr.bf16.mxu0 0
        %2786 = vmatpush1.bf16.msra.mxu0 0
        %2787 = vmatprep.subr.bf16.mxu0 0
        %2788 = vmatpush1.bf16.msra.mxu0 0
        %2789 = vmatprep.subr.bf16.mxu0 0
        %2790 = vmatpush1.bf16.msra.mxu0 0
        %2791 = vmatprep.subr.bf16.mxu0 0
        %2792 = vmatpush1.bf16.msra.mxu0 0
        %2793 = vmatprep.mubr.bf16.mxu0 0
        %2794 = vmatmul.mubr.bf16.gmra.mrb[0].mxu0 %v2596
        %v2795 = vpop.f32.mrb[0].mxu0
        %v2796 = vadd.f32 %v2755, %v2795
        %v2797 = vpop.f32.mrb[0].mxu0
        %v2798 = vpop.f32.mrb[0].mxu0
        %v2799 = vadd.f32 %v2758, %v2798
        %v2800 = vpop.f32.mrb[0].mxu0
        %2801 = vdwg.mxu0
        %v2802 = vadd.f32 %v2796, %v2692
        %v2803 = vadd.f32 %v2799, %v2692
        %vm2804 = vcmp.gt.f32.partialorder %v2802, 0.0
        %vm2805 = vcmp.gt.f32.partialorder %v2803, 0.0
        %v2806 = vmin.f32 %v2802, 0.0
        %v2807 = vmin.f32 %v2803, 0.0
        %v2808 = vmul.f32 %v2806, 1.442695
        %v2809 = vpow.pop %v2808
        %v2810 = vmul.f32 %v2807, 1.442695
        %v2811 = vpow.pop %v2810
        %v2812 = vsub.f32 %v2809, 1.0
        %v2813 = vsub.f32 %v2811, 1.0
        %v2814 = vmul.f32 %v2812, 1.6732632
        %v2815 = vmul.f32 %v2813, 1.6732632
        %v2816 = vsel %vm2804, %v2802, %v2814
        %v2817 = vsel %vm2805, %v2803, %v2815
        %v2818 = vmul.f32 %v2816, 1.050701
        %v2819 = vmul.f32 %v2817, 1.050701
        %v2820 = vlaneseq
        %v2821 = vshrl.u32 %v2820, 7
        %v2822 = vsub.s32 0, %v2821
        %v2823 = vrot.slane %v2342, %v2822
        %v2824 = vmul.f32 %v2709, %v2823
        %v2825 = vmul.f32 %v2710, %v2823
        %v2826 = vlaneseq
        %v2827 = vshrl.u32 %v2826, 7
        %v2828 = vsub.s32 0, %v2827
        %v2829 = vrot.slane %v2343, %v2828
        %v2830 = vadd.f32 %v2824, %v2829
        %v2831 = vadd.f32 %v2825, %v2829
        %v2832 = vmul.f32 %v2818, %v2823
        %v2833 = vmul.f32 %v2819, %v2823
        %v2834 = vadd.f32 %v2832, %v2829
        %v2835 = vadd.f32 %v2833, %v2829
        %v2836 = vmax.f32 %v2830, %v2834
        %v2837 = vmax.f32 %v2831, %v2835
        %v2838 = vpack.c.bf16 %v2837, %v2836
        %v2840 = vcombine.high %v2838, %v2838
        %v2842 = vunpack.c.l.s4 1966171168
        %v2843 = vunpack.c.0.s8 %v2842
        %v2844 = vlaneseq
        %v2845 = vshrl.u32 %v2844, 7
        %v2846 = vsub.s32 %v2843, %v2845
        %v2847 = vrot.slane %v2838, %v2846
        %v2849 = vunpack.c.l.s4 1966171168
        %v2850 = vunpack.c.0.s8 %v2849
        %v2851 = vlaneseq
        %v2852 = vshrl.u32 %v2851, 7
        %v2853 = vsub.s32 %v2850, %v2852
        %v2854 = vrot.slane %v2840, %v2853
        %v2855 = vcombine.high %v2847, %v2847
        %v2856 = vcombine.high %v2854, %v2854
        %v2858 = vunpack.c.l.s4 1966171168
        %v2859 = vunpack.c.0.s8 %v2858
        %v2860 = vlaneseq
        %v2861 = vshrl.u32 %v2860, 7
        %v2862 = vsub.s32 %v2859, %v2861
        %v2863 = vrot.slane %v2847, %v2862
        %v2865 = vunpack.c.l.s4 1966171168
        %v2866 = vunpack.c.0.s8 %v2865
        %v2867 = vlaneseq
        %v2868 = vshrl.u32 %v2867, 7
        %v2869 = vsub.s32 %v2866, %v2868
        %v2870 = vrot.slane %v2854, %v2869
        %v2872 = vunpack.c.l.s4 1966171168
        %v2873 = vunpack.c.0.s8 %v2872
        %v2874 = vlaneseq
        %v2875 = vshrl.u32 %v2874, 7
        %v2876 = vsub.s32 %v2873, %v2875
        %v2877 = vrot.slane %v2855, %v2876
        %v2879 = vunpack.c.l.s4 1966171168
        %v2880 = vunpack.c.0.s8 %v2879
        %v2881 = vlaneseq
        %v2882 = vshrl.u32 %v2881, 7
        %v2883 = vsub.s32 %v2880, %v2882
        %v2884 = vrot.slane %v2856, %v2883
        %v2885 = vcombine.high %v2863, %v2863
        %v2886 = vcombine.high %v2870, %v2870
        %v2887 = vcombine.high %v2877, %v2877
        %v2888 = vunpack.i.l.s16 %v2863
        %v2889 = vunpack.i.h.s16 %v2863
        %v2890 = vunpack.i.l.s16 %v2877
        %v2891 = vunpack.i.h.s16 %v2877
        %v2892 = vunpack.i.l.s16 %v2885
        %v2893 = vunpack.i.h.s16 %v2885
        %v2894 = vunpack.i.l.s16 %v2887
        %v2895 = vunpack.i.h.s16 %v2887
        %v2896 = vunpack.i.l.s16 %v2870
        %v2897 = vunpack.i.h.s16 %v2870
        %v2898 = vunpack.i.l.s16 %v2884
        %v2899 = vunpack.i.h.s16 %v2884
        %v2900 = vunpack.i.l.s16 %v2886
        %v2901 = vunpack.i.h.s16 %v2886
        %v2902 = vld [vmem:[%s10] sm:$0xff]
        %v2903 = vld [vmem:[%s10 + $0x8] sm:$0xff]
        %v2904 = vld [vmem:[%s10 + $0x10] sm:$0xff]
        %v2905 = vld [vmem:[%s10 + $0x18] sm:$0xff]
        %v2906 = vld [vmem:[%s10 + $0x20] sm:$0xff]
        %v2907 = vld [vmem:[%s10 + $0x28] sm:$0xff]
        %v2908 = vld [vmem:[%s10 + $0x30] sm:$0xff]
        %v2909 = vld [vmem:[%s10 + $0x38] sm:$0xff]
        %v2910 = vld [vmem:[%s10 + $0x40] sm:$0xff]
        %v2911 = vld [vmem:[%s10 + $0x48] sm:$0xff]
        %v2912 = vld [vmem:[%s10 + $0x50] sm:$0xff]
        %v2913 = vld [vmem:[%s10 + $0x58] sm:$0xff]
        %v2914 = vld [vmem:[%s10 + $0x60] sm:$0xff]
        %v2915 = vld [vmem:[%s10 + $0x68] sm:$0xff]
        %v2916 = vld [vmem:[%s10 + $0x70] sm:$0xff]
        %v2917 = vld [vmem:[%s10 + $0x78] sm:$0xff]
        %v2918 = vld [vmem:[%s10 + $0x80] sm:$0xff]
        %v2919 = vld [vmem:[%s10 + $0x88] sm:$0xff]
        %v2920 = vld [vmem:[%s10 + $0x90] sm:$0xff]
        %v2921 = vld [vmem:[%s10 + $0x98] sm:$0xff]
        %v2922 = vld [vmem:[%s10 + $0xa0] sm:$0xff]
        %v2923 = vld [vmem:[%s10 + $0xa8] sm:$0xff]
        %v2924 = vld [vmem:[%s10 + $0xb0] sm:$0xff]
        %v2925 = vld [vmem:[%s10 + $0xb8] sm:$0xff]
        %v2926 = vld [vmem:[%s10 + $0xc0] sm:$0xff]
        %v2927 = vld [vmem:[%s10 + $0xc8] sm:$0xff]
        %v2928 = vld [vmem:[%s10 + $0xd0] sm:$0xff]
        %v2929 = vld [vmem:[%s10 + $0xd8] sm:$0xff]
        %v2930 = vpack.i.b16 %v2888, %v2888
        %v2931 = vlaneseq
        %v2932 = vshrl.u32 %v2931, 7
        %v2933 = vsub.s32 0, %v2932
        %v2934 = vrot.slane %v2930, %v2933
        %v2937 = vunpack.c.l.b16 %v2902
        %v2938 = vunpack.c.h.b16 %v2902
        %v2939 = vunpack.c.l.b16 %v2903
        %v2940 = vunpack.c.h.b16 %v2903
        %v2941 = vpack.c.b16 %v2939, %v2937
        %v2942 = vpack.c.b16 %v2940, %v2938
        %v2946 = vsel %vm1990, %v2934, 0
        %2948 = vmatprep.subr.bf16.mxu0 %v2942
        %2949 = vmatpush1.bf16.msra.mxu0 %v2941
        %2950 = vmatprep.subr.bf16.mxu0 0
        %2951 = vmatpush1.bf16.msra.mxu0 0
        %2952 = vmatprep.subr.bf16.mxu0 0
        %2953 = vmatpush1.bf16.msra.mxu0 0
        %2954 = vmatprep.subr.bf16.mxu0 0
        %2955 = vmatpush1.bf16.msra.mxu0 0
        %2956 = vmatprep.subr.bf16.mxu0 0
        %2957 = vmatpush1.bf16.msra.mxu0 0
        %2958 = vmatprep.subr.bf16.mxu0 0
        %2959 = vmatpush1.bf16.msra.mxu0 0
        %2960 = vmatprep.subr.bf16.mxu0 0
        %2961 = vmatpush1.bf16.msra.mxu0 0
        %2962 = vmatprep.subr.bf16.mxu0 0
        %2963 = vmatpush1.bf16.msra.mxu0 0
        %2964 = vmatprep.subr.bf16.mxu0 0
        %2965 = vmatpush1.bf16.msra.mxu0 0
        %2966 = vmatprep.subr.bf16.mxu0 0
        %2967 = vmatpush1.bf16.msra.mxu0 0
        %2968 = vmatprep.subr.bf16.mxu0 0
        %2969 = vmatpush1.bf16.msra.mxu0 0
        %2970 = vmatprep.subr.bf16.mxu0 0
        %2971 = vmatpush1.bf16.msra.mxu0 0
        %2972 = vmatprep.subr.bf16.mxu0 0
        %2973 = vmatpush1.bf16.msra.mxu0 0
        %2974 = vmatprep.subr.bf16.mxu0 0
        %2975 = vmatpush1.bf16.msra.mxu0 0
        %2976 = vmatprep.subr.bf16.mxu0 0
        %2977 = vmatpush1.bf16.msra.mxu0 0
        %2978 = vmatprep.subr.bf16.mxu0 0
        %2979 = vmatpush1.bf16.msra.mxu0 0
        %2980 = vmatprep.mubr.bf16.mxu0 0
        %2981 = vmatmul.mubr.bf16.gmra.mrb[0].mxu0 %v2946
        %v2982 = vpop.f32.mrb[0].mxu0
        %v2983 = vadd.f32 0.0, %v2982
        %v2984 = vpop.f32.mrb[0].mxu0
        %v2985 = vadd.f32 0.0, %v2984
        %v2986 = vpop.f32.mrb[0].mxu0
        %v2987 = vpop.f32.mrb[0].mxu0
        %2988 = vdwg.mxu0
        %v2989 = vpack.i.b16 %v2889, %v2889
        %v2990 = vlaneseq
        %v2991 = vshrl.u32 %v2990, 7
        %v2992 = vsub.s32 0, %v2991
        %v2993 = vrot.slane %v2989, %v2992
        %v2996 = vunpack.c.l.b16 %v2904
        %v2997 = vunpack.c.h.b16 %v2904
        %v2998 = vunpack.c.l.b16 %v2905
        %v2999 = vunpack.c.h.b16 %v2905
        %v3000 = vpack.c.b16 %v2998, %v2996
        %v3001 = vpack.c.b16 %v2999, %v2997
        %v3005 = vsel %vm1990, %v2993, 0
        %3007 = vmatprep.subr.bf16.mxu0 %v3001
        %3008 = vmatpush1.bf16.msra.mxu0 %v3000
        %3009 = vmatprep.subr.bf16.mxu0 0
        %3010 = vmatpush1.bf16.msra.mxu0 0
        %3011 = vmatprep.subr.bf16.mxu0 0
        %3012 = vmatpush1.bf16.msra.mxu0 0
        %3013 = vmatprep.subr.bf16.mxu0 0
        %3014 = vmatpush1.bf16.msra.mxu0 0
        %3015 = vmatprep.subr.bf16.mxu0 0
        %3016 = vmatpush1.bf16.msra.mxu0 0
        %3017 = vmatprep.subr.bf16.mxu0 0
        %3018 = vmatpush1.bf16.msra.mxu0 0
        %3019 = vmatprep.subr.bf16.mxu0 0
        %3020 = vmatpush1.bf16.msra.mxu0 0
        %3021 = vmatprep.subr.bf16.mxu0 0
        %3022 = vmatpush1.bf16.msra.mxu0 0
        %3023 = vmatprep.subr.bf16.mxu0 0
        %3024 = vmatpush1.bf16.msra.mxu0 0
        %3025 = vmatprep.subr.bf16.mxu0 0
        %3026 = vmatpush1.bf16.msra.mxu0 0
        %3027 = vmatprep.subr.bf16.mxu0 0
        %3028 = vmatpush1.bf16.msra.mxu0 0
        %3029 = vmatprep.subr.bf16.mxu0 0
        %3030 = vmatpush1.bf16.msra.mxu0 0
        %3031 = vmatprep.subr.bf16.mxu0 0
        %3032 = vmatpush1.bf16.msra.mxu0 0
        %3033 = vmatprep.subr.bf16.mxu0 0
        %3034 = vmatpush1.bf16.msra.mxu0 0
        %3035 = vmatprep.subr.bf16.mxu0 0
        %3036 = vmatpush1.bf16.msra.mxu0 0
        %3037 = vmatprep.subr.bf16.mxu0 0
        %3038 = vmatpush1.bf16.msra.mxu0 0
        %3039 = vmatprep.mubr.bf16.mxu0 0
        %3040 = vmatmul.mubr.bf16.gmra.mrb[0].mxu0 %v3005
        %v3041 = vpop.f32.mrb[0].mxu0
        %v3042 = vadd.f32 0.0, %v3041
        %v3043 = vpop.f32.mrb[0].mxu0
        %v3044 = vadd.f32 0.0, %v3043
        %v3045 = vpop.f32.mrb[0].mxu0
        %v3046 = vpop.f32.mrb[0].mxu0
        %3047 = vdwg.mxu0
        %v3048 = vpack.i.b16 %v2890, %v2890
        %v3049 = vlaneseq
        %v3050 = vshrl.u32 %v3049, 7
        %v3051 = vsub.s32 0, %v3050
        %v3052 = vrot.slane %v3048, %v3051
        %v3055 = vunpack.c.l.b16 %v2906
        %v3056 = vunpack.c.h.b16 %v2906
        %v3057 = vunpack.c.l.b16 %v2907
        %v3058 = vunpack.c.h.b16 %v2907
        %v3059 = vpack.c.b16 %v3057, %v3055
        %v3060 = vpack.c.b16 %v3058, %v3056
        %v3064 = vsel %vm1990, %v3052, 0
        %3066 = vmatprep.subr.bf16.mxu0 %v3060
        %3067 = vmatpush1.bf16.msra.mxu0 %v3059
        %3068 = vmatprep.subr.bf16.mxu0 0
        %3069 = vmatpush1.bf16.msra.mxu0 0
        %3070 = vmatprep.subr.bf16.mxu0 0
        %3071 = vmatpush1.bf16.msra.mxu0 0
        %3072 = vmatprep.subr.bf16.mxu0 0
        %3073 = vmatpush1.bf16.msra.mxu0 0
        %3074 = vmatprep.subr.bf16.mxu0 0
        %3075 = vmatpush1.bf16.msra.mxu0 0
        %3076 = vmatprep.subr.bf16.mxu0 0
        %3077 = vmatpush1.bf16.msra.mxu0 0
        %3078 = vmatprep.subr.bf16.mxu0 0
        %3079 = vmatpush1.bf16.msra.mxu0 0
        %3080 = vmatprep.subr.bf16.mxu0 0
        %3081 = vmatpush1.bf16.msra.mxu0 0
        %3082 = vmatprep.subr.bf16.mxu0 0
        %3083 = vmatpush1.bf16.msra.mxu0 0
        %3084 = vmatprep.subr.bf16.mxu0 0
        %3085 = vmatpush1.bf16.msra.mxu0 0
        %3086 = vmatprep.subr.bf16.mxu0 0
        %3087 = vmatpush1.bf16.msra.mxu0 0
        %3088 = vmatprep.subr.bf16.mxu0 0
        %3089 = vmatpush1.bf16.msra.mxu0 0
        %3090 = vmatprep.subr.bf16.mxu0 0
        %3091 = vmatpush1.bf16.msra.mxu0 0
        %3092 = vmatprep.subr.bf16.mxu0 0
        %3093 = vmatpush1.bf16.msra.mxu0 0
        %3094 = vmatprep.subr.bf16.mxu0 0
        %3095 = vmatpush1.bf16.msra.mxu0 0
        %3096 = vmatprep.subr.bf16.mxu0 0
        %3097 = vmatpush1.bf16.msra.mxu0 0
        %3098 = vmatprep.mubr.bf16.mxu0 0
        %3099 = vmatmul.mubr.bf16.gmra.mrb[0].mxu0 %v3064
        %v3100 = vpop.f32.mrb[0].mxu0
        %v3101 = vadd.f32 0.0, %v3100
        %v3102 = vpop.f32.mrb[0].mxu0
        %v3103 = vadd.f32 0.0, %v3102
        %v3104 = vpop.f32.mrb[0].mxu0
        %v3105 = vpop.f32.mrb[0].mxu0
        %3106 = vdwg.mxu0
        %v3107 = vpack.i.b16 %v2891, %v2891
        %v3108 = vlaneseq
        %v3109 = vshrl.u32 %v3108, 7
        %v3110 = vsub.s32 0, %v3109
        %v3111 = vrot.slane %v3107, %v3110
        %v3114 = vunpack.c.l.b16 %v2908
        %v3115 = vunpack.c.h.b16 %v2908
        %v3116 = vunpack.c.l.b16 %v2909
        %v3117 = vunpack.c.h.b16 %v2909
        %v3118 = vpack.c.b16 %v3116, %v3114
        %v3119 = vpack.c.b16 %v3117, %v3115
        %v3123 = vsel %vm1990, %v3111, 0
        %3125 = vmatprep.subr.bf16.mxu0 %v3119
        %3126 = vmatpush1.bf16.msra.mxu0 %v3118
        %3127 = vmatprep.subr.bf16.mxu0 0
        %3128 = vmatpush1.bf16.msra.mxu0 0
        %3129 = vmatprep.subr.bf16.mxu0 0
        %3130 = vmatpush1.bf16.msra.mxu0 0
        %3131 = vmatprep.subr.bf16.mxu0 0
        %3132 = vmatpush1.bf16.msra.mxu0 0
        %3133 = vmatprep.subr.bf16.mxu0 0
        %3134 = vmatpush1.bf16.msra.mxu0 0
        %3135 = vmatprep.subr.bf16.mxu0 0
        %3136 = vmatpush1.bf16.msra.mxu0 0
        %3137 = vmatprep.subr.bf16.mxu0 0
        %3138 = vmatpush1.bf16.msra.mxu0 0
        %3139 = vmatprep.subr.bf16.mxu0 0
        %3140 = vmatpush1.bf16.msra.mxu0 0
        %3141 = vmatprep.subr.bf16.mxu0 0
        %3142 = vmatpush1.bf16.msra.mxu0 0
        %3143 = vmatprep.subr.bf16.mxu0 0
        %3144 = vmatpush1.bf16.msra.mxu0 0
        %3145 = vmatprep.subr.bf16.mxu0 0
        %3146 = vmatpush1.bf16.msra.mxu0 0
        %3147 = vmatprep.subr.bf16.mxu0 0
        %3148 = vmatpush1.bf16.msra.mxu0 0
        %3149 = vmatprep.subr.bf16.mxu0 0
        %3150 = vmatpush1.bf16.msra.mxu0 0
        %3151 = vmatprep.subr.bf16.mxu0 0
        %3152 = vmatpush1.bf16.msra.mxu0 0
        %3153 = vmatprep.subr.bf16.mxu0 0
        %3154 = vmatpush1.bf16.msra.mxu0 0
        %3155 = vmatprep.subr.bf16.mxu0 0
        %3156 = vmatpush1.bf16.msra.mxu0 0
        %3157 = vmatprep.mubr.bf16.mxu0 0
        %3158 = vmatmul.mubr.bf16.gmra.mrb[0].mxu0 %v3123
        %v3159 = vpop.f32.mrb[0].mxu0
        %v3160 = vadd.f32 0.0, %v3159
        %v3161 = vpop.f32.mrb[0].mxu0
        %v3162 = vadd.f32 0.0, %v3161
        %v3163 = vpop.f32.mrb[0].mxu0
        %v3164 = vpop.f32.mrb[0].mxu0
        %3165 = vdwg.mxu0
        %v3166 = vpack.i.b16 %v2892, %v2892
        %v3167 = vlaneseq
        %v3168 = vshrl.u32 %v3167, 7
        %v3169 = vsub.s32 0, %v3168
        %v3170 = vrot.slane %v3166, %v3169
        %v3173 = vunpack.c.l.b16 %v2910
        %v3174 = vunpack.c.h.b16 %v2910
        %v3175 = vunpack.c.l.b16 %v2911
        %v3176 = vunpack.c.h.b16 %v2911
        %v3177 = vpack.c.b16 %v3175, %v3173
        %v3178 = vpack.c.b16 %v3176, %v3174
        %v3182 = vsel %vm1990, %v3170, 0
        %3184 = vmatprep.subr.bf16.mxu0 %v3178
        %3185 = vmatpush1.bf16.msra.mxu0 %v3177
        %3186 = vmatprep.subr.bf16.mxu0 0
        %3187 = vmatpush1.bf16.msra.mxu0 0
        %3188 = vmatprep.subr.bf16.mxu0 0
        %3189 = vmatpush1.bf16.msra.mxu0 0
        %3190 = vmatprep.subr.bf16.mxu0 0
        %3191 = vmatpush1.bf16.msra.mxu0 0
        %3192 = vmatprep.subr.bf16.mxu0 0
        %3193 = vmatpush1.bf16.msra.mxu0 0
        %3194 = vmatprep.subr.bf16.mxu0 0
        %3195 = vmatpush1.bf16.msra.mxu0 0
        %3196 = vmatprep.subr.bf16.mxu0 0
        %3197 = vmatpush1.bf16.msra.mxu0 0
        %3198 = vmatprep.subr.bf16.mxu0 0
        %3199 = vmatpush1.bf16.msra.mxu0 0
        %3200 = vmatprep.subr.bf16.mxu0 0
        %3201 = vmatpush1.bf16.msra.mxu0 0
        %3202 = vmatprep.subr.bf16.mxu0 0
        %3203 = vmatpush1.bf16.msra.mxu0 0
        %3204 = vmatprep.subr.bf16.mxu0 0
        %3205 = vmatpush1.bf16.msra.mxu0 0
        %3206 = vmatprep.subr.bf16.mxu0 0
        %3207 = vmatpush1.bf16.msra.mxu0 0
        %3208 = vmatprep.subr.bf16.mxu0 0
        %3209 = vmatpush1.bf16.msra.mxu0 0
        %3210 = vmatprep.subr.bf16.mxu0 0
        %3211 = vmatpush1.bf16.msra.mxu0 0
        %3212 = vmatprep.subr.bf16.mxu0 0
        %3213 = vmatpush1.bf16.msra.mxu0 0
        %3214 = vmatprep.subr.bf16.mxu0 0
        %3215 = vmatpush1.bf16.msra.mxu0 0
        %3216 = vmatprep.mubr.bf16.mxu0 0
        %3217 = vmatmul.mubr.bf16.gmra.mrb[0].mxu0 %v3182
        %v3218 = vpop.f32.mrb[0].mxu0
        %v3219 = vadd.f32 0.0, %v3218
        %v3220 = vpop.f32.mrb[0].mxu0
        %v3221 = vadd.f32 0.0, %v3220
        %v3222 = vpop.f32.mrb[0].mxu0
        %v3223 = vpop.f32.mrb[0].mxu0
        %3224 = vdwg.mxu0
        %v3225 = vpack.i.b16 %v2893, %v2893
        %v3226 = vlaneseq
        %v3227 = vshrl.u32 %v3226, 7
        %v3228 = vsub.s32 0, %v3227
        %v3229 = vrot.slane %v3225, %v3228
        %v3232 = vunpack.c.l.b16 %v2912
        %v3233 = vunpack.c.h.b16 %v2912
        %v3234 = vunpack.c.l.b16 %v2913
        %v3235 = vunpack.c.h.b16 %v2913
        %v3236 = vpack.c.b16 %v3234, %v3232
        %v3237 = vpack.c.b16 %v3235, %v3233
        %v3241 = vsel %vm1990, %v3229, 0
        %3243 = vmatprep.subr.bf16.mxu0 %v3237
        %3244 = vmatpush1.bf16.msra.mxu0 %v3236
        %3245 = vmatprep.subr.bf16.mxu0 0
        %3246 = vmatpush1.bf16.msra.mxu0 0
        %3247 = vmatprep.subr.bf16.mxu0 0
        %3248 = vmatpush1.bf16.msra.mxu0 0
        %3249 = vmatprep.subr.bf16.mxu0 0
        %3250 = vmatpush1.bf16.msra.mxu0 0
        %3251 = vmatprep.subr.bf16.mxu0 0
        %3252 = vmatpush1.bf16.msra.mxu0 0
        %3253 = vmatprep.subr.bf16.mxu0 0
        %3254 = vmatpush1.bf16.msra.mxu0 0
        %3255 = vmatprep.subr.bf16.mxu0 0
        %3256 = vmatpush1.bf16.msra.mxu0 0
        %3257 = vmatprep.subr.bf16.mxu0 0
        %3258 = vmatpush1.bf16.msra.mxu0 0
        %3259 = vmatprep.subr.bf16.mxu0 0
        %3260 = vmatpush1.bf16.msra.mxu0 0
        %3261 = vmatprep.subr.bf16.mxu0 0
        %3262 = vmatpush1.bf16.msra.mxu0 0
        %3263 = vmatprep.subr.bf16.mxu0 0
        %3264 = vmatpush1.bf16.msra.mxu0 0
        %3265 = vmatprep.subr.bf16.mxu0 0
        %3266 = vmatpush1.bf16.msra.mxu0 0
        %3267 = vmatprep.subr.bf16.mxu0 0
        %3268 = vmatpush1.bf16.msra.mxu0 0
        %3269 = vmatprep.subr.bf16.mxu0 0
        %3270 = vmatpush1.bf16.msra.mxu0 0
        %3271 = vmatprep.subr.bf16.mxu0 0
        %3272 = vmatpush1.bf16.msra.mxu0 0
        %3273 = vmatprep.subr.bf16.mxu0 0
        %3274 = vmatpush1.bf16.msra.mxu0 0
        %3275 = vmatprep.mubr.bf16.mxu0 0
        %3276 = vmatmul.mubr.bf16.gmra.mrb[0].mxu0 %v3241
        %v3277 = vpop.f32.mrb[0].mxu0
        %v3278 = vadd.f32 0.0, %v3277
        %v3279 = vpop.f32.mrb[0].mxu0
        %v3280 = vadd.f32 0.0, %v3279
        %v3281 = vpop.f32.mrb[0].mxu0
        %v3282 = vpop.f32.mrb[0].mxu0
        %3283 = vdwg.mxu0
        %v3284 = vpack.i.b16 %v2894, %v2894
        %v3285 = vlaneseq
        %v3286 = vshrl.u32 %v3285, 7
        %v3287 = vsub.s32 0, %v3286
        %v3288 = vrot.slane %v3284, %v3287
        %v3291 = vunpack.c.l.b16 %v2914
        %v3292 = vunpack.c.h.b16 %v2914
        %v3293 = vunpack.c.l.b16 %v2915
        %v3294 = vunpack.c.h.b16 %v2915
        %v3295 = vpack.c.b16 %v3293, %v3291
        %v3296 = vpack.c.b16 %v3294, %v3292
        %v3300 = vsel %vm1990, %v3288, 0
        %3302 = vmatprep.subr.bf16.mxu0 %v3296
        %3303 = vmatpush1.bf16.msra.mxu0 %v3295
        %3304 = vmatprep.subr.bf16.mxu0 0
        %3305 = vmatpush1.bf16.msra.mxu0 0
        %3306 = vmatprep.subr.bf16.mxu0 0
        %3307 = vmatpush1.bf16.msra.mxu0 0
        %3308 = vmatprep.subr.bf16.mxu0 0
        %3309 = vmatpush1.bf16.msra.mxu0 0
        %3310 = vmatprep.subr.bf16.mxu0 0
        %3311 = vmatpush1.bf16.msra.mxu0 0
        %3312 = vmatprep.subr.bf16.mxu0 0
        %3313 = vmatpush1.bf16.msra.mxu0 0
        %3314 = vmatprep.subr.bf16.mxu0 0
        %3315 = vmatpush1.bf16.msra.mxu0 0
        %3316 = vmatprep.subr.bf16.mxu0 0
        %3317 = vmatpush1.bf16.msra.mxu0 0
        %3318 = vmatprep.subr.bf16.mxu0 0
        %3319 = vmatpush1.bf16.msra.mxu0 0
        %3320 = vmatprep.subr.bf16.mxu0 0
        %3321 = vmatpush1.bf16.msra.mxu0 0
        %3322 = vmatprep.subr.bf16.mxu0 0
        %3323 = vmatpush1.bf16.msra.mxu0 0
        %3324 = vmatprep.subr.bf16.mxu0 0
        %3325 = vmatpush1.bf16.msra.mxu0 0
        %3326 = vmatprep.subr.bf16.mxu0 0
        %3327 = vmatpush1.bf16.msra.mxu0 0
        %3328 = vmatprep.subr.bf16.mxu0 0
        %3329 = vmatpush1.bf16.msra.mxu0 0
        %3330 = vmatprep.subr.bf16.mxu0 0
        %3331 = vmatpush1.bf16.msra.mxu0 0
        %3332 = vmatprep.subr.bf16.mxu0 0
        %3333 = vmatpush1.bf16.msra.mxu0 0
        %3334 = vmatprep.mubr.bf16.mxu0 0
        %3335 = vmatmul.mubr.bf16.gmra.mrb[0].mxu0 %v3300
        %v3336 = vpop.f32.mrb[0].mxu0
        %v3337 = vadd.f32 0.0, %v3336
        %v3338 = vpop.f32.mrb[0].mxu0
        %v3339 = vadd.f32 0.0, %v3338
        %v3340 = vpop.f32.mrb[0].mxu0
        %v3341 = vpop.f32.mrb[0].mxu0
        %3342 = vdwg.mxu0
        %v3343 = vpack.i.b16 %v2895, %v2895
        %v3344 = vlaneseq
        %v3345 = vshrl.u32 %v3344, 7
        %v3346 = vsub.s32 0, %v3345
        %v3347 = vrot.slane %v3343, %v3346
        %v3350 = vunpack.c.l.b16 %v2916
        %v3351 = vunpack.c.h.b16 %v2916
        %v3352 = vunpack.c.l.b16 %v2917
        %v3353 = vunpack.c.h.b16 %v2917
        %v3354 = vpack.c.b16 %v3352, %v3350
        %v3355 = vpack.c.b16 %v3353, %v3351
        %v3359 = vsel %vm1990, %v3347, 0
        %3361 = vmatprep.subr.bf16.mxu0 %v3355
        %3362 = vmatpush1.bf16.msra.mxu0 %v3354
        %3363 = vmatprep.subr.bf16.mxu0 0
        %3364 = vmatpush1.bf16.msra.mxu0 0
        %3365 = vmatprep.subr.bf16.mxu0 0
        %3366 = vmatpush1.bf16.msra.mxu0 0
        %3367 = vmatprep.subr.bf16.mxu0 0
        %3368 = vmatpush1.bf16.msra.mxu0 0
        %3369 = vmatprep.subr.bf16.mxu0 0
        %3370 = vmatpush1.bf16.msra.mxu0 0
        %3371 = vmatprep.subr.bf16.mxu0 0
        %3372 = vmatpush1.bf16.msra.mxu0 0
        %3373 = vmatprep.subr.bf16.mxu0 0
        %3374 = vmatpush1.bf16.msra.mxu0 0
        %3375 = vmatprep.subr.bf16.mxu0 0
        %3376 = vmatpush1.bf16.msra.mxu0 0
        %3377 = vmatprep.subr.bf16.mxu0 0
        %3378 = vmatpush1.bf16.msra.mxu0 0
        %3379 = vmatprep.subr.bf16.mxu0 0
        %3380 = vmatpush1.bf16.msra.mxu0 0
        %3381 = vmatprep.subr.bf16.mxu0 0
        %3382 = vmatpush1.bf16.msra.mxu0 0
        %3383 = vmatprep.subr.bf16.mxu0 0
        %3384 = vmatpush1.bf16.msra.mxu0 0
        %3385 = vmatprep.subr.bf16.mxu0 0
        %3386 = vmatpush1.bf16.msra.mxu0 0
        %3387 = vmatprep.subr.bf16.mxu0 0
        %3388 = vmatpush1.bf16.msra.mxu0 0
        %3389 = vmatprep.subr.bf16.mxu0 0
        %3390 = vmatpush1.bf16.msra.mxu0 0
        %3391 = vmatprep.subr.bf16.mxu0 0
        %3392 = vmatpush1.bf16.msra.mxu0 0
        %3393 = vmatprep.mubr.bf16.mxu0 0
        %3394 = vmatmul.mubr.bf16.gmra.mrb[0].mxu0 %v3359
        %v3395 = vpop.f32.mrb[0].mxu0
        %v3396 = vadd.f32 0.0, %v3395
        %v3397 = vpop.f32.mrb[0].mxu0
        %v3398 = vadd.f32 0.0, %v3397
        %v3399 = vpop.f32.mrb[0].mxu0
        %v3400 = vpop.f32.mrb[0].mxu0
        %3401 = vdwg.mxu0
        %v3402 = vpack.i.b16 %v2896, %v2896
        %v3403 = vlaneseq
        %v3404 = vshrl.u32 %v3403, 7
        %v3405 = vsub.s32 0, %v3404
        %v3406 = vrot.slane %v3402, %v3405
        %v3409 = vunpack.c.l.b16 %v2918
        %v3410 = vunpack.c.h.b16 %v2918
        %v3411 = vunpack.c.l.b16 %v2919
        %v3412 = vunpack.c.h.b16 %v2919
        %v3413 = vpack.c.b16 %v3411, %v3409
        %v3414 = vpack.c.b16 %v3412, %v3410
        %v3418 = vsel %vm1990, %v3406, 0
        %3420 = vmatprep.subr.bf16.mxu0 %v3414
        %3421 = vmatpush1.bf16.msra.mxu0 %v3413
        %3422 = vmatprep.subr.bf16.mxu0 0
        %3423 = vmatpush1.bf16.msra.mxu0 0
        %3424 = vmatprep.subr.bf16.mxu0 0
        %3425 = vmatpush1.bf16.msra.mxu0 0
        %3426 = vmatprep.subr.bf16.mxu0 0
        %3427 = vmatpush1.bf16.msra.mxu0 0
        %3428 = vmatprep.subr.bf16.mxu0 0
        %3429 = vmatpush1.bf16.msra.mxu0 0
        %3430 = vmatprep.subr.bf16.mxu0 0
        %3431 = vmatpush1.bf16.msra.mxu0 0
        %3432 = vmatprep.subr.bf16.mxu0 0
        %3433 = vmatpush1.bf16.msra.mxu0 0
        %3434 = vmatprep.subr.bf16.mxu0 0
        %3435 = vmatpush1.bf16.msra.mxu0 0
        %3436 = vmatprep.subr.bf16.mxu0 0
        %3437 = vmatpush1.bf16.msra.mxu0 0
        %3438 = vmatprep.subr.bf16.mxu0 0
        %3439 = vmatpush1.bf16.msra.mxu0 0
        %3440 = vmatprep.subr.bf16.mxu0 0
        %3441 = vmatpush1.bf16.msra.mxu0 0
        %3442 = vmatprep.subr.bf16.mxu0 0
        %3443 = vmatpush1.bf16.msra.mxu0 0
        %3444 = vmatprep.subr.bf16.mxu0 0
        %3445 = vmatpush1.bf16.msra.mxu0 0
        %3446 = vmatprep.subr.bf16.mxu0 0
        %3447 = vmatpush1.bf16.msra.mxu0 0
        %3448 = vmatprep.subr.bf16.mxu0 0
        %3449 = vmatpush1.bf16.msra.mxu0 0
        %3450 = vmatprep.subr.bf16.mxu0 0
        %3451 = vmatpush1.bf16.msra.mxu0 0
        %3452 = vmatprep.mubr.bf16.mxu0 0
        %3453 = vmatmul.mubr.bf16.gmra.mrb[0].mxu0 %v3418
        %v3454 = vpop.f32.mrb[0].mxu0
        %v3455 = vadd.f32 0.0, %v3454
        %v3456 = vpop.f32.mrb[0].mxu0
        %v3457 = vadd.f32 0.0, %v3456
        %v3458 = vpop.f32.mrb[0].mxu0
        %v3459 = vpop.f32.mrb[0].mxu0
        %3460 = vdwg.mxu0
        %v3461 = vpack.i.b16 %v2897, %v2897
        %v3462 = vlaneseq
        %v3463 = vshrl.u32 %v3462, 7
        %v3464 = vsub.s32 0, %v3463
        %v3465 = vrot.slane %v3461, %v3464
        %v3468 = vunpack.c.l.b16 %v2920
        %v3469 = vunpack.c.h.b16 %v2920
        %v3470 = vunpack.c.l.b16 %v2921
        %v3471 = vunpack.c.h.b16 %v2921
        %v3472 = vpack.c.b16 %v3470, %v3468
        %v3473 = vpack.c.b16 %v3471, %v3469
        %v3477 = vsel %vm1990, %v3465, 0
        %3479 = vmatprep.subr.bf16.mxu0 %v3473
        %3480 = vmatpush1.bf16.msra.mxu0 %v3472
        %3481 = vmatprep.subr.bf16.mxu0 0
        %3482 = vmatpush1.bf16.msra.mxu0 0
        %3483 = vmatprep.subr.bf16.mxu0 0
        %3484 = vmatpush1.bf16.msra.mxu0 0
        %3485 = vmatprep.subr.bf16.mxu0 0
        %3486 = vmatpush1.bf16.msra.mxu0 0
        %3487 = vmatprep.subr.bf16.mxu0 0
        %3488 = vmatpush1.bf16.msra.mxu0 0
        %3489 = vmatprep.subr.bf16.mxu0 0
        %3490 = vmatpush1.bf16.msra.mxu0 0
        %3491 = vmatprep.subr.bf16.mxu0 0
        %3492 = vmatpush1.bf16.msra.mxu0 0
        %3493 = vmatprep.subr.bf16.mxu0 0
        %3494 = vmatpush1.bf16.msra.mxu0 0
        %3495 = vmatprep.subr.bf16.mxu0 0
        %3496 = vmatpush1.bf16.msra.mxu0 0
        %3497 = vmatprep.subr.bf16.mxu0 0
        %3498 = vmatpush1.bf16.msra.mxu0 0
        %3499 = vmatprep.subr.bf16.mxu0 0
        %3500 = vmatpush1.bf16.msra.mxu0 0
        %3501 = vmatprep.subr.bf16.mxu0 0
        %3502 = vmatpush1.bf16.msra.mxu0 0
        %3503 = vmatprep.subr.bf16.mxu0 0
        %3504 = vmatpush1.bf16.msra.mxu0 0
        %3505 = vmatprep.subr.bf16.mxu0 0
        %3506 = vmatpush1.bf16.msra.mxu0 0
        %3507 = vmatprep.subr.bf16.mxu0 0
        %3508 = vmatpush1.bf16.msra.mxu0 0
        %3509 = vmatprep.subr.bf16.mxu0 0
        %3510 = vmatpush1.bf16.msra.mxu0 0
        %3511 = vmatprep.mubr.bf16.mxu0 0
        %3512 = vmatmul.mubr.bf16.gmra.mrb[0].mxu0 %v3477
        %v3513 = vpop.f32.mrb[0].mxu0
        %v3514 = vadd.f32 0.0, %v3513
        %v3515 = vpop.f32.mrb[0].mxu0
        %v3516 = vadd.f32 0.0, %v3515
        %v3517 = vpop.f32.mrb[0].mxu0
        %v3518 = vpop.f32.mrb[0].mxu0
        %3519 = vdwg.mxu0
        %v3520 = vpack.i.b16 %v2898, %v2898
        %v3521 = vlaneseq
        %v3522 = vshrl.u32 %v3521, 7
        %v3523 = vsub.s32 0, %v3522
        %v3524 = vrot.slane %v3520, %v3523
        %v3527 = vunpack.c.l.b16 %v2922
        %v3528 = vunpack.c.h.b16 %v2922
        %v3529 = vunpack.c.l.b16 %v2923
        %v3530 = vunpack.c.h.b16 %v2923
        %v3531 = vpack.c.b16 %v3529, %v3527
        %v3532 = vpack.c.b16 %v3530, %v3528
        %v3536 = vsel %vm1990, %v3524, 0
        %3538 = vmatprep.subr.bf16.mxu0 %v3532
        %3539 = vmatpush1.bf16.msra.mxu0 %v3531
        %3540 = vmatprep.subr.bf16.mxu0 0
        %3541 = vmatpush1.bf16.msra.mxu0 0
        %3542 = vmatprep.subr.bf16.mxu0 0
        %3543 = vmatpush1.bf16.msra.mxu0 0
        %3544 = vmatprep.subr.bf16.mxu0 0
        %3545 = vmatpush1.bf16.msra.mxu0 0
        %3546 = vmatprep.subr.bf16.mxu0 0
        %3547 = vmatpush1.bf16.msra.mxu0 0
        %3548 = vmatprep.subr.bf16.mxu0 0
        %3549 = vmatpush1.bf16.msra.mxu0 0
        %3550 = vmatprep.subr.bf16.mxu0 0
        %3551 = vmatpush1.bf16.msra.mxu0 0
        %3552 = vmatprep.subr.bf16.mxu0 0
        %3553 = vmatpush1.bf16.msra.mxu0 0
        %3554 = vmatprep.subr.bf16.mxu0 0
        %3555 = vmatpush1.bf16.msra.mxu0 0
        %3556 = vmatprep.subr.bf16.mxu0 0
        %3557 = vmatpush1.bf16.msra.mxu0 0
        %3558 = vmatprep.subr.bf16.mxu0 0
        %3559 = vmatpush1.bf16.msra.mxu0 0
        %3560 = vmatprep.subr.bf16.mxu0 0
        %3561 = vmatpush1.bf16.msra.mxu0 0
        %3562 = vmatprep.subr.bf16.mxu0 0
        %3563 = vmatpush1.bf16.msra.mxu0 0
        %3564 = vmatprep.subr.bf16.mxu0 0
        %3565 = vmatpush1.bf16.msra.mxu0 0
        %3566 = vmatprep.subr.bf16.mxu0 0
        %3567 = vmatpush1.bf16.msra.mxu0 0
        %3568 = vmatprep.subr.bf16.mxu0 0
        %3569 = vmatpush1.bf16.msra.mxu0 0
        %3570 = vmatprep.mubr.bf16.mxu0 0
        %3571 = vmatmul.mubr.bf16.gmra.mrb[0].mxu0 %v3536
        %v3572 = vpop.f32.mrb[0].mxu0
        %v3573 = vadd.f32 0.0, %v3572
        %v3574 = vpop.f32.mrb[0].mxu0
        %v3575 = vadd.f32 0.0, %v3574
        %v3576 = vpop.f32.mrb[0].mxu0
        %v3577 = vpop.f32.mrb[0].mxu0
        %3578 = vdwg.mxu0
        %v3579 = vpack.i.b16 %v2899, %v2899
        %v3580 = vlaneseq
        %v3581 = vshrl.u32 %v3580, 7
        %v3582 = vsub.s32 0, %v3581
        %v3583 = vrot.slane %v3579, %v3582
        %v3586 = vunpack.c.l.b16 %v2924
        %v3587 = vunpack.c.h.b16 %v2924
        %v3588 = vunpack.c.l.b16 %v2925
        %v3589 = vunpack.c.h.b16 %v2925
        %v3590 = vpack.c.b16 %v3588, %v3586
        %v3591 = vpack.c.b16 %v3589, %v3587
        %v3595 = vsel %vm1990, %v3583, 0
        %3597 = vmatprep.subr.bf16.mxu0 %v3591
        %3598 = vmatpush1.bf16.msra.mxu0 %v3590
        %3599 = vmatprep.subr.bf16.mxu0 0
        %3600 = vmatpush1.bf16.msra.mxu0 0
        %3601 = vmatprep.subr.bf16.mxu0 0
        %3602 = vmatpush1.bf16.msra.mxu0 0
        %3603 = vmatprep.subr.bf16.mxu0 0
        %3604 = vmatpush1.bf16.msra.mxu0 0
        %3605 = vmatprep.subr.bf16.mxu0 0
        %3606 = vmatpush1.bf16.msra.mxu0 0
        %3607 = vmatprep.subr.bf16.mxu0 0
        %3608 = vmatpush1.bf16.msra.mxu0 0
        %3609 = vmatprep.subr.bf16.mxu0 0
        %3610 = vmatpush1.bf16.msra.mxu0 0
        %3611 = vmatprep.subr.bf16.mxu0 0
        %3612 = vmatpush1.bf16.msra.mxu0 0
        %3613 = vmatprep.subr.bf16.mxu0 0
        %3614 = vmatpush1.bf16.msra.mxu0 0
        %3615 = vmatprep.subr.bf16.mxu0 0
        %3616 = vmatpush1.bf16.msra.mxu0 0
        %3617 = vmatprep.subr.bf16.mxu0 0
        %3618 = vmatpush1.bf16.msra.mxu0 0
        %3619 = vmatprep.subr.bf16.mxu0 0
        %3620 = vmatpush1.bf16.msra.mxu0 0
        %3621 = vmatprep.subr.bf16.mxu0 0
        %3622 = vmatpush1.bf16.msra.mxu0 0
        %3623 = vmatprep.subr.bf16.mxu0 0
        %3624 = vmatpush1.bf16.msra.mxu0 0
        %3625 = vmatprep.subr.bf16.mxu0 0
        %3626 = vmatpush1.bf16.msra.mxu0 0
        %3627 = vmatprep.subr.bf16.mxu0 0
        %3628 = vmatpush1.bf16.msra.mxu0 0
        %3629 = vmatprep.mubr.bf16.mxu0 0
        %3630 = vmatmul.mubr.bf16.gmra.mrb[0].mxu0 %v3595
        %v3631 = vpop.f32.mrb[0].mxu0
        %v3632 = vadd.f32 0.0, %v3631
        %v3633 = vpop.f32.mrb[0].mxu0
        %v3634 = vadd.f32 0.0, %v3633
        %v3635 = vpop.f32.mrb[0].mxu0
        %v3636 = vpop.f32.mrb[0].mxu0
        %3637 = vdwg.mxu0
        %v3638 = vpack.i.b16 %v2900, %v2900
        %v3639 = vlaneseq
        %v3640 = vshrl.u32 %v3639, 7
        %v3641 = vsub.s32 0, %v3640
        %v3642 = vrot.slane %v3638, %v3641
        %v3645 = vunpack.c.l.b16 %v2926
        %v3646 = vunpack.c.h.b16 %v2926
        %v3647 = vunpack.c.l.b16 %v2927
        %v3648 = vunpack.c.h.b16 %v2927
        %v3649 = vpack.c.b16 %v3647, %v3645
        %v3650 = vpack.c.b16 %v3648, %v3646
        %v3654 = vsel %vm1990, %v3642, 0
        %3656 = vmatprep.subr.bf16.mxu0 %v3650
        %3657 = vmatpush1.bf16.msra.mxu0 %v3649
        %3658 = vmatprep.subr.bf16.mxu0 0
        %3659 = vmatpush1.bf16.msra.mxu0 0
        %3660 = vmatprep.subr.bf16.mxu0 0
        %3661 = vmatpush1.bf16.msra.mxu0 0
        %3662 = vmatprep.subr.bf16.mxu0 0
        %3663 = vmatpush1.bf16.msra.mxu0 0
        %3664 = vmatprep.subr.bf16.mxu0 0
        %3665 = vmatpush1.bf16.msra.mxu0 0
        %3666 = vmatprep.subr.bf16.mxu0 0
        %3667 = vmatpush1.bf16.msra.mxu0 0
        %3668 = vmatprep.subr.bf16.mxu0 0
        %3669 = vmatpush1.bf16.msra.mxu0 0
        %3670 = vmatprep.subr.bf16.mxu0 0
        %3671 = vmatpush1.bf16.msra.mxu0 0
        %3672 = vmatprep.subr.bf16.mxu0 0
        %3673 = vmatpush1.bf16.msra.mxu0 0
        %3674 = vmatprep.subr.bf16.mxu0 0
        %3675 = vmatpush1.bf16.msra.mxu0 0
        %3676 = vmatprep.subr.bf16.mxu0 0
        %3677 = vmatpush1.bf16.msra.mxu0 0
        %3678 = vmatprep.subr.bf16.mxu0 0
        %3679 = vmatpush1.bf16.msra.mxu0 0
        %3680 = vmatprep.subr.bf16.mxu0 0
        %3681 = vmatpush1.bf16.msra.mxu0 0
        %3682 = vmatprep.subr.bf16.mxu0 0
        %3683 = vmatpush1.bf16.msra.mxu0 0
        %3684 = vmatprep.subr.bf16.mxu0 0
        %3685 = vmatpush1.bf16.msra.mxu0 0
        %3686 = vmatprep.subr.bf16.mxu0 0
        %3687 = vmatpush1.bf16.msra.mxu0 0
        %3688 = vmatprep.mubr.bf16.mxu0 0
        %3689 = vmatmul.mubr.bf16.gmra.mrb[0].mxu0 %v3654
        %v3690 = vpop.f32.mrb[0].mxu0
        %v3691 = vadd.f32 0.0, %v3690
        %v3692 = vpop.f32.mrb[0].mxu0
        %v3693 = vadd.f32 0.0, %v3692
        %v3694 = vpop.f32.mrb[0].mxu0
        %v3695 = vpop.f32.mrb[0].mxu0
        %3696 = vdwg.mxu0
        %v3697 = vpack.i.b16 %v2901, %v2901
        %v3698 = vlaneseq
        %v3699 = vshrl.u32 %v3698, 7
        %v3700 = vsub.s32 0, %v3699
        %v3701 = vrot.slane %v3697, %v3700
        %v3704 = vunpack.c.l.b16 %v2928
        %v3705 = vunpack.c.h.b16 %v2928
        %v3706 = vunpack.c.l.b16 %v2929
        %v3707 = vunpack.c.h.b16 %v2929
        %v3708 = vpack.c.b16 %v3706, %v3704
        %v3709 = vpack.c.b16 %v3707, %v3705
        %v3713 = vsel %vm1990, %v3701, 0
        %3715 = vmatprep.subr.bf16.mxu0 %v3709
        %3716 = vmatpush1.bf16.msra.mxu0 %v3708
        %3717 = vmatprep.subr.bf16.mxu0 0
        %3718 = vmatpush1.bf16.msra.mxu0 0
        %3719 = vmatprep.subr.bf16.mxu0 0
        %3720 = vmatpush1.bf16.msra.mxu0 0
        %3721 = vmatprep.subr.bf16.mxu0 0
        %3722 = vmatpush1.bf16.msra.mxu0 0
        %3723 = vmatprep.subr.bf16.mxu0 0
        %3724 = vmatpush1.bf16.msra.mxu0 0
        %3725 = vmatprep.subr.bf16.mxu0 0
        %3726 = vmatpush1.bf16.msra.mxu0 0
        %3727 = vmatprep.subr.bf16.mxu0 0
        %3728 = vmatpush1.bf16.msra.mxu0 0
        %3729 = vmatprep.subr.bf16.mxu0 0
        %3730 = vmatpush1.bf16.msra.mxu0 0
        %3731 = vmatprep.subr.bf16.mxu0 0
        %3732 = vmatpush1.bf16.msra.mxu0 0
        %3733 = vmatprep.subr.bf16.mxu0 0
        %3734 = vmatpush1.bf16.msra.mxu0 0
        %3735 = vmatprep.subr.bf16.mxu0 0
        %3736 = vmatpush1.bf16.msra.mxu0 0
        %3737 = vmatprep.subr.bf16.mxu0 0
        %3738 = vmatpush1.bf16.msra.mxu0 0
        %3739 = vmatprep.subr.bf16.mxu0 0
        %3740 = vmatpush1.bf16.msra.mxu0 0
        %3741 = vmatprep.subr.bf16.mxu0 0
        %3742 = vmatpush1.bf16.msra.mxu0 0
        %3743 = vmatprep.subr.bf16.mxu0 0
        %3744 = vmatpush1.bf16.msra.mxu0 0
        %3745 = vmatprep.subr.bf16.mxu0 0
        %3746 = vmatpush1.bf16.msra.mxu0 0
        %3747 = vmatprep.mubr.bf16.mxu0 0
        %3748 = vmatmul.mubr.bf16.gmra.mrb[0].mxu0 %v3713
        %v3749 = vpop.f32.mrb[0].mxu0
        %v3750 = vadd.f32 0.0, %v3749
        %v3751 = vpop.f32.mrb[0].mxu0
        %v3752 = vadd.f32 0.0, %v3751
        %v3753 = vpop.f32.mrb[0].mxu0
        %v3754 = vpop.f32.mrb[0].mxu0
        %3755 = vdwg.mxu0
        %vm3756 = vcmask 1040384
        %v3757 = vsel %vm3756, %v2983, 0.0
        %v3758 = vsel %vm3756, %v3042, 0.0
        %v3759 = vadd.f32 %v3757, %v3758
        %v3760 = vsel %vm3756, %v3101, 0.0
        %v3761 = vadd.f32 %v3759, %v3760
        %v3762 = vsel %vm3756, %v3160, 0.0
        %v3763 = vadd.f32 %v3761, %v3762
        %v3764 = vsel %vm3756, %v3219, 0.0
        %v3765 = vadd.f32 %v3763, %v3764
        %v3766 = vsel %vm3756, %v3278, 0.0
        %v3767 = vadd.f32 %v3765, %v3766
        %v3768 = vsel %vm3756, %v3337, 0.0
        %v3769 = vadd.f32 %v3767, %v3768
        %v3770 = vsel %vm3756, %v3396, 0.0
        %v3771 = vadd.f32 %v3769, %v3770
        %v3772 = vsel %vm3756, %v3455, 0.0
        %v3773 = vadd.f32 %v3771, %v3772
        %v3774 = vsel %vm3756, %v3514, 0.0
        %v3775 = vadd.f32 %v3773, %v3774
        %v3776 = vsel %vm3756, %v3573, 0.0
        %v3777 = vadd.f32 %v3775, %v3776
        %v3778 = vsel %vm3756, %v3632, 0.0
        %v3779 = vadd.f32 %v3777, %v3778
        %v3780 = vsel %vm3756, %v3691, 0.0
        %v3781 = vadd.f32 %v3779, %v3780
        %v3782 = vsel %vm3756, %v3750, 0.0
        %v3783 = vadd.f32 %v3781, %v3782
        %vm3784 = vcmask 581632
        %v3785 = vsel %vm3784, %v2985, 0.0
        %v3786 = vsel %vm3784, %v3044, 0.0
        %v3787 = vadd.f32 %v3785, %v3786
        %v3788 = vsel %vm3784, %v3103, 0.0
        %v3789 = vadd.f32 %v3787, %v3788
        %v3790 = vsel %vm3784, %v3162, 0.0
        %v3791 = vadd.f32 %v3789, %v3790
        %v3792 = vsel %vm3784, %v3221, 0.0
        %v3793 = vadd.f32 %v3791, %v3792
        %v3794 = vsel %vm3784, %v3280, 0.0
        %v3795 = vadd.f32 %v3793, %v3794
        %v3796 = vsel %vm3784, %v3339, 0.0
        %v3797 = vadd.f32 %v3795, %v3796
        %v3798 = vsel %vm3784, %v3398, 0.0
        %v3799 = vadd.f32 %v3797, %v3798
        %v3800 = vsel %vm3784, %v3457, 0.0
        %v3801 = vadd.f32 %v3799, %v3800
        %v3802 = vsel %vm3784, %v3516, 0.0
        %v3803 = vadd.f32 %v3801, %v3802
        %v3804 = vsel %vm3784, %v3575, 0.0
        %v3805 = vadd.f32 %v3803, %v3804
        %v3806 = vsel %vm3784, %v3634, 0.0
        %v3807 = vadd.f32 %v3805, %v3806
        %v3808 = vsel %vm3784, %v3693, 0.0
        %v3809 = vadd.f32 %v3807, %v3808
        %v3810 = vsel %vm3784, %v3752, 0.0
        %v3811 = vadd.f32 %v3809, %v3810
        %v3812 = vld [vmem:[%s11] sm:$0x3]
        %v3814 = vlaneseq
        %v3815 = vshrl.u32 %v3814, 7
        %v3816 = vsub.s32 0, %v3815
        %v3817 = vrot.slane %v3812, %v3816
        %v3818 = vlaneseq
        %v3819 = vshrl.u32 %v3818, 7
        %v3820 = vsub.s32 1, %v3819
        %v3821 = vrot.slane %v3812, %v3820
        %v3824 = vadd.f32 %v3783, %v3817
        %v3825 = vadd.f32 %v3811, %v3821
        %v3826 = vmax.f32 %v3824, 0.0
        %v3827 = vmax.f32 %v3825, 0.0
        %v3828 = vpack.c.bf16 %v3826, %v3826
        %v3829 = vpack.c.bf16 %v3827, %v3827
        %v3830 = vld [vmem:[%s12] sm:$0xff]
        %v3831 = vld [vmem:[%s12 + $0x8] sm:$0xff]
        %v3832 = vld [vmem:[%s12 + $0x10] sm:$0xff]
        %v3833 = vld [vmem:[%s12 + $0x18] sm:$0xff]
        %v3834 = vld [vmem:[%s12 + $0x20] sm:$0xff]
        %v3835 = vld [vmem:[%s12 + $0x28] sm:$0xff]
        %v3836 = vld [vmem:[%s12 + $0x30] sm:$0xff]
        %v3837 = vld [vmem:[%s12 + $0x38] sm:$0xff]
        %v3838 = vld [vmem:[%s12 + $0x40] sm:$0xff]
        %v3839 = vld [vmem:[%s12 + $0x48] sm:$0xff]
        %v3840 = vld [vmem:[%s12 + $0x50] sm:$0xff]
        %v3841 = vld [vmem:[%s12 + $0x58] sm:$0xff]
        %v3842 = vld [vmem:[%s12 + $0x60] sm:$0xff]
        %v3843 = vld [vmem:[%s12 + $0x68] sm:$0xff]
        %v3844 = vld [vmem:[%s12 + $0x70] sm:$0xff]
        %v3845 = vld [vmem:[%s12 + $0x78] sm:$0xff]
        %v3846 = vld [vmem:[%s12 + $0x80] sm:$0xff]
        %v3847 = vld [vmem:[%s12 + $0x88] sm:$0xff]
        %v3848 = vld [vmem:[%s12 + $0x90] sm:$0xff]
        %v3849 = vld [vmem:[%s12 + $0x98] sm:$0xff]
        %v3850 = vld [vmem:[%s12 + $0xa0] sm:$0xff]
        %v3851 = vld [vmem:[%s12 + $0xa8] sm:$0xff]
        %v3852 = vld [vmem:[%s12 + $0xb0] sm:$0xff]
        %v3853 = vld [vmem:[%s12 + $0xb8] sm:$0xff]
        %v3854 = vld [vmem:[%s12 + $0xc0] sm:$0xff]
        %v3855 = vld [vmem:[%s13] sm:$0x3]
        %v3881 = vunpack.c.l.b16 %v3830
        %v3882 = vunpack.c.h.b16 %v3830
        %v3883 = vunpack.c.l.b16 %v3831
        %v3884 = vunpack.c.h.b16 %v3831
        %v3885 = vunpack.c.l.b16 %v3832
        %v3886 = vunpack.c.h.b16 %v3832
        %v3887 = vunpack.c.l.b16 %v3833
        %v3888 = vunpack.c.h.b16 %v3833
        %v3889 = vunpack.c.l.b16 %v3834
        %v3890 = vunpack.c.h.b16 %v3834
        %v3891 = vunpack.c.l.b16 %v3835
        %v3892 = vunpack.c.h.b16 %v3835
        %v3893 = vunpack.c.l.b16 %v3836
        %v3894 = vunpack.c.h.b16 %v3836
        %v3895 = vunpack.c.l.b16 %v3837
        %v3896 = vunpack.c.h.b16 %v3837
        %v3897 = vunpack.c.l.b16 %v3838
        %v3898 = vunpack.c.h.b16 %v3838
        %v3899 = vunpack.c.l.b16 %v3839
        %v3900 = vunpack.c.h.b16 %v3839
        %v3901 = vunpack.c.l.b16 %v3840
        %v3902 = vunpack.c.h.b16 %v3840
        %v3903 = vunpack.c.l.b16 %v3841
        %v3904 = vunpack.c.h.b16 %v3841
        %v3905 = vunpack.c.l.b16 %v3842
        %v3906 = vunpack.c.h.b16 %v3842
        %v3907 = vunpack.c.l.b16 %v3843
        %v3908 = vunpack.c.h.b16 %v3843
        %v3909 = vunpack.c.l.b16 %v3844
        %v3910 = vunpack.c.h.b16 %v3844
        %v3911 = vunpack.c.l.b16 %v3845
        %v3912 = vunpack.c.h.b16 %v3845
        %v3913 = vunpack.c.l.b16 %v3846
        %v3914 = vunpack.c.h.b16 %v3846
        %v3915 = vunpack.c.l.b16 %v3847
        %v3916 = vunpack.c.h.b16 %v3847
        %v3917 = vunpack.c.l.b16 %v3848
        %v3918 = vunpack.c.h.b16 %v3848
        %v3919 = vunpack.c.l.b16 %v3849
        %v3920 = vunpack.c.h.b16 %v3849
        %v3921 = vunpack.c.l.b16 %v3850
        %v3922 = vunpack.c.h.b16 %v3850
        %v3923 = vunpack.c.l.b16 %v3851
        %v3924 = vunpack.c.h.b16 %v3851
        %v3925 = vunpack.c.l.b16 %v3852
        %v3926 = vunpack.c.h.b16 %v3852
        %v3927 = vunpack.c.l.b16 %v3853
        %v3928 = vunpack.c.h.b16 %v3853
        %v3929 = vunpack.c.l.b16 %v3854
        %v3930 = vunpack.c.h.b16 %v3854
        %v3931 = vpack.c.b16 %v3883, %v3881
        %v3932 = vpack.c.b16 %v3884, %v3882
        %v3933 = vpack.c.b16 %v3887, %v3885
        %v3934 = vpack.c.b16 %v3888, %v3886
        %v3935 = vpack.c.b16 %v3891, %v3889
        %v3936 = vpack.c.b16 %v3892, %v3890
        %v3937 = vpack.c.b16 %v3895, %v3893
        %v3938 = vpack.c.b16 %v3896, %v3894
        %v3939 = vpack.c.b16 %v3899, %v3897
        %v3940 = vpack.c.b16 %v3900, %v3898
        %v3941 = vpack.c.b16 %v3903, %v3901
        %v3942 = vpack.c.b16 %v3904, %v3902
        %v3943 = vpack.c.b16 %v3907, %v3905
        %v3944 = vpack.c.b16 %v3908, %v3906
        %v3945 = vpack.c.b16 %v3911, %v3909
        %v3946 = vpack.c.b16 %v3912, %v3910
        %v3947 = vpack.c.b16 %v3915, %v3913
        %v3948 = vpack.c.b16 %v3916, %v3914
        %v3949 = vpack.c.b16 %v3919, %v3917
        %v3950 = vpack.c.b16 %v3920, %v3918
        %v3951 = vpack.c.b16 %v3923, %v3921
        %v3952 = vpack.c.b16 %v3924, %v3922
        %v3953 = vpack.c.b16 %v3927, %v3925
        %v3954 = vpack.c.b16 %v3928, %v3926
        %v3955 = vpack.c.b16 %v3929, %v3929
        %v3956 = vpack.c.b16 %v3930, %v3930
        %v3982 = vlaneseq
        %v3983 = vshrl.u32 %v3982, 7
        %v3984 = vsub.s32 0, %v3983
        %v3985 = vrot.slane %v3855, %v3984
        %v3986 = vlaneseq
        %v3987 = vshrl.u32 %v3986, 7
        %v3988 = vsub.s32 1, %v3987
        %v3989 = vrot.slane %v3855, %v3988
        %vm3992 = vcmask 588800
        %v3994 = vsel %vm3992, %v3829, 0
        %vm3996 = vcmask 1043456
        %v3998 = vsel %vm3996, %v3955, 0
        %v4001 = vsel %vm3996, %v3956, 0
        %4003 = vmatprep.subr.bf16.mxu0 %v3932
        %4004 = vmatpush1.bf16.msra.mxu0 %v3931
        %4005 = vmatprep.subr.bf16.mxu0 %v3934
        %4006 = vmatpush1.bf16.msra.mxu0 %v3933
        %4007 = vmatprep.subr.bf16.mxu0 %v3936
        %4008 = vmatpush1.bf16.msra.mxu0 %v3935
        %4009 = vmatprep.subr.bf16.mxu0 %v3938
        %4010 = vmatpush1.bf16.msra.mxu0 %v3937
        %4011 = vmatprep.subr.bf16.mxu0 %v3940
        %4012 = vmatpush1.bf16.msra.mxu0 %v3939
        %4013 = vmatprep.subr.bf16.mxu0 %v3942
        %4014 = vmatpush1.bf16.msra.mxu0 %v3941
        %4015 = vmatprep.subr.bf16.mxu0 %v3944
        %4016 = vmatpush1.bf16.msra.mxu0 %v3943
        %4017 = vmatprep.subr.bf16.mxu0 %v3946
        %4018 = vmatpush1.bf16.msra.mxu0 %v3945
        %4019 = vmatprep.subr.bf16.mxu0 %v3948
        %4020 = vmatpush1.bf16.msra.mxu0 %v3947
        %4021 = vmatprep.subr.bf16.mxu0 %v3950
        %4022 = vmatpush1.bf16.msra.mxu0 %v3949
        %4023 = vmatprep.subr.bf16.mxu0 %v3952
        %4024 = vmatpush1.bf16.msra.mxu0 %v3951
        %4025 = vmatprep.subr.bf16.mxu0 %v3954
        %4026 = vmatpush1.bf16.msra.mxu0 %v3953
        %4027 = vmatprep.subr.bf16.mxu0 %v4001
        %4028 = vmatpush1.bf16.msra.mxu0 %v3998
        %4029 = vmatprep.subr.bf16.mxu0 0
        %4030 = vmatpush1.bf16.msra.mxu0 0
        %4031 = vmatprep.subr.bf16.mxu0 0
        %4032 = vmatpush1.bf16.msra.mxu0 0
        %4033 = vmatprep.subr.bf16.mxu0 0
        %4034 = vmatpush1.bf16.msra.mxu0 0
        %4035 = vmatprep.mubr.bf16.mxu0 %v3994
        %4036 = vmatmul.mubr.bf16.gmra.mrb[0].mxu0 %v3828
        %v4037 = vpop.f32.mrb[0].mxu0
        %v4038 = vadd.f32 %v3985, %v4037
        %v4039 = vpop.f32.mrb[0].mxu0
        %v4040 = vadd.f32 %v3989, %v4039
        %v4041 = vpop.f32.mrb[0].mxu0
        %v4042 = vpop.f32.mrb[0].mxu0
        %4043 = vdwg.mxu0
        %v4044 = vmax.f32 %v4038, 0.0
        %v4045 = vmax.f32 %v4040, 0.0
        %v4046 = vpack.c.bf16 %v4044, %v4044
        %v4047 = vpack.c.bf16 %v4045, %v4045
        %v4048 = vld [vmem:[%s14] sm:$0xf]
        %v4049 = vld [vmem:[%s14 + $0x4] sm:$0xf]
        %v4050 = vld [vmem:[%s14 + $0x8] sm:$0xf]
        %v4051 = vld [vmem:[%s14 + $0xc] sm:$0xf]
        %v4052 = vld [vmem:[%s14 + $0x10] sm:$0xf]
        %v4053 = vld [vmem:[%s14 + $0x14] sm:$0xf]
        %v4054 = vld [vmem:[%s14 + $0x18] sm:$0xf]
        %v4055 = vld [vmem:[%s14 + $0x1c] sm:$0xf]
        %v4056 = vld [vmem:[%s14 + $0x20] sm:$0xf]
        %v4057 = vld [vmem:[%s14 + $0x24] sm:$0xf]
        %v4058 = vld [vmem:[%s14 + $0x28] sm:$0xf]
        %v4059 = vld [vmem:[%s14 + $0x2c] sm:$0xf]
        %v4060 = vld [vmem:[%s14 + $0x30] sm:$0xf]
        %v4061 = vld [vmem:[%s14 + $0x34] sm:$0xf]
        %v4062 = vld [vmem:[%s14 + $0x38] sm:$0xf]
        %v4063 = vld [vmem:[%s14 + $0x3c] sm:$0xf]
        %v4064 = vld [vmem:[%s14 + $0x40] sm:$0xf]
        %v4065 = vld [vmem:[%s14 + $0x44] sm:$0xf]
        %v4066 = vld [vmem:[%s14 + $0x48] sm:$0xf]
        %v4067 = vld [vmem:[%s14 + $0x4c] sm:$0xf]
        %v4068 = vld [vmem:[%s14 + $0x50] sm:$0xf]
        %v4069 = vld [vmem:[%s14 + $0x54] sm:$0xf]
        %v4070 = vld [vmem:[%s14 + $0x58] sm:$0xf]
        %v4071 = vld [vmem:[%s14 + $0x5c] sm:$0xf]
        %v4072 = vld [vmem:[%s14 + $0x60] sm:$0xf]
        %v4073 = vld [vmem:[%s15] sm:$0x1]
        %v4099 = vunpack.c.l.b16 %v4048
        %v4100 = vunpack.c.l.b16 %v4049
        %v4101 = vunpack.c.l.b16 %v4050
        %v4102 = vunpack.c.l.b16 %v4051
        %v4103 = vunpack.c.l.b16 %v4052
        %v4104 = vunpack.c.l.b16 %v4053
        %v4105 = vunpack.c.l.b16 %v4054
        %v4106 = vunpack.c.l.b16 %v4055
        %v4107 = vunpack.c.l.b16 %v4056
        %v4108 = vunpack.c.l.b16 %v4057
        %v4109 = vunpack.c.l.b16 %v4058
        %v4110 = vunpack.c.l.b16 %v4059
        %v4111 = vunpack.c.l.b16 %v4060
        %v4112 = vunpack.c.l.b16 %v4061
        %v4113 = vunpack.c.l.b16 %v4062
        %v4114 = vunpack.c.l.b16 %v4063
        %v4115 = vunpack.c.l.b16 %v4064
        %v4116 = vunpack.c.l.b16 %v4065
        %v4117 = vunpack.c.l.b16 %v4066
        %v4118 = vunpack.c.l.b16 %v4067
        %v4119 = vunpack.c.l.b16 %v4068
        %v4120 = vunpack.c.l.b16 %v4069
        %v4121 = vunpack.c.l.b16 %v4070
        %v4122 = vunpack.c.l.b16 %v4071
        %v4123 = vunpack.c.l.b16 %v4072
        %v4124 = vpack.c.b16 %v4100, %v4099
        %v4125 = vpack.c.b16 %v4102, %v4101
        %v4126 = vpack.c.b16 %v4104, %v4103
        %v4127 = vpack.c.b16 %v4106, %v4105
        %v4128 = vpack.c.b16 %v4108, %v4107
        %v4129 = vpack.c.b16 %v4110, %v4109
        %v4130 = vpack.c.b16 %v4112, %v4111
        %v4131 = vpack.c.b16 %v4114, %v4113
        %v4132 = vpack.c.b16 %v4116, %v4115
        %v4133 = vpack.c.b16 %v4118, %v4117
        %v4134 = vpack.c.b16 %v4120, %v4119
        %v4135 = vpack.c.b16 %v4122, %v4121
        %v4136 = vpack.c.b16 %v4123, %v4123
        %v4150 = vsel %vm3992, %v4047, 0
        %v4153 = vsel %vm3996, %v4136, 0
        %4155 = vmatprep.subr.bf16.mxu0 0
        %4156 = vmatpush1.bf16.msra.mxu0 %v4124
        %4157 = vmatprep.subr.bf16.mxu0 0
        %4158 = vmatpush1.bf16.msra.mxu0 %v4125
        %4159 = vmatprep.subr.bf16.mxu0 0
        %4160 = vmatpush1.bf16.msra.mxu0 %v4126
        %4161 = vmatprep.subr.bf16.mxu0 0
        %4162 = vmatpush1.bf16.msra.mxu0 %v4127
        %4163 = vmatprep.subr.bf16.mxu0 0
        %4164 = vmatpush1.bf16.msra.mxu0 %v4128
        %4165 = vmatprep.subr.bf16.mxu0 0
        %4166 = vmatpush1.bf16.msra.mxu0 %v4129
        %4167 = vmatprep.subr.bf16.mxu0 0
        %4168 = vmatpush1.bf16.msra.mxu0 %v4130
        %4169 = vmatprep.subr.bf16.mxu0 0
        %4170 = vmatpush1.bf16.msra.mxu0 %v4131
        %4171 = vmatprep.subr.bf16.mxu0 0
        %4172 = vmatpush1.bf16.msra.mxu0 %v4132
        %4173 = vmatprep.subr.bf16.mxu0 0
        %4174 = vmatpush1.bf16.msra.mxu0 %v4133
        %4175 = vmatprep.subr.bf16.mxu0 0
        %4176 = vmatpush1.bf16.msra.mxu0 %v4134
        %4177 = vmatprep.subr.bf16.mxu0 0
        %4178 = vmatpush1.bf16.msra.mxu0 %v4135
        %4179 = vmatprep.subr.bf16.mxu0 0
        %4180 = vmatpush1.bf16.msra.mxu0 %v4153
        %4181 = vmatprep.subr.bf16.mxu0 0
        %4182 = vmatpush1.bf16.msra.mxu0 0
        %4183 = vmatprep.subr.bf16.mxu0 0
        %4184 = vmatpush1.bf16.msra.mxu0 0
        %4185 = vmatprep.subr.bf16.mxu0 0
        %4186 = vmatpush1.bf16.msra.mxu0 0
        %4187 = vmatprep.mubr.bf16.mxu0 %v4150
        %4188 = vmatmul.mubr.bf16.gmra.mrb[0].mxu0 %v4046
        %v4189 = vpop.f32.mrb[0].mxu0
        %v4190 = vadd.f32 %v4073, %v4189
        %v4191 = vpop.f32.mrb[0].mxu0
        %v4192 = vpop.f32.mrb[0].mxu0
        %v4193 = vpop.f32.mrb[0].mxu0
        %4194 = vdwg.mxu0
        %vm4195 = vcmask 32768
        %4196 = vst.msk [vmem:[%s513] sm:$0x1] %vm4195, %v4190
        %s4197 = sand.u32 %s379, 1
        %s4198 = scalar_lea.sflag [#allocation5], %s4197
        %s4199 = sand.u32 %s379, 1
        %s4200 = scalar_lea.vmem [#allocation4], %s4199
        // Predicated region
        $region85: #{conv1d_bn_linear_forward.1} parent=83 // pred_check
          %p4201 = pneg %p389
        $region86: #{conv1d_bn_linear_forward.1} parent=83 // pred_check_branch
          %4203 = sbr.rel (%p4201) target = $region88
        $region87: #{conv1d_bn_linear_forward.1} parent=83 // pred_region
          %s4205 = ssub.s32 16, 16
          %4206 = vsyncadd %s4198, %s4205
          %s4207 = smul.addr %s30, 16
          %s4208 = scalar_lea.hbm %s16, %s4207
          %s4210 = sshll.u32 %s4200, 4
          %s4211 = int_to_ptr.vmem [resolvable:$true] %s4210
          %4213 = dma.vmem_to_hbm [thread:$0]  %s4211, 16, %s4208, %s4198
        $region88: #{conv1d_bn_linear_forward.1} parent=83 // pred_fallthru
          _
      $region84: #{conv1d_bn_linear_forward.1} parent=5 // pred_fallthru
        _
      %p4214 = scmp.le.s32.totalorder 2, %s25
      // Predicated region
      $region89: #{conv1d_bn_linear_forward.1} parent=5 // pred_check
        %p4215 = pneg %p4214
      $region90: #{conv1d_bn_linear_forward.1} parent=5 // pred_check_branch
        %4217 = sbr.rel (%p4215) target = $region92
      $region91: #{conv1d_bn_linear_forward.1} parent=5 // pred_region
        %s4218 = ssub.s32 %s25, 2
        // Predicated region
        $region93: #{conv1d_bn_linear_forward.1} parent=91 // pred_check
          %p4219 = pneg %p395
        $region94: #{conv1d_bn_linear_forward.1} parent=91 // pred_check_branch
          %4221 = sbr.rel (%p4219) target = $region96
        $region95: #{conv1d_bn_linear_forward.1} parent=91 // pred_region
          %s4222 = sand.u32 %s380, 1
          %s4223 = scalar_lea.sflag [#allocation5], %s4222
          %s4224 = sand.u32 %s380, 1
          %s4225 = scalar_lea.vmem [#allocation4], %s4224
          %4226 = dma.done %s4223, 16
        $region96: #{conv1d_bn_linear_forward.1} parent=91 // pred_fallthru
          _
      $region92: #{conv1d_bn_linear_forward.1} parent=5 // pred_fallthru
        _
    $region6: #{conv1d_bn_linear_forward.1} parent=1 // loop_footer
      %s29 = sadd.s32 1, %s25
    $region7: #{conv1d_bn_linear_forward.1} parent=1 // loop_footer_branch
      %24 = sbr.rel target = $region3
    $region8: #{conv1d_bn_linear_forward.1} parent=1 // loop_exit
      _
    %4227 = vsyncpa [#allocation5], 1
    %s4228 = scalar_lea.sflag [#allocation5], 1
    %4229 = vsyncpa %s4228, 1

</llo_original>
